<compile_context>
chip_gen: v5e
topology: v5e:2x2
jax: 0.10.0
libtpu: 0.0.40
codegen_flags: <defaults>
</compile_context>

<pallas_src>
import jax
import jax.numpy as jnp
import numpy as np
from jax.experimental import pallas as pl
from jax.experimental.pallas import tpu as pltpu

N = 10                 # residual divisor (matches the PyTorch module)
NBLOCKS = N + 1        # 11 Blocks_v instances
D_IN = 2
D_HID = 20

# ---- packed-parameter layout: one aligned (P_ROWS, P_COLS) f32 tile per block ----
P_ROWS = 24                      # >= D_HID, multiple of 8 (sublane tile)
P_COLS = 128                     # one lane tile
# cols [0,24)  : augmented W2 block, (out, in):
#                  [0:20,0:20] = W2, [0:20,20] = b2, [20,20] = 1 (ones passthrough)
W1_OFF = P_ROWS                  # cols [24,26): n1 weight, (out=20, in=2)
W3_OFF = W1_OFF + D_IN           # cols [26,28): n3 weight TRANSPOSED & pre-scaled by 1/N,
#                                  with row 20 = b3 / N (bias fold via the ones row)
B1_COL = W3_OFF + D_IN           # col  28    : n1 bias column, row 20 = 1 (ones seed)

ONE_ROW = D_HID                  # row index carrying the constant 1 through the block


def resnet_kernel(x_ref, p_ref, o_ref):
    """One batch tile (TILE_B points on the lane axis) through all 11 blocks."""
    # Lane-dense carry: two (1, TILE_B) rows (feature on sublanes, batch on lanes).
    x0 = x_ref[0:1, :]
    x1 = x_ref[1:2, :]

    for i in range(NBLOCKS):                                   # static unroll (11)
        # Sublane-aligned 24-row parameter slices (zero padding keeps math exact).
        w2a  = p_ref[i, :, 0:P_ROWS]                           # (24, 24) W2 + b2 + ones
        w1c0 = p_ref[i, :, W1_OFF:W1_OFF + 1]                  # (24, 1)
        w1c1 = p_ref[i, :, W1_OFF + 1:W1_OFF + 2]              # (24, 1)
        w3c0 = p_ref[i, :, W3_OFF:W3_OFF + 1]                  # (24, 1)  (W3^T + b3)/N
        w3c1 = p_ref[i, :, W3_OFF + 1:W3_OFF + 2]              # (24, 1)
        b1c  = p_ref[i, :, B1_COL:B1_COL + 1]                  # (24, 1)  b1, row20 = 1

        # n1: 2 -> 20 — VPU broadcast multiply-adds (param broadcasts are not on
        # the x dependency chain, the scheduler can pre-compute them).
        h = jnp.maximum(w1c0 * x0 + w1c1 * x1 + b1c, 0.0)      # (24, TILE_B), row20 = 1

        # n2: 20 -> 20 (+ b2 via the ones passthrough) — the single f32 MXU pass.
        h = jnp.dot(w2a, h, preferred_element_type=jnp.float32)
        h = jnp.maximum(h, 0.0)                                # row20 stays 1, rows 21..23 stay 0

        # n3: 20 -> 2 (+ b3), pre-scaled by 1/N — VPU mul + XLU cross-sublane reduce.
        y0 = jnp.sum(w3c0 * h, axis=0, keepdims=True)          # (1, TILE_B) = block(x)[0]/N
        y1 = jnp.sum(w3c1 * h, axis=0, keepdims=True)          # (1, TILE_B) = block(x)[1]/N

        # residual update: x = x + block(x)/N (1/N already folded into w3/b3)
        x0 = x0 + y0
        x1 = x1 + y1

    # Single 2-sublane store instead of two 1-sublane stores.
    o_ref[...] = jnp.concatenate([x0, x1], axis=0)


def _round_up(v, m):
    return ((v + m - 1) // m) * m


def _pick_tile_b(b_pad):
    """Largest lane-multiple tile that divides b_pad and leaves >= 2 grid steps
    (keeps both v7x TensorCores busy).  512 caps vreg pressure with the 11x
    unrolled body; sweep 256/512/1024 for a specific chip if desired."""
    for t in (512, 384, 256, 128):
        if b_pad % t == 0 and b_pad // t >= 2:
            return t
    return min(b_pad, 512)        # tiny batch: one grid step


def resnet_forward_lane_major(xt, packed_params):
    """Lane-major fast path for repeated evaluation.

    xt: (2, b_pad) f32 with b_pad a multiple of 128 (batch on the lane axis).
    Returns (2, b_pad) f32.  Keeps data in the kernel layout across calls, so
    integrator / training loops avoid per-call transpose/pad/slice plumbing.
    """
    d, b_pad = xt.shape
    assert d == D_IN and b_pad % 128 == 0
    tile_b = _pick_tile_b(b_pad)

    return pl.pallas_call(
        resnet_kernel,
        out_shape=jax.ShapeDtypeStruct((D_IN, b_pad), jnp.float32),
        grid=(b_pad // tile_b,),
        in_specs=[
            pl.BlockSpec((D_IN, tile_b), lambda i: (0, i)),
            # constant index_map: packed weights DMA'd once, VMEM-resident for all tiles
            pl.BlockSpec((NBLOCKS, P_ROWS, P_COLS), lambda i: (0, 0, 0)),
        ],
        out_specs=pl.BlockSpec((D_IN, tile_b), lambda i: (0, i)),
        compiler_params=pltpu.CompilerParams(
            dimension_semantics=("parallel",)),
    )(xt, packed_params)


@jax.jit
def resnet_forward(x, packed_params):
    """Convenience wrapper matching the torch layout. x: (B, 2) f32."""
    b = x.shape[0]
    b_pad = _round_up(max(b, 1), 128)
    # Layout plumbing: batch onto the lane axis, zero-pad to a lane multiple.
    xt = jnp.zeros((D_IN, b_pad), jnp.float32).at[:, :b].set(x.T.astype(jnp.float32))
    out_t = resnet_forward_lane_major(xt, packed_params)
    return out_t[:, :b].T


def init_params(key):
    """Torch-oriented params, init mimicking nn.Linear default U[-1/sqrt(fan_in), ...]."""
    ks = jax.random.split(key, 6)

    def u(k, shape, fan_in):
        bound = 1.0 / np.sqrt(fan_in)
        return jax.random.uniform(k, shape, jnp.float32, -bound, bound)

    w1 = u(ks[0], (NBLOCKS, D_HID, D_IN), D_IN)    # Linear(2,20).weight  -> (20, 2)
    b1 = u(ks[1], (NBLOCKS, D_HID), D_IN)
    w2 = u(ks[2], (NBLOCKS, D_HID, D_HID), D_HID)  # Linear(20,20).weight -> (20, 20)
    b2 = u(ks[3], (NBLOCKS, D_HID), D_HID)
    w3 = u(ks[4], (NBLOCKS, D_IN, D_HID), D_HID)   # Linear(20,2).weight  -> (2, 20)
    b3 = u(ks[5], (NBLOCKS, D_IN), D_HID)
    return (w1, b1, w2, b2, w3, b3)


def pack_params(params):
    """Pack per-block weights/biases into one aligned (NBLOCKS, 24, 128) tile set.

    Biases b2/b3 and the 1/N residual scale are folded in:
      * W2 augmented to 24x24 with b2 as column 20 and a ones-passthrough at [20,20],
      * W3^T and b3 pre-scaled by 1/N, with b3/N stored at row 20,
      * b1 column carries a 1 at row 20 so the ones row survives the ReLUs.
    """
    w1, b1, w2, b2, w3, b3 = params
    p = jnp.zeros((NBLOCKS, P_ROWS, P_COLS), jnp.float32)
    # augmented W2 block
    p = p.at[:, 0:D_HID, 0:D_HID].set(w2)                               # (nb,20,20)
    p = p.at[:, 0:D_HID, D_HID].set(b2)                                 # b2 column
    p = p.at[:, ONE_ROW, D_HID].set(1.0)                                # ones passthrough
    # W1 columns
    p = p.at[:, 0:D_HID, W1_OFF:W1_OFF + D_IN].set(w1)                  # (nb,20,2)
    # (W3^T, b3) pre-scaled by 1/N
    p = p.at[:, 0:D_HID, W3_OFF:W3_OFF + D_IN].set(jnp.swapaxes(w3, 1, 2) / N)
    p = p.at[:, ONE_ROW, W3_OFF:W3_OFF + D_IN].set(b3 / N)
    # b1 column + ones-row seed
    p = p.at[:, 0:D_HID, B1_COL].set(b1)
    p = p.at[:, ONE_ROW, B1_COL].set(1.0)
    return p


def resnet_reference(x, params):
    """Pure-JAX reference of the PyTorch forward pass (torch weight orientation)."""
    w1, b1, w2, b2, w3, b3 = params
    for i in range(NBLOCKS):
        y = jnp.maximum(x @ w1[i].T + b1[i], 0.0)
        y = jnp.maximum(y @ w2[i].T + b2[i], 0.0)
        y = y @ w3[i].T + b3[i]
        x = x + y / N
    return x


if __name__ == "__main__":
    key = jax.random.PRNGKey(0)
    k_x, k_p = jax.random.split(key)

    B = 1000                                  # pads to 1024 -> TILE_B=512, 2 parallel tiles
    x = jax.random.normal(k_x, (B, D_IN), jnp.float32)
    params = init_params(k_p)
    packed = pack_params(params)              # pack once, reuse across calls

    out = jax.block_until_ready(resnet_forward(x, packed))

    ref = resnet_reference(x, params)
    assert out.shape == (B, D_IN)
    assert np.allclose(np.asarray(out), np.asarray(ref), atol=1e-4, rtol=1e-4)

    print("KERNEL_OK")
</pallas_src>

<mosaic_0001>
module attributes {stable_mosaic.version = 11 : i64} {
  func.func @resnet_kernel(%arg0: i32, %arg1: memref<2x512xf32, #tpu.memory_space<vmem>>, %arg2: memref<11x24x128xf32, #tpu.memory_space<vmem>>, %arg3: memref<2x512xf32, #tpu.memory_space<vmem>>) attributes {dimension_semantics = [#tpu.dimension_semantics<parallel>], iteration_bounds = array<i64: 2>, scalar_prefetch = 0 : i64, scratch_operands = 0 : i64, tpu.core_type = #tpu.core_type<tc>, window_params = [{transform_indices = @transform_0, window_bounds = array<i64: 2, 512>}, {pipeline_mode = #tpu.pipeline_mode<synchronous>, transform_indices = @transform_1, window_bounds = array<i64: 11, 24, 128>}, {transform_indices = @transform_2, window_bounds = array<i64: 2, 512>}]} {
    %c0 = arith.constant 0 : index
    %c0_0 = arith.constant 0 : index
    %0 = vector.load %arg1[%c0, %c0_0] : memref<2x512xf32, #tpu.memory_space<vmem>>, vector<1x512xf32>
    %c1 = arith.constant 1 : index
    %c0_1 = arith.constant 0 : index
    %1 = vector.load %arg1[%c1, %c0_1] : memref<2x512xf32, #tpu.memory_space<vmem>>, vector<1x512xf32>
    %c0_2 = arith.constant 0 : index
    %c0_3 = arith.constant 0 : index
    %c0_4 = arith.constant 0 : index
    %2 = vector.load %arg2[%c0_2, %c0_3, %c0_4] : memref<11x24x128xf32, #tpu.memory_space<vmem>>, vector<1x24x24xf32>
    %3 = vector.shape_cast %2 : vector<1x24x24xf32> to vector<24x24xf32>
    %c0_5 = arith.constant 0 : index
    %c0_6 = arith.constant 0 : index
    %c24 = arith.constant 24 : index
    %4 = vector.load %arg2[%c0_5, %c0_6, %c24] : memref<11x24x128xf32, #tpu.memory_space<vmem>>, vector<1x24x1xf32>
    %5 = vector.shape_cast %4 : vector<1x24x1xf32> to vector<24x1xf32>
    %c0_7 = arith.constant 0 : index
    %c0_8 = arith.constant 0 : index
    %c25 = arith.constant 25 : index
    %6 = vector.load %arg2[%c0_7, %c0_8, %c25] : memref<11x24x128xf32, #tpu.memory_space<vmem>>, vector<1x24x1xf32>
    %7 = vector.shape_cast %6 : vector<1x24x1xf32> to vector<24x1xf32>
    %c0_9 = arith.constant 0 : index
    %c0_10 = arith.constant 0 : index
    %c26 = arith.constant 26 : index
    %8 = vector.load %arg2[%c0_9, %c0_10, %c26] : memref<11x24x128xf32, #tpu.memory_space<vmem>>, vector<1x24x1xf32>
    %9 = vector.shape_cast %8 : vector<1x24x1xf32> to vector<24x1xf32>
    %c0_11 = arith.constant 0 : index
    %c0_12 = arith.constant 0 : index
    %c27 = arith.constant 27 : index
    %10 = vector.load %arg2[%c0_11, %c0_12, %c27] : memref<11x24x128xf32, #tpu.memory_space<vmem>>, vector<1x24x1xf32>
    %11 = vector.shape_cast %10 : vector<1x24x1xf32> to vector<24x1xf32>
    %c0_13 = arith.constant 0 : index
    %c0_14 = arith.constant 0 : index
    %c28 = arith.constant 28 : index
    %12 = vector.load %arg2[%c0_13, %c0_14, %c28] : memref<11x24x128xf32, #tpu.memory_space<vmem>>, vector<1x24x1xf32>
    %13 = vector.shape_cast %12 : vector<1x24x1xf32> to vector<24x1xf32>
    %14 = vector.broadcast %5 : vector<24x1xf32> to vector<24x512xf32>
    %15 = vector.broadcast %0 : vector<1x512xf32> to vector<24x512xf32>
    %16 = arith.mulf %14, %15 : vector<24x512xf32>
    %17 = vector.broadcast %7 : vector<24x1xf32> to vector<24x512xf32>
    %18 = vector.broadcast %1 : vector<1x512xf32> to vector<24x512xf32>
    %19 = arith.mulf %17, %18 : vector<24x512xf32>
    %20 = arith.addf %16, %19 : vector<24x512xf32>
    %21 = vector.broadcast %13 : vector<24x1xf32> to vector<24x512xf32>
    %22 = arith.addf %20, %21 : vector<24x512xf32>
    %cst = arith.constant 0.000000e+00 : f32
    %23 = vector.broadcast %cst : f32 to vector<24x512xf32>
    %24 = arith.maximumf %22, %23 : vector<24x512xf32>
    %cst_15 = arith.constant dense<0.000000e+00> : vector<24x512xf32>
    %25 = tpu.matmul %3, %24, %cst_15 {dimension_numbers = #tpu.dot_dimension_numbers<[1], [0], [0], [1], [0, 0, 1, 1], [], []>} : vector<24x24xf32>, vector<24x512xf32>, vector<24x512xf32> -> vector<24x512xf32>
    %cst_16 = arith.constant 0.000000e+00 : f32
    %26 = vector.broadcast %cst_16 : f32 to vector<24x512xf32>
    %27 = arith.maximumf %25, %26 : vector<24x512xf32>
    %28 = vector.broadcast %9 : vector<24x1xf32> to vector<24x512xf32>
    %29 = arith.mulf %28, %27 : vector<24x512xf32>
    %cst_17 = arith.constant dense<0.000000e+00> : vector<512xf32>
    %30 = vector.multi_reduction <add>, %29, %cst_17 [0] : vector<24x512xf32> to vector<512xf32>
    %31 = vector.shape_cast %30 : vector<512xf32> to vector<1x512xf32>
    %32 = vector.broadcast %11 : vector<24x1xf32> to vector<24x512xf32>
    %33 = arith.mulf %32, %27 : vector<24x512xf32>
    %cst_18 = arith.constant dense<0.000000e+00> : vector<512xf32>
    %34 = vector.multi_reduction <add>, %33, %cst_18 [0] : vector<24x512xf32> to vector<512xf32>
    %35 = vector.shape_cast %34 : vector<512xf32> to vector<1x512xf32>
    %36 = arith.addf %0, %31 : vector<1x512xf32>
    %37 = arith.addf %1, %35 : vector<1x512xf32>
    %c1_19 = arith.constant 1 : index
    %c0_20 = arith.constant 0 : index
    %c0_21 = arith.constant 0 : index
    %38 = vector.load %arg2[%c1_19, %c0_20, %c0_21] : memref<11x24x128xf32, #tpu.memory_space<vmem>>, vector<1x24x24xf32>
    %39 = vector.shape_cast %38 : vector<1x24x24xf32> to vector<24x24xf32>
    %c1_22 = arith.constant 1 : index
    %c0_23 = arith.constant 0 : index
    %c24_24 = arith.constant 24 : index
    %40 = vector.load %arg2[%c1_22, %c0_23, %c24_24] : memref<11x24x128xf32, #tpu.memory_space<vmem>>, vector<1x24x1xf32>
    %41 = vector.shape_cast %40 : vector<1x24x1xf32> to vector<24x1xf32>
    %c1_25 = arith.constant 1 : index
    %c0_26 = arith.constant 0 : index
    %c25_27 = arith.constant 25 : index
    %42 = vector.load %arg2[%c1_25, %c0_26, %c25_27] : memref<11x24x128xf32, #tpu.memory_space<vmem>>, vector<1x24x1xf32>
    %43 = vector.shape_cast %42 : vector<1x24x1xf32> to vector<24x1xf32>
    %c1_28 = arith.constant 1 : index
    %c0_29 = arith.constant 0 : index
    %c26_30 = arith.constant 26 : index
    %44 = vector.load %arg2[%c1_28, %c0_29, %c26_30] : memref<11x24x128xf32, #tpu.memory_space<vmem>>, vector<1x24x1xf32>
    %45 = vector.shape_cast %44 : vector<1x24x1xf32> to vector<24x1xf32>
    %c1_31 = arith.constant 1 : index
    %c0_32 = arith.constant 0 : index
    %c27_33 = arith.constant 27 : index
    %46 = vector.load %arg2[%c1_31, %c0_32, %c27_33] : memref<11x24x128xf32, #tpu.memory_space<vmem>>, vector<1x24x1xf32>
    %47 = vector.shape_cast %46 : vector<1x24x1xf32> to vector<24x1xf32>
    %c1_34 = arith.constant 1 : index
    %c0_35 = arith.constant 0 : index
    %c28_36 = arith.constant 28 : index
    %48 = vector.load %arg2[%c1_34, %c0_35, %c28_36] : memref<11x24x128xf32, #tpu.memory_space<vmem>>, vector<1x24x1xf32>
    %49 = vector.shape_cast %48 : vector<1x24x1xf32> to vector<24x1xf32>
    %50 = vector.broadcast %41 : vector<24x1xf32> to vector<24x512xf32>
    %51 = vector.broadcast %36 : vector<1x512xf32> to vector<24x512xf32>
    %52 = arith.mulf %50, %51 : vector<24x512xf32>
    %53 = vector.broadcast %43 : vector<24x1xf32> to vector<24x512xf32>
    %54 = vector.broadcast %37 : vector<1x512xf32> to vector<24x512xf32>
    %55 = arith.mulf %53, %54 : vector<24x512xf32>
    %56 = arith.addf %52, %55 : vector<24x512xf32>
    %57 = vector.broadcast %49 : vector<24x1xf32> to vector<24x512xf32>
    %58 = arith.addf %56, %57 : vector<24x512xf32>
    %cst_37 = arith.constant 0.000000e+00 : f32
    %59 = vector.broadcast %cst_37 : f32 to vector<24x512xf32>
    %60 = arith.maximumf %58, %59 : vector<24x512xf32>
    %cst_38 = arith.constant dense<0.000000e+00> : vector<24x512xf32>
    %61 = tpu.matmul %39, %60, %cst_38 {dimension_numbers = #tpu.dot_dimension_numbers<[1], [0], [0], [1], [0, 0, 1, 1], [], []>} : vector<24x24xf32>, vector<24x512xf32>, vector<24x512xf32> -> vector<24x512xf32>
    %cst_39 = arith.constant 0.000000e+00 : f32
    %62 = vector.broadcast %cst_39 : f32 to vector<24x512xf32>
    %63 = arith.maximumf %61, %62 : vector<24x512xf32>
    %64 = vector.broadcast %45 : vector<24x1xf32> to vector<24x512xf32>
    %65 = arith.mulf %64, %63 : vector<24x512xf32>
    %cst_40 = arith.constant dense<0.000000e+00> : vector<512xf32>
    %66 = vector.multi_reduction <add>, %65, %cst_40 [0] : vector<24x512xf32> to vector<512xf32>
    %67 = vector.shape_cast %66 : vector<512xf32> to vector<1x512xf32>
    %68 = vector.broadcast %47 : vector<24x1xf32> to vector<24x512xf32>
    %69 = arith.mulf %68, %63 : vector<24x512xf32>
    %cst_41 = arith.constant dense<0.000000e+00> : vector<512xf32>
    %70 = vector.multi_reduction <add>, %69, %cst_41 [0] : vector<24x512xf32> to vector<512xf32>
    %71 = vector.shape_cast %70 : vector<512xf32> to vector<1x512xf32>
    %72 = arith.addf %36, %67 : vector<1x512xf32>
    %73 = arith.addf %37, %71 : vector<1x512xf32>
    %c2 = arith.constant 2 : index
    %c0_42 = arith.constant 0 : index
    %c0_43 = arith.constant 0 : index
    %74 = vector.load %arg2[%c2, %c0_42, %c0_43] : memref<11x24x128xf32, #tpu.memory_space<vmem>>, vector<1x24x24xf32>
    %75 = vector.shape_cast %74 : vector<1x24x24xf32> to vector<24x24xf32>
    %c2_44 = arith.constant 2 : index
    %c0_45 = arith.constant 0 : index
    %c24_46 = arith.constant 24 : index
    %76 = vector.load %arg2[%c2_44, %c0_45, %c24_46] : memref<11x24x128xf32, #tpu.memory_space<vmem>>, vector<1x24x1xf32>
    %77 = vector.shape_cast %76 : vector<1x24x1xf32> to vector<24x1xf32>
    %c2_47 = arith.constant 2 : index
    %c0_48 = arith.constant 0 : index
    %c25_49 = arith.constant 25 : index
    %78 = vector.load %arg2[%c2_47, %c0_48, %c25_49] : memref<11x24x128xf32, #tpu.memory_space<vmem>>, vector<1x24x1xf32>
    %79 = vector.shape_cast %78 : vector<1x24x1xf32> to vector<24x1xf32>
    %c2_50 = arith.constant 2 : index
    %c0_51 = arith.constant 0 : index
    %c26_52 = arith.constant 26 : index
    %80 = vector.load %arg2[%c2_50, %c0_51, %c26_52] : memref<11x24x128xf32, #tpu.memory_space<vmem>>, vector<1x24x1xf32>
    %81 = vector.shape_cast %80 : vector<1x24x1xf32> to vector<24x1xf32>
    %c2_53 = arith.constant 2 : index
    %c0_54 = arith.constant 0 : index
    %c27_55 = arith.constant 27 : index
    %82 = vector.load %arg2[%c2_53, %c0_54, %c27_55] : memref<11x24x128xf32, #tpu.memory_space<vmem>>, vector<1x24x1xf32>
    %83 = vector.shape_cast %82 : vector<1x24x1xf32> to vector<24x1xf32>
    %c2_56 = arith.constant 2 : index
    %c0_57 = arith.constant 0 : index
    %c28_58 = arith.constant 28 : index
    %84 = vector.load %arg2[%c2_56, %c0_57, %c28_58] : memref<11x24x128xf32, #tpu.memory_space<vmem>>, vector<1x24x1xf32>
    %85 = vector.shape_cast %84 : vector<1x24x1xf32> to vector<24x1xf32>
    %86 = vector.broadcast %77 : vector<24x1xf32> to vector<24x512xf32>
    %87 = vector.broadcast %72 : vector<1x512xf32> to vector<24x512xf32>
    %88 = arith.mulf %86, %87 : vector<24x512xf32>
    %89 = vector.broadcast %79 : vector<24x1xf32> to vector<24x512xf32>
    %90 = vector.broadcast %73 : vector<1x512xf32> to vector<24x512xf32>
    %91 = arith.mulf %89, %90 : vector<24x512xf32>
    %92 = arith.addf %88, %91 : vector<24x512xf32>
    %93 = vector.broadcast %85 : vector<24x1xf32> to vector<24x512xf32>
    %94 = arith.addf %92, %93 : vector<24x512xf32>
    %cst_59 = arith.constant 0.000000e+00 : f32
    %95 = vector.broadcast %cst_59 : f32 to vector<24x512xf32>
    %96 = arith.maximumf %94, %95 : vector<24x512xf32>
    %cst_60 = arith.constant dense<0.000000e+00> : vector<24x512xf32>
    %97 = tpu.matmul %75, %96, %cst_60 {dimension_numbers = #tpu.dot_dimension_numbers<[1], [0], [0], [1], [0, 0, 1, 1], [], []>} : vector<24x24xf32>, vector<24x512xf32>, vector<24x512xf32> -> vector<24x512xf32>
    %cst_61 = arith.constant 0.000000e+00 : f32
    %98 = vector.broadcast %cst_61 : f32 to vector<24x512xf32>
    %99 = arith.maximumf %97, %98 : vector<24x512xf32>
    %100 = vector.broadcast %81 : vector<24x1xf32> to vector<24x512xf32>
    %101 = arith.mulf %100, %99 : vector<24x512xf32>
    %cst_62 = arith.constant dense<0.000000e+00> : vector<512xf32>
    %102 = vector.multi_reduction <add>, %101, %cst_62 [0] : vector<24x512xf32> to vector<512xf32>
    %103 = vector.shape_cast %102 : vector<512xf32> to vector<1x512xf32>
    %104 = vector.broadcast %83 : vector<24x1xf32> to vector<24x512xf32>
    %105 = arith.mulf %104, %99 : vector<24x512xf32>
    %cst_63 = arith.constant dense<0.000000e+00> : vector<512xf32>
    %106 = vector.multi_reduction <add>, %105, %cst_63 [0] : vector<24x512xf32> to vector<512xf32>
    %107 = vector.shape_cast %106 : vector<512xf32> to vector<1x512xf32>
    %108 = arith.addf %72, %103 : vector<1x512xf32>
    %109 = arith.addf %73, %107 : vector<1x512xf32>
    %c3 = arith.constant 3 : index
    %c0_64 = arith.constant 0 : index
    %c0_65 = arith.constant 0 : index
    %110 = vector.load %arg2[%c3, %c0_64, %c0_65] : memref<11x24x128xf32, #tpu.memory_space<vmem>>, vector<1x24x24xf32>
    %111 = vector.shape_cast %110 : vector<1x24x24xf32> to vector<24x24xf32>
    %c3_66 = arith.constant 3 : index
    %c0_67 = arith.constant 0 : index
    %c24_68 = arith.constant 24 : index
    %112 = vector.load %arg2[%c3_66, %c0_67, %c24_68] : memref<11x24x128xf32, #tpu.memory_space<vmem>>, vector<1x24x1xf32>
    %113 = vector.shape_cast %112 : vector<1x24x1xf32> to vector<24x1xf32>
    %c3_69 = arith.constant 3 : index
    %c0_70 = arith.constant 0 : index
    %c25_71 = arith.constant 25 : index
    %114 = vector.load %arg2[%c3_69, %c0_70, %c25_71] : memref<11x24x128xf32, #tpu.memory_space<vmem>>, vector<1x24x1xf32>
    %115 = vector.shape_cast %114 : vector<1x24x1xf32> to vector<24x1xf32>
    %c3_72 = arith.constant 3 : index
    %c0_73 = arith.constant 0 : index
    %c26_74 = arith.constant 26 : index
    %116 = vector.load %arg2[%c3_72, %c0_73, %c26_74] : memref<11x24x128xf32, #tpu.memory_space<vmem>>, vector<1x24x1xf32>
    %117 = vector.shape_cast %116 : vector<1x24x1xf32> to vector<24x1xf32>
    %c3_75 = arith.constant 3 : index
    %c0_76 = arith.constant 0 : index
    %c27_77 = arith.constant 27 : index
    %118 = vector.load %arg2[%c3_75, %c0_76, %c27_77] : memref<11x24x128xf32, #tpu.memory_space<vmem>>, vector<1x24x1xf32>
    %119 = vector.shape_cast %118 : vector<1x24x1xf32> to vector<24x1xf32>
    %c3_78 = arith.constant 3 : index
    %c0_79 = arith.constant 0 : index
    %c28_80 = arith.constant 28 : index
    %120 = vector.load %arg2[%c3_78, %c0_79, %c28_80] : memref<11x24x128xf32, #tpu.memory_space<vmem>>, vector<1x24x1xf32>
    %121 = vector.shape_cast %120 : vector<1x24x1xf32> to vector<24x1xf32>
    %122 = vector.broadcast %113 : vector<24x1xf32> to vector<24x512xf32>
    %123 = vector.broadcast %108 : vector<1x512xf32> to vector<24x512xf32>
    %124 = arith.mulf %122, %123 : vector<24x512xf32>
    %125 = vector.broadcast %115 : vector<24x1xf32> to vector<24x512xf32>
    %126 = vector.broadcast %109 : vector<1x512xf32> to vector<24x512xf32>
    %127 = arith.mulf %125, %126 : vector<24x512xf32>
    %128 = arith.addf %124, %127 : vector<24x512xf32>
    %129 = vector.broadcast %121 : vector<24x1xf32> to vector<24x512xf32>
    %130 = arith.addf %128, %129 : vector<24x512xf32>
    %cst_81 = arith.constant 0.000000e+00 : f32
    %131 = vector.broadcast %cst_81 : f32 to vector<24x512xf32>
    %132 = arith.maximumf %130, %131 : vector<24x512xf32>
    %cst_82 = arith.constant dense<0.000000e+00> : vector<24x512xf32>
    %133 = tpu.matmul %111, %132, %cst_82 {dimension_numbers = #tpu.dot_dimension_numbers<[1], [0], [0], [1], [0, 0, 1, 1], [], []>} : vector<24x24xf32>, vector<24x512xf32>, vector<24x512xf32> -> vector<24x512xf32>
    %cst_83 = arith.constant 0.000000e+00 : f32
    %134 = vector.broadcast %cst_83 : f32 to vector<24x512xf32>
    %135 = arith.maximumf %133, %134 : vector<24x512xf32>
    %136 = vector.broadcast %117 : vector<24x1xf32> to vector<24x512xf32>
    %137 = arith.mulf %136, %135 : vector<24x512xf32>
    %cst_84 = arith.constant dense<0.000000e+00> : vector<512xf32>
    %138 = vector.multi_reduction <add>, %137, %cst_84 [0] : vector<24x512xf32> to vector<512xf32>
    %139 = vector.shape_cast %138 : vector<512xf32> to vector<1x512xf32>
    %140 = vector.broadcast %119 : vector<24x1xf32> to vector<24x512xf32>
    %141 = arith.mulf %140, %135 : vector<24x512xf32>
    %cst_85 = arith.constant dense<0.000000e+00> : vector<512xf32>
    %142 = vector.multi_reduction <add>, %141, %cst_85 [0] : vector<24x512xf32> to vector<512xf32>
    %143 = vector.shape_cast %142 : vector<512xf32> to vector<1x512xf32>
    %144 = arith.addf %108, %139 : vector<1x512xf32>
    %145 = arith.addf %109, %143 : vector<1x512xf32>
    %c4 = arith.constant 4 : index
    %c0_86 = arith.constant 0 : index
    %c0_87 = arith.constant 0 : index
    %146 = vector.load %arg2[%c4, %c0_86, %c0_87] : memref<11x24x128xf32, #tpu.memory_space<vmem>>, vector<1x24x24xf32>
    %147 = vector.shape_cast %146 : vector<1x24x24xf32> to vector<24x24xf32>
    %c4_88 = arith.constant 4 : index
    %c0_89 = arith.constant 0 : index
    %c24_90 = arith.constant 24 : index
    %148 = vector.load %arg2[%c4_88, %c0_89, %c24_90] : memref<11x24x128xf32, #tpu.memory_space<vmem>>, vector<1x24x1xf32>
    %149 = vector.shape_cast %148 : vector<1x24x1xf32> to vector<24x1xf32>
    %c4_91 = arith.constant 4 : index
    %c0_92 = arith.constant 0 : index
    %c25_93 = arith.constant 25 : index
    %150 = vector.load %arg2[%c4_91, %c0_92, %c25_93] : memref<11x24x128xf32, #tpu.memory_space<vmem>>, vector<1x24x1xf32>
    %151 = vector.shape_cast %150 : vector<1x24x1xf32> to vector<24x1xf32>
    %c4_94 = arith.constant 4 : index
    %c0_95 = arith.constant 0 : index
    %c26_96 = arith.constant 26 : index
    %152 = vector.load %arg2[%c4_94, %c0_95, %c26_96] : memref<11x24x128xf32, #tpu.memory_space<vmem>>, vector<1x24x1xf32>
    %153 = vector.shape_cast %152 : vector<1x24x1xf32> to vector<24x1xf32>
    %c4_97 = arith.constant 4 : index
    %c0_98 = arith.constant 0 : index
    %c27_99 = arith.constant 27 : index
    %154 = vector.load %arg2[%c4_97, %c0_98, %c27_99] : memref<11x24x128xf32, #tpu.memory_space<vmem>>, vector<1x24x1xf32>
    %155 = vector.shape_cast %154 : vector<1x24x1xf32> to vector<24x1xf32>
    %c4_100 = arith.constant 4 : index
    %c0_101 = arith.constant 0 : index
    %c28_102 = arith.constant 28 : index
    %156 = vector.load %arg2[%c4_100, %c0_101, %c28_102] : memref<11x24x128xf32, #tpu.memory_space<vmem>>, vector<1x24x1xf32>
    %157 = vector.shape_cast %156 : vector<1x24x1xf32> to vector<24x1xf32>
    %158 = vector.broadcast %149 : vector<24x1xf32> to vector<24x512xf32>
    %159 = vector.broadcast %144 : vector<1x512xf32> to vector<24x512xf32>
    %160 = arith.mulf %158, %159 : vector<24x512xf32>
    %161 = vector.broadcast %151 : vector<24x1xf32> to vector<24x512xf32>
    %162 = vector.broadcast %145 : vector<1x512xf32> to vector<24x512xf32>
    %163 = arith.mulf %161, %162 : vector<24x512xf32>
    %164 = arith.addf %160, %163 : vector<24x512xf32>
    %165 = vector.broadcast %157 : vector<24x1xf32> to vector<24x512xf32>
    %166 = arith.addf %164, %165 : vector<24x512xf32>
    %cst_103 = arith.constant 0.000000e+00 : f32
    %167 = vector.broadcast %cst_103 : f32 to vector<24x512xf32>
    %168 = arith.maximumf %166, %167 : vector<24x512xf32>
    %cst_104 = arith.constant dense<0.000000e+00> : vector<24x512xf32>
    %169 = tpu.matmul %147, %168, %cst_104 {dimension_numbers = #tpu.dot_dimension_numbers<[1], [0], [0], [1], [0, 0, 1, 1], [], []>} : vector<24x24xf32>, vector<24x512xf32>, vector<24x512xf32> -> vector<24x512xf32>
    %cst_105 = arith.constant 0.000000e+00 : f32
    %170 = vector.broadcast %cst_105 : f32 to vector<24x512xf32>
    %171 = arith.maximumf %169, %170 : vector<24x512xf32>
    %172 = vector.broadcast %153 : vector<24x1xf32> to vector<24x512xf32>
    %173 = arith.mulf %172, %171 : vector<24x512xf32>
    %cst_106 = arith.constant dense<0.000000e+00> : vector<512xf32>
    %174 = vector.multi_reduction <add>, %173, %cst_106 [0] : vector<24x512xf32> to vector<512xf32>
    %175 = vector.shape_cast %174 : vector<512xf32> to vector<1x512xf32>
    %176 = vector.broadcast %155 : vector<24x1xf32> to vector<24x512xf32>
    %177 = arith.mulf %176, %171 : vector<24x512xf32>
    %cst_107 = arith.constant dense<0.000000e+00> : vector<512xf32>
    %178 = vector.multi_reduction <add>, %177, %cst_107 [0] : vector<24x512xf32> to vector<512xf32>
    %179 = vector.shape_cast %178 : vector<512xf32> to vector<1x512xf32>
    %180 = arith.addf %144, %175 : vector<1x512xf32>
    %181 = arith.addf %145, %179 : vector<1x512xf32>
    %c5 = arith.constant 5 : index
    %c0_108 = arith.constant 0 : index
    %c0_109 = arith.constant 0 : index
    %182 = vector.load %arg2[%c5, %c0_108, %c0_109] : memref<11x24x128xf32, #tpu.memory_space<vmem>>, vector<1x24x24xf32>
    %183 = vector.shape_cast %182 : vector<1x24x24xf32> to vector<24x24xf32>
    %c5_110 = arith.constant 5 : index
    %c0_111 = arith.constant 0 : index
    %c24_112 = arith.constant 24 : index
    %184 = vector.load %arg2[%c5_110, %c0_111, %c24_112] : memref<11x24x128xf32, #tpu.memory_space<vmem>>, vector<1x24x1xf32>
    %185 = vector.shape_cast %184 : vector<1x24x1xf32> to vector<24x1xf32>
    %c5_113 = arith.constant 5 : index
    %c0_114 = arith.constant 0 : index
    %c25_115 = arith.constant 25 : index
    %186 = vector.load %arg2[%c5_113, %c0_114, %c25_115] : memref<11x24x128xf32, #tpu.memory_space<vmem>>, vector<1x24x1xf32>
    %187 = vector.shape_cast %186 : vector<1x24x1xf32> to vector<24x1xf32>
    %c5_116 = arith.constant 5 : index
    %c0_117 = arith.constant 0 : index
    %c26_118 = arith.constant 26 : index
    %188 = vector.load %arg2[%c5_116, %c0_117, %c26_118] : memref<11x24x128xf32, #tpu.memory_space<vmem>>, vector<1x24x1xf32>
    %189 = vector.shape_cast %188 : vector<1x24x1xf32> to vector<24x1xf32>
    %c5_119 = arith.constant 5 : index
    %c0_120 = arith.constant 0 : index
    %c27_121 = arith.constant 27 : index
    %190 = vector.load %arg2[%c5_119, %c0_120, %c27_121] : memref<11x24x128xf32, #tpu.memory_space<vmem>>, vector<1x24x1xf32>
    %191 = vector.shape_cast %190 : vector<1x24x1xf32> to vector<24x1xf32>
    %c5_122 = arith.constant 5 : index
    %c0_123 = arith.constant 0 : index
    %c28_124 = arith.constant 28 : index
    %192 = vector.load %arg2[%c5_122, %c0_123, %c28_124] : memref<11x24x128xf32, #tpu.memory_space<vmem>>, vector<1x24x1xf32>
    %193 = vector.shape_cast %192 : vector<1x24x1xf32> to vector<24x1xf32>
    %194 = vector.broadcast %185 : vector<24x1xf32> to vector<24x512xf32>
    %195 = vector.broadcast %180 : vector<1x512xf32> to vector<24x512xf32>
    %196 = arith.mulf %194, %195 : vector<24x512xf32>
    %197 = vector.broadcast %187 : vector<24x1xf32> to vector<24x512xf32>
    %198 = vector.broadcast %181 : vector<1x512xf32> to vector<24x512xf32>
    %199 = arith.mulf %197, %198 : vector<24x512xf32>
    %200 = arith.addf %196, %199 : vector<24x512xf32>
    %201 = vector.broadcast %193 : vector<24x1xf32> to vector<24x512xf32>
    %202 = arith.addf %200, %201 : vector<24x512xf32>
    %cst_125 = arith.constant 0.000000e+00 : f32
    %203 = vector.broadcast %cst_125 : f32 to vector<24x512xf32>
    %204 = arith.maximumf %202, %203 : vector<24x512xf32>
    %cst_126 = arith.constant dense<0.000000e+00> : vector<24x512xf32>
    %205 = tpu.matmul %183, %204, %cst_126 {dimension_numbers = #tpu.dot_dimension_numbers<[1], [0], [0], [1], [0, 0, 1, 1], [], []>} : vector<24x24xf32>, vector<24x512xf32>, vector<24x512xf32> -> vector<24x512xf32>
    %cst_127 = arith.constant 0.000000e+00 : f32
    %206 = vector.broadcast %cst_127 : f32 to vector<24x512xf32>
    %207 = arith.maximumf %205, %206 : vector<24x512xf32>
    %208 = vector.broadcast %189 : vector<24x1xf32> to vector<24x512xf32>
    %209 = arith.mulf %208, %207 : vector<24x512xf32>
    %cst_128 = arith.constant dense<0.000000e+00> : vector<512xf32>
    %210 = vector.multi_reduction <add>, %209, %cst_128 [0] : vector<24x512xf32> to vector<512xf32>
    %211 = vector.shape_cast %210 : vector<512xf32> to vector<1x512xf32>
    %212 = vector.broadcast %191 : vector<24x1xf32> to vector<24x512xf32>
    %213 = arith.mulf %212, %207 : vector<24x512xf32>
    %cst_129 = arith.constant dense<0.000000e+00> : vector<512xf32>
    %214 = vector.multi_reduction <add>, %213, %cst_129 [0] : vector<24x512xf32> to vector<512xf32>
    %215 = vector.shape_cast %214 : vector<512xf32> to vector<1x512xf32>
    %216 = arith.addf %180, %211 : vector<1x512xf32>
    %217 = arith.addf %181, %215 : vector<1x512xf32>
    %c6 = arith.constant 6 : index
    %c0_130 = arith.constant 0 : index
    %c0_131 = arith.constant 0 : index
    %218 = vector.load %arg2[%c6, %c0_130, %c0_131] : memref<11x24x128xf32, #tpu.memory_space<vmem>>, vector<1x24x24xf32>
    %219 = vector.shape_cast %218 : vector<1x24x24xf32> to vector<24x24xf32>
    %c6_132 = arith.constant 6 : index
    %c0_133 = arith.constant 0 : index
    %c24_134 = arith.constant 24 : index
    %220 = vector.load %arg2[%c6_132, %c0_133, %c24_134] : memref<11x24x128xf32, #tpu.memory_space<vmem>>, vector<1x24x1xf32>
    %221 = vector.shape_cast %220 : vector<1x24x1xf32> to vector<24x1xf32>
    %c6_135 = arith.constant 6 : index
    %c0_136 = arith.constant 0 : index
    %c25_137 = arith.constant 25 : index
    %222 = vector.load %arg2[%c6_135, %c0_136, %c25_137] : memref<11x24x128xf32, #tpu.memory_space<vmem>>, vector<1x24x1xf32>
    %223 = vector.shape_cast %222 : vector<1x24x1xf32> to vector<24x1xf32>
    %c6_138 = arith.constant 6 : index
    %c0_139 = arith.constant 0 : index
    %c26_140 = arith.constant 26 : index
    %224 = vector.load %arg2[%c6_138, %c0_139, %c26_140] : memref<11x24x128xf32, #tpu.memory_space<vmem>>, vector<1x24x1xf32>
    %225 = vector.shape_cast %224 : vector<1x24x1xf32> to vector<24x1xf32>
    %c6_141 = arith.constant 6 : index
    %c0_142 = arith.constant 0 : index
    %c27_143 = arith.constant 27 : index
    %226 = vector.load %arg2[%c6_141, %c0_142, %c27_143] : memref<11x24x128xf32, #tpu.memory_space<vmem>>, vector<1x24x1xf32>
    %227 = vector.shape_cast %226 : vector<1x24x1xf32> to vector<24x1xf32>
    %c6_144 = arith.constant 6 : index
    %c0_145 = arith.constant 0 : index
    %c28_146 = arith.constant 28 : index
    %228 = vector.load %arg2[%c6_144, %c0_145, %c28_146] : memref<11x24x128xf32, #tpu.memory_space<vmem>>, vector<1x24x1xf32>
    %229 = vector.shape_cast %228 : vector<1x24x1xf32> to vector<24x1xf32>
    %230 = vector.broadcast %221 : vector<24x1xf32> to vector<24x512xf32>
    %231 = vector.broadcast %216 : vector<1x512xf32> to vector<24x512xf32>
    %232 = arith.mulf %230, %231 : vector<24x512xf32>
    %233 = vector.broadcast %223 : vector<24x1xf32> to vector<24x512xf32>
    %234 = vector.broadcast %217 : vector<1x512xf32> to vector<24x512xf32>
    %235 = arith.mulf %233, %234 : vector<24x512xf32>
    %236 = arith.addf %232, %235 : vector<24x512xf32>
    %237 = vector.broadcast %229 : vector<24x1xf32> to vector<24x512xf32>
    %238 = arith.addf %236, %237 : vector<24x512xf32>
    %cst_147 = arith.constant 0.000000e+00 : f32
    %239 = vector.broadcast %cst_147 : f32 to vector<24x512xf32>
    %240 = arith.maximumf %238, %239 : vector<24x512xf32>
    %cst_148 = arith.constant dense<0.000000e+00> : vector<24x512xf32>
    %241 = tpu.matmul %219, %240, %cst_148 {dimension_numbers = #tpu.dot_dimension_numbers<[1], [0], [0], [1], [0, 0, 1, 1], [], []>} : vector<24x24xf32>, vector<24x512xf32>, vector<24x512xf32> -> vector<24x512xf32>
    %cst_149 = arith.constant 0.000000e+00 : f32
    %242 = vector.broadcast %cst_149 : f32 to vector<24x512xf32>
    %243 = arith.maximumf %241, %242 : vector<24x512xf32>
    %244 = vector.broadcast %225 : vector<24x1xf32> to vector<24x512xf32>
    %245 = arith.mulf %244, %243 : vector<24x512xf32>
    %cst_150 = arith.constant dense<0.000000e+00> : vector<512xf32>
    %246 = vector.multi_reduction <add>, %245, %cst_150 [0] : vector<24x512xf32> to vector<512xf32>
    %247 = vector.shape_cast %246 : vector<512xf32> to vector<1x512xf32>
    %248 = vector.broadcast %227 : vector<24x1xf32> to vector<24x512xf32>
    %249 = arith.mulf %248, %243 : vector<24x512xf32>
    %cst_151 = arith.constant dense<0.000000e+00> : vector<512xf32>
    %250 = vector.multi_reduction <add>, %249, %cst_151 [0] : vector<24x512xf32> to vector<512xf32>
    %251 = vector.shape_cast %250 : vector<512xf32> to vector<1x512xf32>
    %252 = arith.addf %216, %247 : vector<1x512xf32>
    %253 = arith.addf %217, %251 : vector<1x512xf32>
    %c7 = arith.constant 7 : index
    %c0_152 = arith.constant 0 : index
    %c0_153 = arith.constant 0 : index
    %254 = vector.load %arg2[%c7, %c0_152, %c0_153] : memref<11x24x128xf32, #tpu.memory_space<vmem>>, vector<1x24x24xf32>
    %255 = vector.shape_cast %254 : vector<1x24x24xf32> to vector<24x24xf32>
    %c7_154 = arith.constant 7 : index
    %c0_155 = arith.constant 0 : index
    %c24_156 = arith.constant 24 : index
    %256 = vector.load %arg2[%c7_154, %c0_155, %c24_156] : memref<11x24x128xf32, #tpu.memory_space<vmem>>, vector<1x24x1xf32>
    %257 = vector.shape_cast %256 : vector<1x24x1xf32> to vector<24x1xf32>
    %c7_157 = arith.constant 7 : index
    %c0_158 = arith.constant 0 : index
    %c25_159 = arith.constant 25 : index
    %258 = vector.load %arg2[%c7_157, %c0_158, %c25_159] : memref<11x24x128xf32, #tpu.memory_space<vmem>>, vector<1x24x1xf32>
    %259 = vector.shape_cast %258 : vector<1x24x1xf32> to vector<24x1xf32>
    %c7_160 = arith.constant 7 : index
    %c0_161 = arith.constant 0 : index
    %c26_162 = arith.constant 26 : index
    %260 = vector.load %arg2[%c7_160, %c0_161, %c26_162] : memref<11x24x128xf32, #tpu.memory_space<vmem>>, vector<1x24x1xf32>
    %261 = vector.shape_cast %260 : vector<1x24x1xf32> to vector<24x1xf32>
    %c7_163 = arith.constant 7 : index
    %c0_164 = arith.constant 0 : index
    %c27_165 = arith.constant 27 : index
    %262 = vector.load %arg2[%c7_163, %c0_164, %c27_165] : memref<11x24x128xf32, #tpu.memory_space<vmem>>, vector<1x24x1xf32>
    %263 = vector.shape_cast %262 : vector<1x24x1xf32> to vector<24x1xf32>
    %c7_166 = arith.constant 7 : index
    %c0_167 = arith.constant 0 : index
    %c28_168 = arith.constant 28 : index
    %264 = vector.load %arg2[%c7_166, %c0_167, %c28_168] : memref<11x24x128xf32, #tpu.memory_space<vmem>>, vector<1x24x1xf32>
    %265 = vector.shape_cast %264 : vector<1x24x1xf32> to vector<24x1xf32>
    %266 = vector.broadcast %257 : vector<24x1xf32> to vector<24x512xf32>
    %267 = vector.broadcast %252 : vector<1x512xf32> to vector<24x512xf32>
    %268 = arith.mulf %266, %267 : vector<24x512xf32>
    %269 = vector.broadcast %259 : vector<24x1xf32> to vector<24x512xf32>
    %270 = vector.broadcast %253 : vector<1x512xf32> to vector<24x512xf32>
    %271 = arith.mulf %269, %270 : vector<24x512xf32>
    %272 = arith.addf %268, %271 : vector<24x512xf32>
    %273 = vector.broadcast %265 : vector<24x1xf32> to vector<24x512xf32>
    %274 = arith.addf %272, %273 : vector<24x512xf32>
    %cst_169 = arith.constant 0.000000e+00 : f32
    %275 = vector.broadcast %cst_169 : f32 to vector<24x512xf32>
    %276 = arith.maximumf %274, %275 : vector<24x512xf32>
    %cst_170 = arith.constant dense<0.000000e+00> : vector<24x512xf32>
    %277 = tpu.matmul %255, %276, %cst_170 {dimension_numbers = #tpu.dot_dimension_numbers<[1], [0], [0], [1], [0, 0, 1, 1], [], []>} : vector<24x24xf32>, vector<24x512xf32>, vector<24x512xf32> -> vector<24x512xf32>
    %cst_171 = arith.constant 0.000000e+00 : f32
    %278 = vector.broadcast %cst_171 : f32 to vector<24x512xf32>
    %279 = arith.maximumf %277, %278 : vector<24x512xf32>
    %280 = vector.broadcast %261 : vector<24x1xf32> to vector<24x512xf32>
    %281 = arith.mulf %280, %279 : vector<24x512xf32>
    %cst_172 = arith.constant dense<0.000000e+00> : vector<512xf32>
    %282 = vector.multi_reduction <add>, %281, %cst_172 [0] : vector<24x512xf32> to vector<512xf32>
    %283 = vector.shape_cast %282 : vector<512xf32> to vector<1x512xf32>
    %284 = vector.broadcast %263 : vector<24x1xf32> to vector<24x512xf32>
    %285 = arith.mulf %284, %279 : vector<24x512xf32>
    %cst_173 = arith.constant dense<0.000000e+00> : vector<512xf32>
    %286 = vector.multi_reduction <add>, %285, %cst_173 [0] : vector<24x512xf32> to vector<512xf32>
    %287 = vector.shape_cast %286 : vector<512xf32> to vector<1x512xf32>
    %288 = arith.addf %252, %283 : vector<1x512xf32>
    %289 = arith.addf %253, %287 : vector<1x512xf32>
    %c8 = arith.constant 8 : index
    %c0_174 = arith.constant 0 : index
    %c0_175 = arith.constant 0 : index
    %290 = vector.load %arg2[%c8, %c0_174, %c0_175] : memref<11x24x128xf32, #tpu.memory_space<vmem>>, vector<1x24x24xf32>
    %291 = vector.shape_cast %290 : vector<1x24x24xf32> to vector<24x24xf32>
    %c8_176 = arith.constant 8 : index
    %c0_177 = arith.constant 0 : index
    %c24_178 = arith.constant 24 : index
    %292 = vector.load %arg2[%c8_176, %c0_177, %c24_178] : memref<11x24x128xf32, #tpu.memory_space<vmem>>, vector<1x24x1xf32>
    %293 = vector.shape_cast %292 : vector<1x24x1xf32> to vector<24x1xf32>
    %c8_179 = arith.constant 8 : index
    %c0_180 = arith.constant 0 : index
    %c25_181 = arith.constant 25 : index
    %294 = vector.load %arg2[%c8_179, %c0_180, %c25_181] : memref<11x24x128xf32, #tpu.memory_space<vmem>>, vector<1x24x1xf32>
    %295 = vector.shape_cast %294 : vector<1x24x1xf32> to vector<24x1xf32>
    %c8_182 = arith.constant 8 : index
    %c0_183 = arith.constant 0 : index
    %c26_184 = arith.constant 26 : index
    %296 = vector.load %arg2[%c8_182, %c0_183, %c26_184] : memref<11x24x128xf32, #tpu.memory_space<vmem>>, vector<1x24x1xf32>
    %297 = vector.shape_cast %296 : vector<1x24x1xf32> to vector<24x1xf32>
    %c8_185 = arith.constant 8 : index
    %c0_186 = arith.constant 0 : index
    %c27_187 = arith.constant 27 : index
    %298 = vector.load %arg2[%c8_185, %c0_186, %c27_187] : memref<11x24x128xf32, #tpu.memory_space<vmem>>, vector<1x24x1xf32>
    %299 = vector.shape_cast %298 : vector<1x24x1xf32> to vector<24x1xf32>
    %c8_188 = arith.constant 8 : index
    %c0_189 = arith.constant 0 : index
    %c28_190 = arith.constant 28 : index
    %300 = vector.load %arg2[%c8_188, %c0_189, %c28_190] : memref<11x24x128xf32, #tpu.memory_space<vmem>>, vector<1x24x1xf32>
    %301 = vector.shape_cast %300 : vector<1x24x1xf32> to vector<24x1xf32>
    %302 = vector.broadcast %293 : vector<24x1xf32> to vector<24x512xf32>
    %303 = vector.broadcast %288 : vector<1x512xf32> to vector<24x512xf32>
    %304 = arith.mulf %302, %303 : vector<24x512xf32>
    %305 = vector.broadcast %295 : vector<24x1xf32> to vector<24x512xf32>
    %306 = vector.broadcast %289 : vector<1x512xf32> to vector<24x512xf32>
    %307 = arith.mulf %305, %306 : vector<24x512xf32>
    %308 = arith.addf %304, %307 : vector<24x512xf32>
    %309 = vector.broadcast %301 : vector<24x1xf32> to vector<24x512xf32>
    %310 = arith.addf %308, %309 : vector<24x512xf32>
    %cst_191 = arith.constant 0.000000e+00 : f32
    %311 = vector.broadcast %cst_191 : f32 to vector<24x512xf32>
    %312 = arith.maximumf %310, %311 : vector<24x512xf32>
    %cst_192 = arith.constant dense<0.000000e+00> : vector<24x512xf32>
    %313 = tpu.matmul %291, %312, %cst_192 {dimension_numbers = #tpu.dot_dimension_numbers<[1], [0], [0], [1], [0, 0, 1, 1], [], []>} : vector<24x24xf32>, vector<24x512xf32>, vector<24x512xf32> -> vector<24x512xf32>
    %cst_193 = arith.constant 0.000000e+00 : f32
    %314 = vector.broadcast %cst_193 : f32 to vector<24x512xf32>
    %315 = arith.maximumf %313, %314 : vector<24x512xf32>
    %316 = vector.broadcast %297 : vector<24x1xf32> to vector<24x512xf32>
    %317 = arith.mulf %316, %315 : vector<24x512xf32>
    %cst_194 = arith.constant dense<0.000000e+00> : vector<512xf32>
    %318 = vector.multi_reduction <add>, %317, %cst_194 [0] : vector<24x512xf32> to vector<512xf32>
    %319 = vector.shape_cast %318 : vector<512xf32> to vector<1x512xf32>
    %320 = vector.broadcast %299 : vector<24x1xf32> to vector<24x512xf32>
    %321 = arith.mulf %320, %315 : vector<24x512xf32>
    %cst_195 = arith.constant dense<0.000000e+00> : vector<512xf32>
    %322 = vector.multi_reduction <add>, %321, %cst_195 [0] : vector<24x512xf32> to vector<512xf32>
    %323 = vector.shape_cast %322 : vector<512xf32> to vector<1x512xf32>
    %324 = arith.addf %288, %319 : vector<1x512xf32>
    %325 = arith.addf %289, %323 : vector<1x512xf32>
    %c9 = arith.constant 9 : index
    %c0_196 = arith.constant 0 : index
    %c0_197 = arith.constant 0 : index
    %326 = vector.load %arg2[%c9, %c0_196, %c0_197] : memref<11x24x128xf32, #tpu.memory_space<vmem>>, vector<1x24x24xf32>
    %327 = vector.shape_cast %326 : vector<1x24x24xf32> to vector<24x24xf32>
    %c9_198 = arith.constant 9 : index
    %c0_199 = arith.constant 0 : index
    %c24_200 = arith.constant 24 : index
    %328 = vector.load %arg2[%c9_198, %c0_199, %c24_200] : memref<11x24x128xf32, #tpu.memory_space<vmem>>, vector<1x24x1xf32>
    %329 = vector.shape_cast %328 : vector<1x24x1xf32> to vector<24x1xf32>
    %c9_201 = arith.constant 9 : index
    %c0_202 = arith.constant 0 : index
    %c25_203 = arith.constant 25 : index
    %330 = vector.load %arg2[%c9_201, %c0_202, %c25_203] : memref<11x24x128xf32, #tpu.memory_space<vmem>>, vector<1x24x1xf32>
    %331 = vector.shape_cast %330 : vector<1x24x1xf32> to vector<24x1xf32>
    %c9_204 = arith.constant 9 : index
    %c0_205 = arith.constant 0 : index
    %c26_206 = arith.constant 26 : index
    %332 = vector.load %arg2[%c9_204, %c0_205, %c26_206] : memref<11x24x128xf32, #tpu.memory_space<vmem>>, vector<1x24x1xf32>
    %333 = vector.shape_cast %332 : vector<1x24x1xf32> to vector<24x1xf32>
    %c9_207 = arith.constant 9 : index
    %c0_208 = arith.constant 0 : index
    %c27_209 = arith.constant 27 : index
    %334 = vector.load %arg2[%c9_207, %c0_208, %c27_209] : memref<11x24x128xf32, #tpu.memory_space<vmem>>, vector<1x24x1xf32>
    %335 = vector.shape_cast %334 : vector<1x24x1xf32> to vector<24x1xf32>
    %c9_210 = arith.constant 9 : index
    %c0_211 = arith.constant 0 : index
    %c28_212 = arith.constant 28 : index
    %336 = vector.load %arg2[%c9_210, %c0_211, %c28_212] : memref<11x24x128xf32, #tpu.memory_space<vmem>>, vector<1x24x1xf32>
    %337 = vector.shape_cast %336 : vector<1x24x1xf32> to vector<24x1xf32>
    %338 = vector.broadcast %329 : vector<24x1xf32> to vector<24x512xf32>
    %339 = vector.broadcast %324 : vector<1x512xf32> to vector<24x512xf32>
    %340 = arith.mulf %338, %339 : vector<24x512xf32>
    %341 = vector.broadcast %331 : vector<24x1xf32> to vector<24x512xf32>
    %342 = vector.broadcast %325 : vector<1x512xf32> to vector<24x512xf32>
    %343 = arith.mulf %341, %342 : vector<24x512xf32>
    %344 = arith.addf %340, %343 : vector<24x512xf32>
    %345 = vector.broadcast %337 : vector<24x1xf32> to vector<24x512xf32>
    %346 = arith.addf %344, %345 : vector<24x512xf32>
    %cst_213 = arith.constant 0.000000e+00 : f32
    %347 = vector.broadcast %cst_213 : f32 to vector<24x512xf32>
    %348 = arith.maximumf %346, %347 : vector<24x512xf32>
    %cst_214 = arith.constant dense<0.000000e+00> : vector<24x512xf32>
    %349 = tpu.matmul %327, %348, %cst_214 {dimension_numbers = #tpu.dot_dimension_numbers<[1], [0], [0], [1], [0, 0, 1, 1], [], []>} : vector<24x24xf32>, vector<24x512xf32>, vector<24x512xf32> -> vector<24x512xf32>
    %cst_215 = arith.constant 0.000000e+00 : f32
    %350 = vector.broadcast %cst_215 : f32 to vector<24x512xf32>
    %351 = arith.maximumf %349, %350 : vector<24x512xf32>
    %352 = vector.broadcast %333 : vector<24x1xf32> to vector<24x512xf32>
    %353 = arith.mulf %352, %351 : vector<24x512xf32>
    %cst_216 = arith.constant dense<0.000000e+00> : vector<512xf32>
    %354 = vector.multi_reduction <add>, %353, %cst_216 [0] : vector<24x512xf32> to vector<512xf32>
    %355 = vector.shape_cast %354 : vector<512xf32> to vector<1x512xf32>
    %356 = vector.broadcast %335 : vector<24x1xf32> to vector<24x512xf32>
    %357 = arith.mulf %356, %351 : vector<24x512xf32>
    %cst_217 = arith.constant dense<0.000000e+00> : vector<512xf32>
    %358 = vector.multi_reduction <add>, %357, %cst_217 [0] : vector<24x512xf32> to vector<512xf32>
    %359 = vector.shape_cast %358 : vector<512xf32> to vector<1x512xf32>
    %360 = arith.addf %324, %355 : vector<1x512xf32>
    %361 = arith.addf %325, %359 : vector<1x512xf32>
    %c10 = arith.constant 10 : index
    %c0_218 = arith.constant 0 : index
    %c0_219 = arith.constant 0 : index
    %362 = vector.load %arg2[%c10, %c0_218, %c0_219] : memref<11x24x128xf32, #tpu.memory_space<vmem>>, vector<1x24x24xf32>
    %363 = vector.shape_cast %362 : vector<1x24x24xf32> to vector<24x24xf32>
    %c10_220 = arith.constant 10 : index
    %c0_221 = arith.constant 0 : index
    %c24_222 = arith.constant 24 : index
    %364 = vector.load %arg2[%c10_220, %c0_221, %c24_222] : memref<11x24x128xf32, #tpu.memory_space<vmem>>, vector<1x24x1xf32>
    %365 = vector.shape_cast %364 : vector<1x24x1xf32> to vector<24x1xf32>
    %c10_223 = arith.constant 10 : index
    %c0_224 = arith.constant 0 : index
    %c25_225 = arith.constant 25 : index
    %366 = vector.load %arg2[%c10_223, %c0_224, %c25_225] : memref<11x24x128xf32, #tpu.memory_space<vmem>>, vector<1x24x1xf32>
    %367 = vector.shape_cast %366 : vector<1x24x1xf32> to vector<24x1xf32>
    %c10_226 = arith.constant 10 : index
    %c0_227 = arith.constant 0 : index
    %c26_228 = arith.constant 26 : index
    %368 = vector.load %arg2[%c10_226, %c0_227, %c26_228] : memref<11x24x128xf32, #tpu.memory_space<vmem>>, vector<1x24x1xf32>
    %369 = vector.shape_cast %368 : vector<1x24x1xf32> to vector<24x1xf32>
    %c10_229 = arith.constant 10 : index
    %c0_230 = arith.constant 0 : index
    %c27_231 = arith.constant 27 : index
    %370 = vector.load %arg2[%c10_229, %c0_230, %c27_231] : memref<11x24x128xf32, #tpu.memory_space<vmem>>, vector<1x24x1xf32>
    %371 = vector.shape_cast %370 : vector<1x24x1xf32> to vector<24x1xf32>
    %c10_232 = arith.constant 10 : index
    %c0_233 = arith.constant 0 : index
    %c28_234 = arith.constant 28 : index
    %372 = vector.load %arg2[%c10_232, %c0_233, %c28_234] : memref<11x24x128xf32, #tpu.memory_space<vmem>>, vector<1x24x1xf32>
    %373 = vector.shape_cast %372 : vector<1x24x1xf32> to vector<24x1xf32>
    %374 = vector.broadcast %365 : vector<24x1xf32> to vector<24x512xf32>
    %375 = vector.broadcast %360 : vector<1x512xf32> to vector<24x512xf32>
    %376 = arith.mulf %374, %375 : vector<24x512xf32>
    %377 = vector.broadcast %367 : vector<24x1xf32> to vector<24x512xf32>
    %378 = vector.broadcast %361 : vector<1x512xf32> to vector<24x512xf32>
    %379 = arith.mulf %377, %378 : vector<24x512xf32>
    %380 = arith.addf %376, %379 : vector<24x512xf32>
    %381 = vector.broadcast %373 : vector<24x1xf32> to vector<24x512xf32>
    %382 = arith.addf %380, %381 : vector<24x512xf32>
    %cst_235 = arith.constant 0.000000e+00 : f32
    %383 = vector.broadcast %cst_235 : f32 to vector<24x512xf32>
    %384 = arith.maximumf %382, %383 : vector<24x512xf32>
    %cst_236 = arith.constant dense<0.000000e+00> : vector<24x512xf32>
    %385 = tpu.matmul %363, %384, %cst_236 {dimension_numbers = #tpu.dot_dimension_numbers<[1], [0], [0], [1], [0, 0, 1, 1], [], []>} : vector<24x24xf32>, vector<24x512xf32>, vector<24x512xf32> -> vector<24x512xf32>
    %cst_237 = arith.constant 0.000000e+00 : f32
    %386 = vector.broadcast %cst_237 : f32 to vector<24x512xf32>
    %387 = arith.maximumf %385, %386 : vector<24x512xf32>
    %388 = vector.broadcast %369 : vector<24x1xf32> to vector<24x512xf32>
    %389 = arith.mulf %388, %387 : vector<24x512xf32>
    %cst_238 = arith.constant dense<0.000000e+00> : vector<512xf32>
    %390 = vector.multi_reduction <add>, %389, %cst_238 [0] : vector<24x512xf32> to vector<512xf32>
    %391 = vector.shape_cast %390 : vector<512xf32> to vector<1x512xf32>
    %392 = vector.broadcast %371 : vector<24x1xf32> to vector<24x512xf32>
    %393 = arith.mulf %392, %387 : vector<24x512xf32>
    %cst_239 = arith.constant dense<0.000000e+00> : vector<512xf32>
    %394 = vector.multi_reduction <add>, %393, %cst_239 [0] : vector<24x512xf32> to vector<512xf32>
    %395 = vector.shape_cast %394 : vector<512xf32> to vector<1x512xf32>
    %396 = arith.addf %360, %391 : vector<1x512xf32>
    %397 = arith.addf %361, %395 : vector<1x512xf32>
    %398 = tpu.concatenate %396, %397 in 0 : vector<1x512xf32>, vector<1x512xf32> -> vector<2x512xf32>
    %c0_240 = arith.constant 0 : index
    %c0_241 = arith.constant 0 : index
    %399 = vector.load %arg3[%c0_240, %c0_241] : memref<2x512xf32, #tpu.memory_space<vmem>>, vector<2x512xf32>
    tpu.vector_store %arg3[%c0_240, %c0_241], %398 {strides = array<i32>} : memref<2x512xf32, #tpu.memory_space<vmem>>, vector<2x512xf32>,
    return
  }
  func.func @transform_0(%arg0: i32) -> (i32, i32) {
    %c0_i32 = arith.constant 0 : i32
    %c0_i32_0 = arith.constant 0 : i32
    return %c0_i32, %arg0 : i32, i32
  }
  func.func @transform_1(%arg0: i32) -> (i32, i32, i32) {
    %c0_i32 = arith.constant 0 : i32
    %c0_i32_0 = arith.constant 0 : i32
    %c0_i32_1 = arith.constant 0 : i32
    %c0_i32_2 = arith.constant 0 : i32
    return %c0_i32, %c0_i32_0, %c0_i32_1 : i32, i32, i32
  }
  func.func @transform_2(%arg0: i32) -> (i32, i32) {
    %c0_i32 = arith.constant 0 : i32
    %c0_i32_0 = arith.constant 0 : i32
    return %c0_i32, %arg0 : i32, i32
  }
}

</mosaic_0001>

<llo_original>
// kernel: resnet_forward.1
$region0: #{resnet_forward.1}
  #allocation0 [shape = 'u32[]', space=smem, size = 0x4, offset = 0x4, fixed_abs, tag = 'smem constant byte address 0x4 - core index']
  #allocation1 [shape = 'u32[72,128]{1,0:T(1,128)}', space=vmem, size = 0x9000, scoped, tag = 'internal scratch']
  %s0 = inlined_call_operand.vmem [shape: f32[2,1024], index: 0, kind: input, shape index: {}]
  %s1 = inlined_call_operand.hbm [shape: f32[11,24,128], index: 1, kind: input, shape index: {}]
  %s2 = inlined_call_operand.vmem [shape: f32[2,1024], index: 2, kind: output, shape index: {}]
  %s3 = sld [smem:[#allocation0]]
  $region45: #{resnet_forward.1} parent=0
    _
  %s5 = ssub.s32 1, %s3
  %s6 = scalar_select 0, %s5, %s3
  $region1: #{resnet_forward.1} parent=0
    #allocation2 [shape = 'u8[135168]{0}', space=vmem, size = 0x21000, scoped, tag = 'input window, operand 1, single buffered']
    #allocation3 [shape = 's32[2]{0}', space=sflag, size = 0x8, scoped, tag = 'scoped memory for resnet_forward.1']
    %7 = vsyncpa [#allocation3], 0
    loop: start=0, step=1, limit=4
    $region2: #{resnet_forward.1} parent=1 // loop_pre_header
      _
    $region3: #{resnet_forward.1} parent=1 // loop_header
      %s9 = sphi 0, %s13
      %p10 = scmp.ge.s32.totalorder %s9, 4
      %s19 = sphi 0, %s21
      %s22 = sphi 0, %s19
      %s23 = sphi 0, %s22
      %s39 = sphi 0, %s23
      %s43 = sphi 0, %s43
      %s45 = sphi 0, %s43
      %s46 = sphi 0, %s45
      %s60 = sphi 0, %s46
      %s66 = sphi 0, %s68
      %s69 = sphi 0, %s66
      %s70 = sphi 0, %s69
      %s86 = sphi 0, %s70
    $region4: #{resnet_forward.1} parent=1 // loop_header_branch
      %12 = sbr.rel (%p10) target = $region8
    $region5: #{resnet_forward.1} parent=1 // loop_body
      %s14 = ssub.s32 %s9, 1
      %s15 = ssub.s32 %s9, 2
      %s16 = sadd.s32 %s9, 1
      %s17 = ssub.s32 %s9, %s16
      %p18 = scmp.eq.s32.totalorder %s17, 0
      %s20 = sadd.s32 %s19, 1
      %s21 = scalar_select %p18, %s19, %s20
      %p24 = pneg %p18
      %p25 = scmp.eq.s32.totalorder %s9, 1
      %p26 = por %p24, %p25
      %p27 = scmp.ne.s32.totalorder %s19, %s22
      %p28 = scmp.eq.s32.totalorder %s9, 0
      %p29 = por %p27, %p28
      %p30 = scmp.ne.s32.totalorder %s19, %s22
      %p31 = scmp.eq.s32.totalorder %s14, 1
      %p32 = por %p30, %p31
      %p33 = scmp.ne.s32.totalorder %s22, %s23
      %p34 = scmp.eq.s32.totalorder %s14, 0
      %p35 = por %p33, %p34
      %p36 = scmp.ne.s32.totalorder %s22, %s23
      %p37 = scmp.eq.s32.totalorder %s15, 1
      %p38 = por %p36, %p37
      %p40 = scmp.ne.s32.totalorder %s23, %s39
      %p41 = scmp.eq.s32.totalorder %s15, 0
      %p42 = por %p40, %p41
      %s44 = sadd.s32 %s43, 1
      %p47 = scmp.eq.s32.totalorder %s9, 1
      %p48 = scmp.ne.s32.totalorder %s43, %s45
      %p49 = scmp.eq.s32.totalorder %s9, 0
      %p50 = por %p48, %p49
      %p51 = scmp.ne.s32.totalorder %s43, %s45
      %p52 = scmp.eq.s32.totalorder %s14, 1
      %p53 = por %p51, %p52
      %p54 = scmp.ne.s32.totalorder %s45, %s46
      %p55 = scmp.eq.s32.totalorder %s14, 0
      %p56 = por %p54, %p55
      %p57 = scmp.ne.s32.totalorder %s45, %s46
      %p58 = scmp.eq.s32.totalorder %s15, 1
      %p59 = por %p57, %p58
      %p61 = scmp.ne.s32.totalorder %s46, %s60
      %p62 = scmp.eq.s32.totalorder %s15, 0
      %p63 = por %p61, %p62
      %s64 = ssub.s32 %s9, %s16
      %p65 = scmp.eq.s32.totalorder %s64, 0
      %s67 = sadd.s32 %s66, 1
      %s68 = scalar_select %p65, %s66, %s67
      %p71 = pneg %p65
      %p72 = scmp.eq.s32.totalorder %s9, 1
      %p73 = por %p71, %p72
      %p74 = scmp.ne.s32.totalorder %s66, %s69
      %p75 = scmp.eq.s32.totalorder %s9, 0
      %p76 = por %p74, %p75
      %p77 = scmp.ne.s32.totalorder %s66, %s69
      %p78 = scmp.eq.s32.totalorder %s14, 1
      %p79 = por %p77, %p78
      %p80 = scmp.ne.s32.totalorder %s69, %s70
      %p81 = scmp.eq.s32.totalorder %s14, 0
      %p82 = por %p80, %p81
      %p83 = scmp.ne.s32.totalorder %s69, %s70
      %p84 = scmp.eq.s32.totalorder %s15, 1
      %p85 = por %p83, %p84
      %p87 = scmp.ne.s32.totalorder %s70, %s86
      %p88 = scmp.eq.s32.totalorder %s15, 0
      %p89 = por %p87, %p88
      %p90 = scmp.le.s32.totalorder 1, %s9
      %p91 = scmp.lt.s32.totalorder %s9, 3
      %p92 = pnand %p90, %p91
      %p93 = pneg %p92
      // Predicated region
      $region9: #{resnet_forward.1} parent=5 // pred_check
        _
      $region10: #{resnet_forward.1} parent=5 // pred_check_branch
        %95 = sbr.rel (%p92) target = $region12
      $region11: #{resnet_forward.1} parent=5 // pred_region
        %s96 = ssub.s32 %s9, 1
        // Predicated region
        $region13: #{resnet_forward.1} parent=11 // pred_check
          %p97 = pneg %p56
        $region14: #{resnet_forward.1} parent=11 // pred_check_branch
          %99 = sbr.rel (%p97) target = $region16
        $region15: #{resnet_forward.1} parent=11 // pred_region
          %101 = vsyncadd [#allocation3], 0
          %s102 = sshll.u32 %s1, 4
          %s103 = int_to_ptr.hbm [resolvable:$true] %s102
          %s104 = sshll.u32 [#allocation2], 4
          %s105 = int_to_ptr.vmem [resolvable:$true] %s104
          %110 = dma.hbm_to_vmem [thread:$0]  %s103, 4224, %s105, [#allocation3], 128, 128, 8
        $region16: #{resnet_forward.1} parent=11 // pred_fallthru
          _
      $region12: #{resnet_forward.1} parent=5 // pred_fallthru
        _
      %p111 = scmp.lt.s32.totalorder %s9, 2
      // Predicated region
      $region17: #{resnet_forward.1} parent=5 // pred_check
        %p112 = pneg %p111
      $region18: #{resnet_forward.1} parent=5 // pred_check_branch
        %114 = sbr.rel (%p112) target = $region20
      $region19: #{resnet_forward.1} parent=5 // pred_region
        // Predicated region
        $region21: #{resnet_forward.1} parent=19 // pred_check
          %p115 = pneg %p29
        $region22: #{resnet_forward.1} parent=19 // pred_check_branch
          %117 = sbr.rel (%p115) target = $region24
        $region23: #{resnet_forward.1} parent=19 // pred_region
          %s118 = smul.u32 4, %s9
          %p119 = scmp.lt.s32.totalorder %s118, 7
          %s120 = scalar_select %p119, %s118, 7
          %s121 = smul.addr %s120, 2
          %s122 = scalar_lea.vmem %s0, %s121
          %s123 = smul.u32 4, %s9
        $region24: #{resnet_forward.1} parent=19 // pred_fallthru
          _
      $region20: #{resnet_forward.1} parent=5 // pred_fallthru
        _
      %p124 = scmp.le.s32.totalorder 1, %s9
      %p125 = scmp.lt.s32.totalorder %s9, 3
      %p126 = pnand %p124, %p125
      %p127 = pneg %p126
      // Predicated region
      $region25: #{resnet_forward.1} parent=5 // pred_check
        _
      $region26: #{resnet_forward.1} parent=5 // pred_check_branch
        %129 = sbr.rel (%p126) target = $region28
      $region27: #{resnet_forward.1} parent=5 // pred_region
        %s130 = ssub.s32 %s9, 1
        // Predicated region
        $region29: #{resnet_forward.1} parent=27 // pred_check
          %p131 = pneg %p56
        $region30: #{resnet_forward.1} parent=27 // pred_check_branch
          %133 = sbr.rel (%p131) target = $region32
        $region31: #{resnet_forward.1} parent=27 // pred_region
          %135 = dma.done [#allocation3], 4224
        $region32: #{resnet_forward.1} parent=27 // pred_fallthru
          _
        %s136 = smul.u32 4, %s14
        %p137 = scmp.lt.s32.totalorder %s136, 7
        %s138 = scalar_select %p137, %s136, 7
        %s139 = smul.addr %s138, 2
        %s140 = scalar_lea.vmem %s0, %s139
        %p141 = pneg %p35
        %p142 = pneg %p32
        %p143 = pneg %p56
        %p144 = pneg %p53
        %p145 = pneg %p82
        %p146 = pneg %p79
        %s147 = smul.u32 4, %s14
        %p148 = scmp.lt.s32.totalorder %s147, 7
        %s149 = scalar_select %p148, %s147, 7
        %s150 = smul.addr %s149, 2
        %s151 = scalar_lea.vmem %s2, %s150
        %s152 = smul.u32 4, %s14
        %p153 = scmp.lt.s32.totalorder %s152, 7
        %s154 = scalar_select %p153, %s152, 7
        %s155 = smul.addr %s154, 2
        %s156 = scalar_lea.vmem %s0, %s155
        %s157 = smul.u32 4, %s14
        %s158 = smul.u32 4, %s14
        %p159 = scmp.lt.s32.totalorder %s158, 7
        %s160 = scalar_select %p159, %s158, 7
        %s161 = smul.addr %s160, 2
        %s162 = scalar_lea.vmem %s2, %s161
        %s163 = smul.u32 4, %s14
        %v164 = vld [vmem:[%s156] ss:$2 sm:$0xf]
        %s165 = scalar_lea.vmem %s156, 1
        %v166 = vld [vmem:[%s165] ss:$2 sm:$0xf]
        %v167 = vld [vmem:[#allocation2] sm:$0xff]
        %v168 = vld [vmem:[#allocation2 + $0x8] sm:$0xff]
        %v169 = vld [vmem:[#allocation2 + $0x10] sm:$0xff]
        %171 = vset.pattern.permute.xlu0 24
        %172 = vperm.xlu0 %171, %v167
        %v173 = vpop.permute.xlu0 %172
        %176 = vset.pattern.permute.xlu0 24
        %177 = vperm.xlu0 %176, %v168
        %v178 = vpop.permute.xlu0 %177
        %181 = vset.pattern.permute.xlu0 24
        %182 = vperm.xlu0 %181, %v169
        %v183 = vpop.permute.xlu0 %182
        %v186 = vperm.slane %v164, 0
        %v187 = vperm.slane %v164, 1
        %v188 = vperm.slane %v164, 2
        %v189 = vperm.slane %v164, 3
        %v194 = vmul.f32 %v173, %v186
        %v195 = vmul.f32 %v173, %v187
        %v196 = vmul.f32 %v173, %v188
        %v197 = vmul.f32 %v173, %v189
        %v198 = vmul.f32 %v178, %v186
        %v199 = vmul.f32 %v178, %v187
        %v200 = vmul.f32 %v178, %v188
        %v201 = vmul.f32 %v178, %v189
        %v202 = vmul.f32 %v183, %v186
        %v203 = vmul.f32 %v183, %v187
        %v204 = vmul.f32 %v183, %v188
        %v205 = vmul.f32 %v183, %v189
        %206 = vset.pattern.permute.xlu0 25
        %207 = vperm.xlu0 %206, %v167
        %v208 = vpop.permute.xlu0 %207
        %210 = vset.pattern.permute.xlu0 25
        %211 = vperm.xlu0 %210, %v168
        %v212 = vpop.permute.xlu0 %211
        %214 = vset.pattern.permute.xlu0 25
        %215 = vperm.xlu0 %214, %v169
        %v216 = vpop.permute.xlu0 %215
        %v219 = vperm.slane %v166, 0
        %v220 = vperm.slane %v166, 1
        %v221 = vperm.slane %v166, 2
        %v222 = vperm.slane %v166, 3
        %v227 = vmul.f32 %v208, %v219
        %v228 = vmul.f32 %v208, %v220
        %v229 = vmul.f32 %v208, %v221
        %v230 = vmul.f32 %v208, %v222
        %v231 = vmul.f32 %v212, %v219
        %v232 = vmul.f32 %v212, %v220
        %v233 = vmul.f32 %v212, %v221
        %v234 = vmul.f32 %v212, %v222
        %v235 = vmul.f32 %v216, %v219
        %v236 = vmul.f32 %v216, %v220
        %v237 = vmul.f32 %v216, %v221
        %v238 = vmul.f32 %v216, %v222
        %v239 = vadd.f32 %v194, %v227
        %v240 = vadd.f32 %v195, %v228
        %v241 = vadd.f32 %v196, %v229
        %v242 = vadd.f32 %v197, %v230
        %v243 = vadd.f32 %v198, %v231
        %v244 = vadd.f32 %v199, %v232
        %v245 = vadd.f32 %v200, %v233
        %v246 = vadd.f32 %v201, %v234
        %v247 = vadd.f32 %v202, %v235
        %v248 = vadd.f32 %v203, %v236
        %v249 = vadd.f32 %v204, %v237
        %v250 = vadd.f32 %v205, %v238
        %251 = vset.pattern.permute.xlu0 28
        %252 = vperm.xlu0 %251, %v167
        %v253 = vpop.permute.xlu0 %252
        %255 = vset.pattern.permute.xlu0 28
        %256 = vperm.xlu0 %255, %v168
        %v257 = vpop.permute.xlu0 %256
        %259 = vset.pattern.permute.xlu0 28
        %260 = vperm.xlu0 %259, %v169
        %v261 = vpop.permute.xlu0 %260
        %v263 = vadd.f32 %v239, %v253
        %v264 = vadd.f32 %v240, %v253
        %v265 = vadd.f32 %v241, %v253
        %v266 = vadd.f32 %v242, %v253
        %v267 = vadd.f32 %v243, %v257
        %v268 = vadd.f32 %v244, %v257
        %v269 = vadd.f32 %v245, %v257
        %v270 = vadd.f32 %v246, %v257
        %v271 = vadd.f32 %v247, %v261
        %v272 = vadd.f32 %v248, %v261
        %v273 = vadd.f32 %v249, %v261
        %v274 = vadd.f32 %v250, %v261
        %v275 = vmax.f32 %v263, 0.0
        %v276 = vmax.f32 %v264, 0.0
        %v277 = vmax.f32 %v265, 0.0
        %v278 = vmax.f32 %v266, 0.0
        %v279 = vmax.f32 %v267, 0.0
        %v280 = vmax.f32 %v268, 0.0
        %v281 = vmax.f32 %v269, 0.0
        %v282 = vmax.f32 %v270, 0.0
        %v283 = vmax.f32 %v271, 0.0
        %v284 = vmax.f32 %v272, 0.0
        %v285 = vmax.f32 %v273, 0.0
        %v286 = vmax.f32 %v274, 0.0
        %vm287 = vcmask 195584
        %v288 = vsel %vm287, %v167, 0
        %v290 = vsel %vm287, %v168, 0
        %v292 = vsel %vm287, %v169, 0
        %294 = vmatpush.msra.mxu0 0.0
        %295 = vmatpush.msra.mxu0 0.0
        %296 = vmatpush.msra.mxu0 0.0
        %297 = vmatpush.msra.mxu0 0.0
        %298 = vmatpush.msra.mxu0 0.0
        %299 = vmatpush.msra.mxu0 0.0
        %300 = vmatpush.msra.mxu0 0.0
        %301 = vmatpush.msra.mxu0 0.0
        %302 = vmatpush.msra.mxu0 0.0
        %303 = vmatpush.msra.mxu0 0.0
        %304 = vmatpush.msra.mxu0 0.0
        %305 = vmatpush.msra.mxu0 0.0
        %306 = vmatpush.msra.mxu0 0.0
        %307 = vmatpush.msra.mxu0 %v283
        %308 = vmatpush.msra.mxu0 %v279
        %309 = vmatpush.msra.mxu0 %v275
        %310 = vmatmul.f32.gmra.mxu0 %v288
        %v311 = vpop.f32.mrf.mxu0
        %v312 = vadd.f32 0.0, %v311
        %313 = vmatmul.f32.gmra.mxu0 %v290
        %v314 = vpop.f32.mrf.mxu0
        %v315 = vadd.f32 0.0, %v314
        %316 = vmatmul.f32.gmra.mxu0 %v292
        %v317 = vpop.f32.mrf.mxu0
        %v318 = vadd.f32 0.0, %v317
        %319 = vdwg.mxu0
        %320 = vmatpush.msra.mxu0 0.0
        %321 = vmatpush.msra.mxu0 0.0
        %322 = vmatpush.msra.mxu0 0.0
        %323 = vmatpush.msra.mxu0 0.0
        %324 = vmatpush.msra.mxu0 0.0
        %325 = vmatpush.msra.mxu0 0.0
        %326 = vmatpush.msra.mxu0 0.0
        %327 = vmatpush.msra.mxu0 0.0
        %328 = vmatpush.msra.mxu0 0.0
        %329 = vmatpush.msra.mxu0 0.0
        %330 = vmatpush.msra.mxu0 0.0
        %331 = vmatpush.msra.mxu0 0.0
        %332 = vmatpush.msra.mxu0 0.0
        %333 = vmatpush.msra.mxu0 %v284
        %334 = vmatpush.msra.mxu0 %v280
        %335 = vmatpush.msra.mxu0 %v276
        %336 = vmatmul.f32.gmra.mxu0 %v288
        %v337 = vpop.f32.mrf.mxu0
        %v338 = vadd.f32 0.0, %v337
        %339 = vmatmul.f32.gmra.mxu0 %v290
        %v340 = vpop.f32.mrf.mxu0
        %v341 = vadd.f32 0.0, %v340
        %342 = vmatmul.f32.gmra.mxu0 %v292
        %v343 = vpop.f32.mrf.mxu0
        %v344 = vadd.f32 0.0, %v343
        %345 = vdwg.mxu0
        %346 = vmatpush.msra.mxu0 0.0
        %347 = vmatpush.msra.mxu0 0.0
        %348 = vmatpush.msra.mxu0 0.0
        %349 = vmatpush.msra.mxu0 0.0
        %350 = vmatpush.msra.mxu0 0.0
        %351 = vmatpush.msra.mxu0 0.0
        %352 = vmatpush.msra.mxu0 0.0
        %353 = vmatpush.msra.mxu0 0.0
        %354 = vmatpush.msra.mxu0 0.0
        %355 = vmatpush.msra.mxu0 0.0
        %356 = vmatpush.msra.mxu0 0.0
        %357 = vmatpush.msra.mxu0 0.0
        %358 = vmatpush.msra.mxu0 0.0
        %359 = vmatpush.msra.mxu0 %v285
        %360 = vmatpush.msra.mxu0 %v281
        %361 = vmatpush.msra.mxu0 %v277
        %362 = vmatmul.f32.gmra.mxu0 %v288
        %v363 = vpop.f32.mrf.mxu0
        %v364 = vadd.f32 0.0, %v363
        %365 = vmatmul.f32.gmra.mxu0 %v290
        %v366 = vpop.f32.mrf.mxu0
        %v367 = vadd.f32 0.0, %v366
        %368 = vmatmul.f32.gmra.mxu0 %v292
        %v369 = vpop.f32.mrf.mxu0
        %v370 = vadd.f32 0.0, %v369
        %371 = vdwg.mxu0
        %372 = vmatpush.msra.mxu0 0.0
        %373 = vmatpush.msra.mxu0 0.0
        %374 = vmatpush.msra.mxu0 0.0
        %375 = vmatpush.msra.mxu0 0.0
        %376 = vmatpush.msra.mxu0 0.0
        %377 = vmatpush.msra.mxu0 0.0
        %378 = vmatpush.msra.mxu0 0.0
        %379 = vmatpush.msra.mxu0 0.0
        %380 = vmatpush.msra.mxu0 0.0
        %381 = vmatpush.msra.mxu0 0.0
        %382 = vmatpush.msra.mxu0 0.0
        %383 = vmatpush.msra.mxu0 0.0
        %384 = vmatpush.msra.mxu0 0.0
        %385 = vmatpush.msra.mxu0 %v286
        %386 = vmatpush.msra.mxu0 %v282
        %387 = vmatpush.msra.mxu0 %v278
        %388 = vmatmul.f32.gmra.mxu0 %v288
        %v389 = vpop.f32.mrf.mxu0
        %v390 = vadd.f32 0.0, %v389
        %391 = vmatmul.f32.gmra.mxu0 %v290
        %v392 = vpop.f32.mrf.mxu0
        %v393 = vadd.f32 0.0, %v392
        %394 = vmatmul.f32.gmra.mxu0 %v292
        %v395 = vpop.f32.mrf.mxu0
        %v396 = vadd.f32 0.0, %v395
        %397 = vdwg.mxu0
        %v398 = vmax.f32 %v312, 0.0
        %v399 = vmax.f32 %v338, 0.0
        %v400 = vmax.f32 %v364, 0.0
        %v401 = vmax.f32 %v390, 0.0
        %v402 = vmax.f32 %v315, 0.0
        %v403 = vmax.f32 %v341, 0.0
        %v404 = vmax.f32 %v367, 0.0
        %v405 = vmax.f32 %v393, 0.0
        %v406 = vmax.f32 %v318, 0.0
        %v407 = vmax.f32 %v344, 0.0
        %v408 = vmax.f32 %v370, 0.0
        %v409 = vmax.f32 %v396, 0.0
        %410 = vset.pattern.permute.xlu0 26
        %411 = vperm.xlu0 %410, %v167
        %v412 = vpop.permute.xlu0 %411
        %414 = vset.pattern.permute.xlu0 26
        %415 = vperm.xlu0 %414, %v168
        %v416 = vpop.permute.xlu0 %415
        %418 = vset.pattern.permute.xlu0 26
        %419 = vperm.xlu0 %418, %v169
        %v420 = vpop.permute.xlu0 %419
        %v422 = vmul.f32 %v412, %v398
        %v423 = vmul.f32 %v412, %v399
        %v424 = vmul.f32 %v412, %v400
        %v425 = vmul.f32 %v412, %v401
        %v426 = vmul.f32 %v416, %v402
        %v427 = vmul.f32 %v416, %v403
        %v428 = vmul.f32 %v416, %v404
        %v429 = vmul.f32 %v416, %v405
        %v430 = vmul.f32 %v420, %v406
        %v431 = vmul.f32 %v420, %v407
        %v432 = vmul.f32 %v420, %v408
        %v433 = vmul.f32 %v420, %v409
        %v434 = vadd.f32 %v422, %v426
        %v435 = vadd.f32 %v434, %v430
        %v436 = vrot.slane %v435, 4
        %v437 = vadd.f32 %v435, %v436
        %v438 = vrot.slane %v437, 2
        %v439 = vadd.f32 %v437, %v438
        %v440 = vrot.slane %v439, 1
        %v441 = vadd.f32 %v439, %v440
        %v442 = vadd.f32 %v423, %v427
        %v443 = vadd.f32 %v442, %v431
        %v444 = vrot.slane %v443, 4
        %v445 = vadd.f32 %v443, %v444
        %v446 = vrot.slane %v445, 2
        %v447 = vadd.f32 %v445, %v446
        %v448 = vrot.slane %v447, 1
        %v449 = vadd.f32 %v447, %v448
        %v450 = vadd.f32 %v424, %v428
        %v451 = vadd.f32 %v450, %v432
        %v452 = vrot.slane %v451, 4
        %v453 = vadd.f32 %v451, %v452
        %v454 = vrot.slane %v453, 2
        %v455 = vadd.f32 %v453, %v454
        %v456 = vrot.slane %v455, 1
        %v457 = vadd.f32 %v455, %v456
        %v458 = vadd.f32 %v425, %v429
        %v459 = vadd.f32 %v458, %v433
        %v460 = vrot.slane %v459, 4
        %v461 = vadd.f32 %v459, %v460
        %v462 = vrot.slane %v461, 2
        %v463 = vadd.f32 %v461, %v462
        %v464 = vrot.slane %v463, 1
        %v465 = vadd.f32 %v463, %v464
        %466 = vset.pattern.permute.xlu0 27
        %467 = vperm.xlu0 %466, %v167
        %v468 = vpop.permute.xlu0 %467
        %470 = vset.pattern.permute.xlu0 27
        %471 = vperm.xlu0 %470, %v168
        %v472 = vpop.permute.xlu0 %471
        %474 = vset.pattern.permute.xlu0 27
        %475 = vperm.xlu0 %474, %v169
        %v476 = vpop.permute.xlu0 %475
        %v478 = vmul.f32 %v468, %v398
        %v479 = vmul.f32 %v468, %v399
        %v480 = vmul.f32 %v468, %v400
        %v481 = vmul.f32 %v468, %v401
        %v482 = vmul.f32 %v472, %v402
        %v483 = vmul.f32 %v472, %v403
        %v484 = vmul.f32 %v472, %v404
        %v485 = vmul.f32 %v472, %v405
        %v486 = vmul.f32 %v476, %v406
        %v487 = vmul.f32 %v476, %v407
        %v488 = vmul.f32 %v476, %v408
        %v489 = vmul.f32 %v476, %v409
        %v490 = vadd.f32 %v478, %v482
        %v491 = vadd.f32 %v490, %v486
        %v492 = vrot.slane %v491, 4
        %v493 = vadd.f32 %v491, %v492
        %v494 = vrot.slane %v493, 2
        %v495 = vadd.f32 %v493, %v494
        %v496 = vrot.slane %v495, 1
        %v497 = vadd.f32 %v495, %v496
        %v498 = vadd.f32 %v479, %v483
        %v499 = vadd.f32 %v498, %v487
        %v500 = vrot.slane %v499, 4
        %v501 = vadd.f32 %v499, %v500
        %v502 = vrot.slane %v501, 2
        %v503 = vadd.f32 %v501, %v502
        %v504 = vrot.slane %v503, 1
        %v505 = vadd.f32 %v503, %v504
        %v506 = vadd.f32 %v480, %v484
        %v507 = vadd.f32 %v506, %v488
        %v508 = vrot.slane %v507, 4
        %v509 = vadd.f32 %v507, %v508
        %v510 = vrot.slane %v509, 2
        %v511 = vadd.f32 %v509, %v510
        %v512 = vrot.slane %v511, 1
        %v513 = vadd.f32 %v511, %v512
        %v514 = vadd.f32 %v481, %v485
        %v515 = vadd.f32 %v514, %v489
        %v516 = vrot.slane %v515, 4
        %v517 = vadd.f32 %v515, %v516
        %v518 = vrot.slane %v517, 2
        %v519 = vadd.f32 %v517, %v518
        %v520 = vrot.slane %v519, 1
        %v521 = vadd.f32 %v519, %v520
        %v526 = vrot.slane %v449, 7
        %v527 = vrot.slane %v457, 6
        %v528 = vrot.slane %v465, 5
        %vm529 = vcmask 1040384
        %v530 = vsel %vm529, %v441, %v526
        %vm531 = vcmask 1042434
        %v532 = vsel %vm531, %v527, %v528
        %vm533 = vcmask 1041408
        %v534 = vsel %vm533, %v530, %v532
        %v536 = vadd.f32 %v164, %v534
        %v541 = vrot.slane %v505, 7
        %v542 = vrot.slane %v513, 6
        %v543 = vrot.slane %v521, 5
        %v544 = vsel %vm529, %v497, %v541
        %v545 = vsel %vm531, %v542, %v543
        %v546 = vsel %vm533, %v544, %v545
        %v548 = vadd.f32 %v166, %v546
        %s549 = scalar_lea.vmem [#allocation2], 24
        %v550 = vld [vmem:[%s549] sm:$0xff]
        %v551 = vld [vmem:[%s549 + $0x8] sm:$0xff]
        %v552 = vld [vmem:[%s549 + $0x10] sm:$0xff]
        %554 = vset.pattern.permute.xlu0 24
        %555 = vperm.xlu0 %554, %v550
        %v556 = vpop.permute.xlu0 %555
        %559 = vset.pattern.permute.xlu0 24
        %560 = vperm.xlu0 %559, %v551
        %v561 = vpop.permute.xlu0 %560
        %564 = vset.pattern.permute.xlu0 24
        %565 = vperm.xlu0 %564, %v552
        %v566 = vpop.permute.xlu0 %565
        %v569 = vperm.slane %v536, 0
        %v570 = vperm.slane %v536, 1
        %v571 = vperm.slane %v536, 2
        %v572 = vperm.slane %v536, 3
        %v577 = vmul.f32 %v556, %v569
        %v578 = vmul.f32 %v556, %v570
        %v579 = vmul.f32 %v556, %v571
        %v580 = vmul.f32 %v556, %v572
        %v581 = vmul.f32 %v561, %v569
        %v582 = vmul.f32 %v561, %v570
        %v583 = vmul.f32 %v561, %v571
        %v584 = vmul.f32 %v561, %v572
        %v585 = vmul.f32 %v566, %v569
        %v586 = vmul.f32 %v566, %v570
        %v587 = vmul.f32 %v566, %v571
        %v588 = vmul.f32 %v566, %v572
        %589 = vset.pattern.permute.xlu0 25
        %590 = vperm.xlu0 %589, %v550
        %v591 = vpop.permute.xlu0 %590
        %593 = vset.pattern.permute.xlu0 25
        %594 = vperm.xlu0 %593, %v551
        %v595 = vpop.permute.xlu0 %594
        %597 = vset.pattern.permute.xlu0 25
        %598 = vperm.xlu0 %597, %v552
        %v599 = vpop.permute.xlu0 %598
        %v602 = vperm.slane %v548, 0
        %v603 = vperm.slane %v548, 1
        %v604 = vperm.slane %v548, 2
        %v605 = vperm.slane %v548, 3
        %v610 = vmul.f32 %v591, %v602
        %v611 = vmul.f32 %v591, %v603
        %v612 = vmul.f32 %v591, %v604
        %v613 = vmul.f32 %v591, %v605
        %v614 = vmul.f32 %v595, %v602
        %v615 = vmul.f32 %v595, %v603
        %v616 = vmul.f32 %v595, %v604
        %v617 = vmul.f32 %v595, %v605
        %v618 = vmul.f32 %v599, %v602
        %v619 = vmul.f32 %v599, %v603
        %v620 = vmul.f32 %v599, %v604
        %v621 = vmul.f32 %v599, %v605
        %v622 = vadd.f32 %v577, %v610
        %v623 = vadd.f32 %v578, %v611
        %v624 = vadd.f32 %v579, %v612
        %v625 = vadd.f32 %v580, %v613
        %v626 = vadd.f32 %v581, %v614
        %v627 = vadd.f32 %v582, %v615
        %v628 = vadd.f32 %v583, %v616
        %v629 = vadd.f32 %v584, %v617
        %v630 = vadd.f32 %v585, %v618
        %v631 = vadd.f32 %v586, %v619
        %v632 = vadd.f32 %v587, %v620
        %v633 = vadd.f32 %v588, %v621
        %634 = vset.pattern.permute.xlu0 28
        %635 = vperm.xlu0 %634, %v550
        %v636 = vpop.permute.xlu0 %635
        %638 = vset.pattern.permute.xlu0 28
        %639 = vperm.xlu0 %638, %v551
        %v640 = vpop.permute.xlu0 %639
        %642 = vset.pattern.permute.xlu0 28
        %643 = vperm.xlu0 %642, %v552
        %v644 = vpop.permute.xlu0 %643
        %v646 = vadd.f32 %v622, %v636
        %v647 = vadd.f32 %v623, %v636
        %v648 = vadd.f32 %v624, %v636
        %v649 = vadd.f32 %v625, %v636
        %v650 = vadd.f32 %v626, %v640
        %v651 = vadd.f32 %v627, %v640
        %v652 = vadd.f32 %v628, %v640
        %v653 = vadd.f32 %v629, %v640
        %v654 = vadd.f32 %v630, %v644
        %v655 = vadd.f32 %v631, %v644
        %v656 = vadd.f32 %v632, %v644
        %v657 = vadd.f32 %v633, %v644
        %v658 = vmax.f32 %v646, 0.0
        %v659 = vmax.f32 %v647, 0.0
        %v660 = vmax.f32 %v648, 0.0
        %v661 = vmax.f32 %v649, 0.0
        %v662 = vmax.f32 %v650, 0.0
        %v663 = vmax.f32 %v651, 0.0
        %v664 = vmax.f32 %v652, 0.0
        %v665 = vmax.f32 %v653, 0.0
        %v666 = vmax.f32 %v654, 0.0
        %v667 = vmax.f32 %v655, 0.0
        %v668 = vmax.f32 %v656, 0.0
        %v669 = vmax.f32 %v657, 0.0
        %v670 = vsel %vm287, %v550, 0
        %v672 = vsel %vm287, %v551, 0
        %v674 = vsel %vm287, %v552, 0
        %676 = vmatpush.msra.mxu0 0.0
        %677 = vmatpush.msra.mxu0 0.0
        %678 = vmatpush.msra.mxu0 0.0
        %679 = vmatpush.msra.mxu0 0.0
        %680 = vmatpush.msra.mxu0 0.0
        %681 = vmatpush.msra.mxu0 0.0
        %682 = vmatpush.msra.mxu0 0.0
        %683 = vmatpush.msra.mxu0 0.0
        %684 = vmatpush.msra.mxu0 0.0
        %685 = vmatpush.msra.mxu0 0.0
        %686 = vmatpush.msra.mxu0 0.0
        %687 = vmatpush.msra.mxu0 0.0
        %688 = vmatpush.msra.mxu0 0.0
        %689 = vmatpush.msra.mxu0 %v666
        %690 = vmatpush.msra.mxu0 %v662
        %691 = vmatpush.msra.mxu0 %v658
        %692 = vmatmul.f32.gmra.mxu0 %v670
        %v693 = vpop.f32.mrf.mxu0
        %v694 = vadd.f32 0.0, %v693
        %695 = vmatmul.f32.gmra.mxu0 %v672
        %v696 = vpop.f32.mrf.mxu0
        %v697 = vadd.f32 0.0, %v696
        %698 = vmatmul.f32.gmra.mxu0 %v674
        %v699 = vpop.f32.mrf.mxu0
        %v700 = vadd.f32 0.0, %v699
        %701 = vdwg.mxu0
        %702 = vmatpush.msra.mxu0 0.0
        %703 = vmatpush.msra.mxu0 0.0
        %704 = vmatpush.msra.mxu0 0.0
        %705 = vmatpush.msra.mxu0 0.0
        %706 = vmatpush.msra.mxu0 0.0
        %707 = vmatpush.msra.mxu0 0.0
        %708 = vmatpush.msra.mxu0 0.0
        %709 = vmatpush.msra.mxu0 0.0
        %710 = vmatpush.msra.mxu0 0.0
        %711 = vmatpush.msra.mxu0 0.0
        %712 = vmatpush.msra.mxu0 0.0
        %713 = vmatpush.msra.mxu0 0.0
        %714 = vmatpush.msra.mxu0 0.0
        %715 = vmatpush.msra.mxu0 %v667
        %716 = vmatpush.msra.mxu0 %v663
        %717 = vmatpush.msra.mxu0 %v659
        %718 = vmatmul.f32.gmra.mxu0 %v670
        %v719 = vpop.f32.mrf.mxu0
        %v720 = vadd.f32 0.0, %v719
        %721 = vmatmul.f32.gmra.mxu0 %v672
        %v722 = vpop.f32.mrf.mxu0
        %v723 = vadd.f32 0.0, %v722
        %724 = vmatmul.f32.gmra.mxu0 %v674
        %v725 = vpop.f32.mrf.mxu0
        %v726 = vadd.f32 0.0, %v725
        %727 = vdwg.mxu0
        %728 = vmatpush.msra.mxu0 0.0
        %729 = vmatpush.msra.mxu0 0.0
        %730 = vmatpush.msra.mxu0 0.0
        %731 = vmatpush.msra.mxu0 0.0
        %732 = vmatpush.msra.mxu0 0.0
        %733 = vmatpush.msra.mxu0 0.0
        %734 = vmatpush.msra.mxu0 0.0
        %735 = vmatpush.msra.mxu0 0.0
        %736 = vmatpush.msra.mxu0 0.0
        %737 = vmatpush.msra.mxu0 0.0
        %738 = vmatpush.msra.mxu0 0.0
        %739 = vmatpush.msra.mxu0 0.0
        %740 = vmatpush.msra.mxu0 0.0
        %741 = vmatpush.msra.mxu0 %v668
        %742 = vmatpush.msra.mxu0 %v664
        %743 = vmatpush.msra.mxu0 %v660
        %744 = vmatmul.f32.gmra.mxu0 %v670
        %v745 = vpop.f32.mrf.mxu0
        %v746 = vadd.f32 0.0, %v745
        %747 = vmatmul.f32.gmra.mxu0 %v672
        %v748 = vpop.f32.mrf.mxu0
        %v749 = vadd.f32 0.0, %v748
        %750 = vmatmul.f32.gmra.mxu0 %v674
        %v751 = vpop.f32.mrf.mxu0
        %v752 = vadd.f32 0.0, %v751
        %753 = vdwg.mxu0
        %754 = vmatpush.msra.mxu0 0.0
        %755 = vmatpush.msra.mxu0 0.0
        %756 = vmatpush.msra.mxu0 0.0
        %757 = vmatpush.msra.mxu0 0.0
        %758 = vmatpush.msra.mxu0 0.0
        %759 = vmatpush.msra.mxu0 0.0
        %760 = vmatpush.msra.mxu0 0.0
        %761 = vmatpush.msra.mxu0 0.0
        %762 = vmatpush.msra.mxu0 0.0
        %763 = vmatpush.msra.mxu0 0.0
        %764 = vmatpush.msra.mxu0 0.0
        %765 = vmatpush.msra.mxu0 0.0
        %766 = vmatpush.msra.mxu0 0.0
        %767 = vmatpush.msra.mxu0 %v669
        %768 = vmatpush.msra.mxu0 %v665
        %769 = vmatpush.msra.mxu0 %v661
        %770 = vmatmul.f32.gmra.mxu0 %v670
        %v771 = vpop.f32.mrf.mxu0
        %v772 = vadd.f32 0.0, %v771
        %773 = vmatmul.f32.gmra.mxu0 %v672
        %v774 = vpop.f32.mrf.mxu0
        %v775 = vadd.f32 0.0, %v774
        %776 = vmatmul.f32.gmra.mxu0 %v674
        %v777 = vpop.f32.mrf.mxu0
        %v778 = vadd.f32 0.0, %v777
        %779 = vdwg.mxu0
        %v780 = vmax.f32 %v694, 0.0
        %v781 = vmax.f32 %v720, 0.0
        %v782 = vmax.f32 %v746, 0.0
        %v783 = vmax.f32 %v772, 0.0
        %v784 = vmax.f32 %v697, 0.0
        %v785 = vmax.f32 %v723, 0.0
        %v786 = vmax.f32 %v749, 0.0
        %v787 = vmax.f32 %v775, 0.0
        %v788 = vmax.f32 %v700, 0.0
        %v789 = vmax.f32 %v726, 0.0
        %v790 = vmax.f32 %v752, 0.0
        %v791 = vmax.f32 %v778, 0.0
        %792 = vset.pattern.permute.xlu0 26
        %793 = vperm.xlu0 %792, %v550
        %v794 = vpop.permute.xlu0 %793
        %796 = vset.pattern.permute.xlu0 26
        %797 = vperm.xlu0 %796, %v551
        %v798 = vpop.permute.xlu0 %797
        %800 = vset.pattern.permute.xlu0 26
        %801 = vperm.xlu0 %800, %v552
        %v802 = vpop.permute.xlu0 %801
        %v804 = vmul.f32 %v794, %v780
        %v805 = vmul.f32 %v794, %v781
        %v806 = vmul.f32 %v794, %v782
        %v807 = vmul.f32 %v794, %v783
        %v808 = vmul.f32 %v798, %v784
        %v809 = vmul.f32 %v798, %v785
        %v810 = vmul.f32 %v798, %v786
        %v811 = vmul.f32 %v798, %v787
        %v812 = vmul.f32 %v802, %v788
        %v813 = vmul.f32 %v802, %v789
        %v814 = vmul.f32 %v802, %v790
        %v815 = vmul.f32 %v802, %v791
        %v816 = vadd.f32 %v804, %v808
        %v817 = vadd.f32 %v816, %v812
        %v818 = vrot.slane %v817, 4
        %v819 = vadd.f32 %v817, %v818
        %v820 = vrot.slane %v819, 2
        %v821 = vadd.f32 %v819, %v820
        %v822 = vrot.slane %v821, 1
        %v823 = vadd.f32 %v821, %v822
        %v824 = vadd.f32 %v805, %v809
        %v825 = vadd.f32 %v824, %v813
        %v826 = vrot.slane %v825, 4
        %v827 = vadd.f32 %v825, %v826
        %v828 = vrot.slane %v827, 2
        %v829 = vadd.f32 %v827, %v828
        %v830 = vrot.slane %v829, 1
        %v831 = vadd.f32 %v829, %v830
        %v832 = vadd.f32 %v806, %v810
        %v833 = vadd.f32 %v832, %v814
        %v834 = vrot.slane %v833, 4
        %v835 = vadd.f32 %v833, %v834
        %v836 = vrot.slane %v835, 2
        %v837 = vadd.f32 %v835, %v836
        %v838 = vrot.slane %v837, 1
        %v839 = vadd.f32 %v837, %v838
        %v840 = vadd.f32 %v807, %v811
        %v841 = vadd.f32 %v840, %v815
        %v842 = vrot.slane %v841, 4
        %v843 = vadd.f32 %v841, %v842
        %v844 = vrot.slane %v843, 2
        %v845 = vadd.f32 %v843, %v844
        %v846 = vrot.slane %v845, 1
        %v847 = vadd.f32 %v845, %v846
        %848 = vset.pattern.permute.xlu0 27
        %849 = vperm.xlu0 %848, %v550
        %v850 = vpop.permute.xlu0 %849
        %852 = vset.pattern.permute.xlu0 27
        %853 = vperm.xlu0 %852, %v551
        %v854 = vpop.permute.xlu0 %853
        %856 = vset.pattern.permute.xlu0 27
        %857 = vperm.xlu0 %856, %v552
        %v858 = vpop.permute.xlu0 %857
        %v860 = vmul.f32 %v850, %v780
        %v861 = vmul.f32 %v850, %v781
        %v862 = vmul.f32 %v850, %v782
        %v863 = vmul.f32 %v850, %v783
        %v864 = vmul.f32 %v854, %v784
        %v865 = vmul.f32 %v854, %v785
        %v866 = vmul.f32 %v854, %v786
        %v867 = vmul.f32 %v854, %v787
        %v868 = vmul.f32 %v858, %v788
        %v869 = vmul.f32 %v858, %v789
        %v870 = vmul.f32 %v858, %v790
        %v871 = vmul.f32 %v858, %v791
        %v872 = vadd.f32 %v860, %v864
        %v873 = vadd.f32 %v872, %v868
        %v874 = vrot.slane %v873, 4
        %v875 = vadd.f32 %v873, %v874
        %v876 = vrot.slane %v875, 2
        %v877 = vadd.f32 %v875, %v876
        %v878 = vrot.slane %v877, 1
        %v879 = vadd.f32 %v877, %v878
        %v880 = vadd.f32 %v861, %v865
        %v881 = vadd.f32 %v880, %v869
        %v882 = vrot.slane %v881, 4
        %v883 = vadd.f32 %v881, %v882
        %v884 = vrot.slane %v883, 2
        %v885 = vadd.f32 %v883, %v884
        %v886 = vrot.slane %v885, 1
        %v887 = vadd.f32 %v885, %v886
        %v888 = vadd.f32 %v862, %v866
        %v889 = vadd.f32 %v888, %v870
        %v890 = vrot.slane %v889, 4
        %v891 = vadd.f32 %v889, %v890
        %v892 = vrot.slane %v891, 2
        %v893 = vadd.f32 %v891, %v892
        %v894 = vrot.slane %v893, 1
        %v895 = vadd.f32 %v893, %v894
        %v896 = vadd.f32 %v863, %v867
        %v897 = vadd.f32 %v896, %v871
        %v898 = vrot.slane %v897, 4
        %v899 = vadd.f32 %v897, %v898
        %v900 = vrot.slane %v899, 2
        %v901 = vadd.f32 %v899, %v900
        %v902 = vrot.slane %v901, 1
        %v903 = vadd.f32 %v901, %v902
        %v908 = vrot.slane %v831, 7
        %v909 = vrot.slane %v839, 6
        %v910 = vrot.slane %v847, 5
        %v911 = vsel %vm529, %v823, %v908
        %v912 = vsel %vm531, %v909, %v910
        %v913 = vsel %vm533, %v911, %v912
        %v915 = vadd.f32 %v536, %v913
        %v920 = vrot.slane %v887, 7
        %v921 = vrot.slane %v895, 6
        %v922 = vrot.slane %v903, 5
        %v923 = vsel %vm529, %v879, %v920
        %v924 = vsel %vm531, %v921, %v922
        %v925 = vsel %vm533, %v923, %v924
        %v927 = vadd.f32 %v548, %v925
        %s928 = scalar_lea.vmem [#allocation2], 48
        %v929 = vld [vmem:[%s928] sm:$0xff]
        %v930 = vld [vmem:[%s928 + $0x8] sm:$0xff]
        %v931 = vld [vmem:[%s928 + $0x10] sm:$0xff]
        %933 = vset.pattern.permute.xlu0 24
        %934 = vperm.xlu0 %933, %v929
        %v935 = vpop.permute.xlu0 %934
        %938 = vset.pattern.permute.xlu0 24
        %939 = vperm.xlu0 %938, %v930
        %v940 = vpop.permute.xlu0 %939
        %943 = vset.pattern.permute.xlu0 24
        %944 = vperm.xlu0 %943, %v931
        %v945 = vpop.permute.xlu0 %944
        %v948 = vperm.slane %v915, 0
        %v949 = vperm.slane %v915, 1
        %v950 = vperm.slane %v915, 2
        %v951 = vperm.slane %v915, 3
        %v956 = vmul.f32 %v935, %v948
        %v957 = vmul.f32 %v935, %v949
        %v958 = vmul.f32 %v935, %v950
        %v959 = vmul.f32 %v935, %v951
        %v960 = vmul.f32 %v940, %v948
        %v961 = vmul.f32 %v940, %v949
        %v962 = vmul.f32 %v940, %v950
        %v963 = vmul.f32 %v940, %v951
        %v964 = vmul.f32 %v945, %v948
        %v965 = vmul.f32 %v945, %v949
        %v966 = vmul.f32 %v945, %v950
        %v967 = vmul.f32 %v945, %v951
        %968 = vset.pattern.permute.xlu0 25
        %969 = vperm.xlu0 %968, %v929
        %v970 = vpop.permute.xlu0 %969
        %972 = vset.pattern.permute.xlu0 25
        %973 = vperm.xlu0 %972, %v930
        %v974 = vpop.permute.xlu0 %973
        %976 = vset.pattern.permute.xlu0 25
        %977 = vperm.xlu0 %976, %v931
        %v978 = vpop.permute.xlu0 %977
        %v981 = vperm.slane %v927, 0
        %v982 = vperm.slane %v927, 1
        %v983 = vperm.slane %v927, 2
        %v984 = vperm.slane %v927, 3
        %v989 = vmul.f32 %v970, %v981
        %v990 = vmul.f32 %v970, %v982
        %v991 = vmul.f32 %v970, %v983
        %v992 = vmul.f32 %v970, %v984
        %v993 = vmul.f32 %v974, %v981
        %v994 = vmul.f32 %v974, %v982
        %v995 = vmul.f32 %v974, %v983
        %v996 = vmul.f32 %v974, %v984
        %v997 = vmul.f32 %v978, %v981
        %v998 = vmul.f32 %v978, %v982
        %v999 = vmul.f32 %v978, %v983
        %v1000 = vmul.f32 %v978, %v984
        %v1001 = vadd.f32 %v956, %v989
        %v1002 = vadd.f32 %v957, %v990
        %v1003 = vadd.f32 %v958, %v991
        %v1004 = vadd.f32 %v959, %v992
        %v1005 = vadd.f32 %v960, %v993
        %v1006 = vadd.f32 %v961, %v994
        %v1007 = vadd.f32 %v962, %v995
        %v1008 = vadd.f32 %v963, %v996
        %v1009 = vadd.f32 %v964, %v997
        %v1010 = vadd.f32 %v965, %v998
        %v1011 = vadd.f32 %v966, %v999
        %v1012 = vadd.f32 %v967, %v1000
        %1013 = vset.pattern.permute.xlu0 28
        %1014 = vperm.xlu0 %1013, %v929
        %v1015 = vpop.permute.xlu0 %1014
        %1017 = vset.pattern.permute.xlu0 28
        %1018 = vperm.xlu0 %1017, %v930
        %v1019 = vpop.permute.xlu0 %1018
        %1021 = vset.pattern.permute.xlu0 28
        %1022 = vperm.xlu0 %1021, %v931
        %v1023 = vpop.permute.xlu0 %1022
        %v1025 = vadd.f32 %v1001, %v1015
        %v1026 = vadd.f32 %v1002, %v1015
        %v1027 = vadd.f32 %v1003, %v1015
        %v1028 = vadd.f32 %v1004, %v1015
        %v1029 = vadd.f32 %v1005, %v1019
        %v1030 = vadd.f32 %v1006, %v1019
        %v1031 = vadd.f32 %v1007, %v1019
        %v1032 = vadd.f32 %v1008, %v1019
        %v1033 = vadd.f32 %v1009, %v1023
        %v1034 = vadd.f32 %v1010, %v1023
        %v1035 = vadd.f32 %v1011, %v1023
        %v1036 = vadd.f32 %v1012, %v1023
        %v1037 = vmax.f32 %v1025, 0.0
        %v1038 = vmax.f32 %v1026, 0.0
        %v1039 = vmax.f32 %v1027, 0.0
        %v1040 = vmax.f32 %v1028, 0.0
        %v1041 = vmax.f32 %v1029, 0.0
        %v1042 = vmax.f32 %v1030, 0.0
        %v1043 = vmax.f32 %v1031, 0.0
        %v1044 = vmax.f32 %v1032, 0.0
        %v1045 = vmax.f32 %v1033, 0.0
        %v1046 = vmax.f32 %v1034, 0.0
        %v1047 = vmax.f32 %v1035, 0.0
        %v1048 = vmax.f32 %v1036, 0.0
        %v1049 = vsel %vm287, %v929, 0
        %v1051 = vsel %vm287, %v930, 0
        %v1053 = vsel %vm287, %v931, 0
        %1055 = vmatpush.msra.mxu0 0.0
        %1056 = vmatpush.msra.mxu0 0.0
        %1057 = vmatpush.msra.mxu0 0.0
        %1058 = vmatpush.msra.mxu0 0.0
        %1059 = vmatpush.msra.mxu0 0.0
        %1060 = vmatpush.msra.mxu0 0.0
        %1061 = vmatpush.msra.mxu0 0.0
        %1062 = vmatpush.msra.mxu0 0.0
        %1063 = vmatpush.msra.mxu0 0.0
        %1064 = vmatpush.msra.mxu0 0.0
        %1065 = vmatpush.msra.mxu0 0.0
        %1066 = vmatpush.msra.mxu0 0.0
        %1067 = vmatpush.msra.mxu0 0.0
        %1068 = vmatpush.msra.mxu0 %v1045
        %1069 = vmatpush.msra.mxu0 %v1041
        %1070 = vmatpush.msra.mxu0 %v1037
        %1071 = vmatmul.f32.gmra.mxu0 %v1049
        %v1072 = vpop.f32.mrf.mxu0
        %v1073 = vadd.f32 0.0, %v1072
        %1074 = vmatmul.f32.gmra.mxu0 %v1051
        %v1075 = vpop.f32.mrf.mxu0
        %v1076 = vadd.f32 0.0, %v1075
        %1077 = vmatmul.f32.gmra.mxu0 %v1053
        %v1078 = vpop.f32.mrf.mxu0
        %v1079 = vadd.f32 0.0, %v1078
        %1080 = vdwg.mxu0
        %1081 = vmatpush.msra.mxu0 0.0
        %1082 = vmatpush.msra.mxu0 0.0
        %1083 = vmatpush.msra.mxu0 0.0
        %1084 = vmatpush.msra.mxu0 0.0
        %1085 = vmatpush.msra.mxu0 0.0
        %1086 = vmatpush.msra.mxu0 0.0
        %1087 = vmatpush.msra.mxu0 0.0
        %1088 = vmatpush.msra.mxu0 0.0
        %1089 = vmatpush.msra.mxu0 0.0
        %1090 = vmatpush.msra.mxu0 0.0
        %1091 = vmatpush.msra.mxu0 0.0
        %1092 = vmatpush.msra.mxu0 0.0
        %1093 = vmatpush.msra.mxu0 0.0
        %1094 = vmatpush.msra.mxu0 %v1046
        %1095 = vmatpush.msra.mxu0 %v1042
        %1096 = vmatpush.msra.mxu0 %v1038
        %1097 = vmatmul.f32.gmra.mxu0 %v1049
        %v1098 = vpop.f32.mrf.mxu0
        %v1099 = vadd.f32 0.0, %v1098
        %1100 = vmatmul.f32.gmra.mxu0 %v1051
        %v1101 = vpop.f32.mrf.mxu0
        %v1102 = vadd.f32 0.0, %v1101
        %1103 = vmatmul.f32.gmra.mxu0 %v1053
        %v1104 = vpop.f32.mrf.mxu0
        %v1105 = vadd.f32 0.0, %v1104
        %1106 = vdwg.mxu0
        %1107 = vmatpush.msra.mxu0 0.0
        %1108 = vmatpush.msra.mxu0 0.0
        %1109 = vmatpush.msra.mxu0 0.0
        %1110 = vmatpush.msra.mxu0 0.0
        %1111 = vmatpush.msra.mxu0 0.0
        %1112 = vmatpush.msra.mxu0 0.0
        %1113 = vmatpush.msra.mxu0 0.0
        %1114 = vmatpush.msra.mxu0 0.0
        %1115 = vmatpush.msra.mxu0 0.0
        %1116 = vmatpush.msra.mxu0 0.0
        %1117 = vmatpush.msra.mxu0 0.0
        %1118 = vmatpush.msra.mxu0 0.0
        %1119 = vmatpush.msra.mxu0 0.0
        %1120 = vmatpush.msra.mxu0 %v1047
        %1121 = vmatpush.msra.mxu0 %v1043
        %1122 = vmatpush.msra.mxu0 %v1039
        %1123 = vmatmul.f32.gmra.mxu0 %v1049
        %v1124 = vpop.f32.mrf.mxu0
        %v1125 = vadd.f32 0.0, %v1124
        %1126 = vmatmul.f32.gmra.mxu0 %v1051
        %v1127 = vpop.f32.mrf.mxu0
        %v1128 = vadd.f32 0.0, %v1127
        %1129 = vmatmul.f32.gmra.mxu0 %v1053
        %v1130 = vpop.f32.mrf.mxu0
        %v1131 = vadd.f32 0.0, %v1130
        %1132 = vdwg.mxu0
        %1133 = vmatpush.msra.mxu0 0.0
        %1134 = vmatpush.msra.mxu0 0.0
        %1135 = vmatpush.msra.mxu0 0.0
        %1136 = vmatpush.msra.mxu0 0.0
        %1137 = vmatpush.msra.mxu0 0.0
        %1138 = vmatpush.msra.mxu0 0.0
        %1139 = vmatpush.msra.mxu0 0.0
        %1140 = vmatpush.msra.mxu0 0.0
        %1141 = vmatpush.msra.mxu0 0.0
        %1142 = vmatpush.msra.mxu0 0.0
        %1143 = vmatpush.msra.mxu0 0.0
        %1144 = vmatpush.msra.mxu0 0.0
        %1145 = vmatpush.msra.mxu0 0.0
        %1146 = vmatpush.msra.mxu0 %v1048
        %1147 = vmatpush.msra.mxu0 %v1044
        %1148 = vmatpush.msra.mxu0 %v1040
        %1149 = vmatmul.f32.gmra.mxu0 %v1049
        %v1150 = vpop.f32.mrf.mxu0
        %v1151 = vadd.f32 0.0, %v1150
        %1152 = vmatmul.f32.gmra.mxu0 %v1051
        %v1153 = vpop.f32.mrf.mxu0
        %v1154 = vadd.f32 0.0, %v1153
        %1155 = vmatmul.f32.gmra.mxu0 %v1053
        %v1156 = vpop.f32.mrf.mxu0
        %v1157 = vadd.f32 0.0, %v1156
        %1158 = vdwg.mxu0
        %v1159 = vmax.f32 %v1073, 0.0
        %v1160 = vmax.f32 %v1099, 0.0
        %v1161 = vmax.f32 %v1125, 0.0
        %v1162 = vmax.f32 %v1151, 0.0
        %v1163 = vmax.f32 %v1076, 0.0
        %v1164 = vmax.f32 %v1102, 0.0
        %v1165 = vmax.f32 %v1128, 0.0
        %v1166 = vmax.f32 %v1154, 0.0
        %v1167 = vmax.f32 %v1079, 0.0
        %v1168 = vmax.f32 %v1105, 0.0
        %v1169 = vmax.f32 %v1131, 0.0
        %v1170 = vmax.f32 %v1157, 0.0
        %1171 = vset.pattern.permute.xlu0 26
        %1172 = vperm.xlu0 %1171, %v929
        %v1173 = vpop.permute.xlu0 %1172
        %1175 = vset.pattern.permute.xlu0 26
        %1176 = vperm.xlu0 %1175, %v930
        %v1177 = vpop.permute.xlu0 %1176
        %1179 = vset.pattern.permute.xlu0 26
        %1180 = vperm.xlu0 %1179, %v931
        %v1181 = vpop.permute.xlu0 %1180
        %v1183 = vmul.f32 %v1173, %v1159
        %v1184 = vmul.f32 %v1173, %v1160
        %v1185 = vmul.f32 %v1173, %v1161
        %v1186 = vmul.f32 %v1173, %v1162
        %v1187 = vmul.f32 %v1177, %v1163
        %v1188 = vmul.f32 %v1177, %v1164
        %v1189 = vmul.f32 %v1177, %v1165
        %v1190 = vmul.f32 %v1177, %v1166
        %v1191 = vmul.f32 %v1181, %v1167
        %v1192 = vmul.f32 %v1181, %v1168
        %v1193 = vmul.f32 %v1181, %v1169
        %v1194 = vmul.f32 %v1181, %v1170
        %v1195 = vadd.f32 %v1183, %v1187
        %v1196 = vadd.f32 %v1195, %v1191
        %v1197 = vrot.slane %v1196, 4
        %v1198 = vadd.f32 %v1196, %v1197
        %v1199 = vrot.slane %v1198, 2
        %v1200 = vadd.f32 %v1198, %v1199
        %v1201 = vrot.slane %v1200, 1
        %v1202 = vadd.f32 %v1200, %v1201
        %v1203 = vadd.f32 %v1184, %v1188
        %v1204 = vadd.f32 %v1203, %v1192
        %v1205 = vrot.slane %v1204, 4
        %v1206 = vadd.f32 %v1204, %v1205
        %v1207 = vrot.slane %v1206, 2
        %v1208 = vadd.f32 %v1206, %v1207
        %v1209 = vrot.slane %v1208, 1
        %v1210 = vadd.f32 %v1208, %v1209
        %v1211 = vadd.f32 %v1185, %v1189
        %v1212 = vadd.f32 %v1211, %v1193
        %v1213 = vrot.slane %v1212, 4
        %v1214 = vadd.f32 %v1212, %v1213
        %v1215 = vrot.slane %v1214, 2
        %v1216 = vadd.f32 %v1214, %v1215
        %v1217 = vrot.slane %v1216, 1
        %v1218 = vadd.f32 %v1216, %v1217
        %v1219 = vadd.f32 %v1186, %v1190
        %v1220 = vadd.f32 %v1219, %v1194
        %v1221 = vrot.slane %v1220, 4
        %v1222 = vadd.f32 %v1220, %v1221
        %v1223 = vrot.slane %v1222, 2
        %v1224 = vadd.f32 %v1222, %v1223
        %v1225 = vrot.slane %v1224, 1
        %v1226 = vadd.f32 %v1224, %v1225
        %1227 = vset.pattern.permute.xlu0 27
        %1228 = vperm.xlu0 %1227, %v929
        %v1229 = vpop.permute.xlu0 %1228
        %1231 = vset.pattern.permute.xlu0 27
        %1232 = vperm.xlu0 %1231, %v930
        %v1233 = vpop.permute.xlu0 %1232
        %1235 = vset.pattern.permute.xlu0 27
        %1236 = vperm.xlu0 %1235, %v931
        %v1237 = vpop.permute.xlu0 %1236
        %v1239 = vmul.f32 %v1229, %v1159
        %v1240 = vmul.f32 %v1229, %v1160
        %v1241 = vmul.f32 %v1229, %v1161
        %v1242 = vmul.f32 %v1229, %v1162
        %v1243 = vmul.f32 %v1233, %v1163
        %v1244 = vmul.f32 %v1233, %v1164
        %v1245 = vmul.f32 %v1233, %v1165
        %v1246 = vmul.f32 %v1233, %v1166
        %v1247 = vmul.f32 %v1237, %v1167
        %v1248 = vmul.f32 %v1237, %v1168
        %v1249 = vmul.f32 %v1237, %v1169
        %v1250 = vmul.f32 %v1237, %v1170
        %v1251 = vadd.f32 %v1239, %v1243
        %v1252 = vadd.f32 %v1251, %v1247
        %v1253 = vrot.slane %v1252, 4
        %v1254 = vadd.f32 %v1252, %v1253
        %v1255 = vrot.slane %v1254, 2
        %v1256 = vadd.f32 %v1254, %v1255
        %v1257 = vrot.slane %v1256, 1
        %v1258 = vadd.f32 %v1256, %v1257
        %v1259 = vadd.f32 %v1240, %v1244
        %v1260 = vadd.f32 %v1259, %v1248
        %v1261 = vrot.slane %v1260, 4
        %v1262 = vadd.f32 %v1260, %v1261
        %v1263 = vrot.slane %v1262, 2
        %v1264 = vadd.f32 %v1262, %v1263
        %v1265 = vrot.slane %v1264, 1
        %v1266 = vadd.f32 %v1264, %v1265
        %v1267 = vadd.f32 %v1241, %v1245
        %v1268 = vadd.f32 %v1267, %v1249
        %v1269 = vrot.slane %v1268, 4
        %v1270 = vadd.f32 %v1268, %v1269
        %v1271 = vrot.slane %v1270, 2
        %v1272 = vadd.f32 %v1270, %v1271
        %v1273 = vrot.slane %v1272, 1
        %v1274 = vadd.f32 %v1272, %v1273
        %v1275 = vadd.f32 %v1242, %v1246
        %v1276 = vadd.f32 %v1275, %v1250
        %v1277 = vrot.slane %v1276, 4
        %v1278 = vadd.f32 %v1276, %v1277
        %v1279 = vrot.slane %v1278, 2
        %v1280 = vadd.f32 %v1278, %v1279
        %v1281 = vrot.slane %v1280, 1
        %v1282 = vadd.f32 %v1280, %v1281
        %v1287 = vrot.slane %v1210, 7
        %v1288 = vrot.slane %v1218, 6
        %v1289 = vrot.slane %v1226, 5
        %v1290 = vsel %vm529, %v1202, %v1287
        %v1291 = vsel %vm531, %v1288, %v1289
        %v1292 = vsel %vm533, %v1290, %v1291
        %v1294 = vadd.f32 %v915, %v1292
        %v1299 = vrot.slane %v1266, 7
        %v1300 = vrot.slane %v1274, 6
        %v1301 = vrot.slane %v1282, 5
        %v1302 = vsel %vm529, %v1258, %v1299
        %v1303 = vsel %vm531, %v1300, %v1301
        %v1304 = vsel %vm533, %v1302, %v1303
        %v1306 = vadd.f32 %v927, %v1304
        %s1307 = scalar_lea.vmem [#allocation2], 72
        %v1308 = vld [vmem:[%s1307] sm:$0xff]
        %v1309 = vld [vmem:[%s1307 + $0x8] sm:$0xff]
        %v1310 = vld [vmem:[%s1307 + $0x10] sm:$0xff]
        %1312 = vset.pattern.permute.xlu0 24
        %1313 = vperm.xlu0 %1312, %v1308
        %v1314 = vpop.permute.xlu0 %1313
        %1317 = vset.pattern.permute.xlu0 24
        %1318 = vperm.xlu0 %1317, %v1309
        %v1319 = vpop.permute.xlu0 %1318
        %1322 = vset.pattern.permute.xlu0 24
        %1323 = vperm.xlu0 %1322, %v1310
        %v1324 = vpop.permute.xlu0 %1323
        %v1327 = vperm.slane %v1294, 0
        %v1328 = vperm.slane %v1294, 1
        %v1329 = vperm.slane %v1294, 2
        %v1330 = vperm.slane %v1294, 3
        %v1335 = vmul.f32 %v1314, %v1327
        %v1336 = vmul.f32 %v1314, %v1328
        %v1337 = vmul.f32 %v1314, %v1329
        %v1338 = vmul.f32 %v1314, %v1330
        %v1339 = vmul.f32 %v1319, %v1327
        %v1340 = vmul.f32 %v1319, %v1328
        %v1341 = vmul.f32 %v1319, %v1329
        %v1342 = vmul.f32 %v1319, %v1330
        %v1343 = vmul.f32 %v1324, %v1327
        %v1344 = vmul.f32 %v1324, %v1328
        %v1345 = vmul.f32 %v1324, %v1329
        %v1346 = vmul.f32 %v1324, %v1330
        %1347 = vset.pattern.permute.xlu0 25
        %1348 = vperm.xlu0 %1347, %v1308
        %v1349 = vpop.permute.xlu0 %1348
        %1351 = vset.pattern.permute.xlu0 25
        %1352 = vperm.xlu0 %1351, %v1309
        %v1353 = vpop.permute.xlu0 %1352
        %1355 = vset.pattern.permute.xlu0 25
        %1356 = vperm.xlu0 %1355, %v1310
        %v1357 = vpop.permute.xlu0 %1356
        %v1360 = vperm.slane %v1306, 0
        %v1361 = vperm.slane %v1306, 1
        %v1362 = vperm.slane %v1306, 2
        %v1363 = vperm.slane %v1306, 3
        %v1368 = vmul.f32 %v1349, %v1360
        %v1369 = vmul.f32 %v1349, %v1361
        %v1370 = vmul.f32 %v1349, %v1362
        %v1371 = vmul.f32 %v1349, %v1363
        %v1372 = vmul.f32 %v1353, %v1360
        %v1373 = vmul.f32 %v1353, %v1361
        %v1374 = vmul.f32 %v1353, %v1362
        %v1375 = vmul.f32 %v1353, %v1363
        %v1376 = vmul.f32 %v1357, %v1360
        %v1377 = vmul.f32 %v1357, %v1361
        %v1378 = vmul.f32 %v1357, %v1362
        %v1379 = vmul.f32 %v1357, %v1363
        %v1380 = vadd.f32 %v1335, %v1368
        %v1381 = vadd.f32 %v1336, %v1369
        %v1382 = vadd.f32 %v1337, %v1370
        %v1383 = vadd.f32 %v1338, %v1371
        %v1384 = vadd.f32 %v1339, %v1372
        %v1385 = vadd.f32 %v1340, %v1373
        %v1386 = vadd.f32 %v1341, %v1374
        %v1387 = vadd.f32 %v1342, %v1375
        %v1388 = vadd.f32 %v1343, %v1376
        %v1389 = vadd.f32 %v1344, %v1377
        %v1390 = vadd.f32 %v1345, %v1378
        %v1391 = vadd.f32 %v1346, %v1379
        %1392 = vset.pattern.permute.xlu0 28
        %1393 = vperm.xlu0 %1392, %v1308
        %v1394 = vpop.permute.xlu0 %1393
        %1396 = vset.pattern.permute.xlu0 28
        %1397 = vperm.xlu0 %1396, %v1309
        %v1398 = vpop.permute.xlu0 %1397
        %1400 = vset.pattern.permute.xlu0 28
        %1401 = vperm.xlu0 %1400, %v1310
        %v1402 = vpop.permute.xlu0 %1401
        %v1404 = vadd.f32 %v1380, %v1394
        %v1405 = vadd.f32 %v1381, %v1394
        %v1406 = vadd.f32 %v1382, %v1394
        %v1407 = vadd.f32 %v1383, %v1394
        %v1408 = vadd.f32 %v1384, %v1398
        %v1409 = vadd.f32 %v1385, %v1398
        %v1410 = vadd.f32 %v1386, %v1398
        %v1411 = vadd.f32 %v1387, %v1398
        %v1412 = vadd.f32 %v1388, %v1402
        %v1413 = vadd.f32 %v1389, %v1402
        %v1414 = vadd.f32 %v1390, %v1402
        %v1415 = vadd.f32 %v1391, %v1402
        %v1416 = vmax.f32 %v1404, 0.0
        %v1417 = vmax.f32 %v1405, 0.0
        %v1418 = vmax.f32 %v1406, 0.0
        %v1419 = vmax.f32 %v1407, 0.0
        %v1420 = vmax.f32 %v1408, 0.0
        %v1421 = vmax.f32 %v1409, 0.0
        %v1422 = vmax.f32 %v1410, 0.0
        %v1423 = vmax.f32 %v1411, 0.0
        %v1424 = vmax.f32 %v1412, 0.0
        %v1425 = vmax.f32 %v1413, 0.0
        %v1426 = vmax.f32 %v1414, 0.0
        %v1427 = vmax.f32 %v1415, 0.0
        %v1428 = vsel %vm287, %v1308, 0
        %v1430 = vsel %vm287, %v1309, 0
        %v1432 = vsel %vm287, %v1310, 0
        %1434 = vmatpush.msra.mxu0 0.0
        %1435 = vmatpush.msra.mxu0 0.0
        %1436 = vmatpush.msra.mxu0 0.0
        %1437 = vmatpush.msra.mxu0 0.0
        %1438 = vmatpush.msra.mxu0 0.0
        %1439 = vmatpush.msra.mxu0 0.0
        %1440 = vmatpush.msra.mxu0 0.0
        %1441 = vmatpush.msra.mxu0 0.0
        %1442 = vmatpush.msra.mxu0 0.0
        %1443 = vmatpush.msra.mxu0 0.0
        %1444 = vmatpush.msra.mxu0 0.0
        %1445 = vmatpush.msra.mxu0 0.0
        %1446 = vmatpush.msra.mxu0 0.0
        %1447 = vmatpush.msra.mxu0 %v1424
        %1448 = vmatpush.msra.mxu0 %v1420
        %1449 = vmatpush.msra.mxu0 %v1416
        %1450 = vmatmul.f32.gmra.mxu0 %v1428
        %v1451 = vpop.f32.mrf.mxu0
        %v1452 = vadd.f32 0.0, %v1451
        %1453 = vmatmul.f32.gmra.mxu0 %v1430
        %v1454 = vpop.f32.mrf.mxu0
        %v1455 = vadd.f32 0.0, %v1454
        %1456 = vmatmul.f32.gmra.mxu0 %v1432
        %v1457 = vpop.f32.mrf.mxu0
        %v1458 = vadd.f32 0.0, %v1457
        %1459 = vdwg.mxu0
        %1460 = vmatpush.msra.mxu0 0.0
        %1461 = vmatpush.msra.mxu0 0.0
        %1462 = vmatpush.msra.mxu0 0.0
        %1463 = vmatpush.msra.mxu0 0.0
        %1464 = vmatpush.msra.mxu0 0.0
        %1465 = vmatpush.msra.mxu0 0.0
        %1466 = vmatpush.msra.mxu0 0.0
        %1467 = vmatpush.msra.mxu0 0.0
        %1468 = vmatpush.msra.mxu0 0.0
        %1469 = vmatpush.msra.mxu0 0.0
        %1470 = vmatpush.msra.mxu0 0.0
        %1471 = vmatpush.msra.mxu0 0.0
        %1472 = vmatpush.msra.mxu0 0.0
        %1473 = vmatpush.msra.mxu0 %v1425
        %1474 = vmatpush.msra.mxu0 %v1421
        %1475 = vmatpush.msra.mxu0 %v1417
        %1476 = vmatmul.f32.gmra.mxu0 %v1428
        %v1477 = vpop.f32.mrf.mxu0
        %v1478 = vadd.f32 0.0, %v1477
        %1479 = vmatmul.f32.gmra.mxu0 %v1430
        %v1480 = vpop.f32.mrf.mxu0
        %v1481 = vadd.f32 0.0, %v1480
        %1482 = vmatmul.f32.gmra.mxu0 %v1432
        %v1483 = vpop.f32.mrf.mxu0
        %v1484 = vadd.f32 0.0, %v1483
        %1485 = vdwg.mxu0
        %1486 = vmatpush.msra.mxu0 0.0
        %1487 = vmatpush.msra.mxu0 0.0
        %1488 = vmatpush.msra.mxu0 0.0
        %1489 = vmatpush.msra.mxu0 0.0
        %1490 = vmatpush.msra.mxu0 0.0
        %1491 = vmatpush.msra.mxu0 0.0
        %1492 = vmatpush.msra.mxu0 0.0
        %1493 = vmatpush.msra.mxu0 0.0
        %1494 = vmatpush.msra.mxu0 0.0
        %1495 = vmatpush.msra.mxu0 0.0
        %1496 = vmatpush.msra.mxu0 0.0
        %1497 = vmatpush.msra.mxu0 0.0
        %1498 = vmatpush.msra.mxu0 0.0
        %1499 = vmatpush.msra.mxu0 %v1426
        %1500 = vmatpush.msra.mxu0 %v1422
        %1501 = vmatpush.msra.mxu0 %v1418
        %1502 = vmatmul.f32.gmra.mxu0 %v1428
        %v1503 = vpop.f32.mrf.mxu0
        %v1504 = vadd.f32 0.0, %v1503
        %1505 = vmatmul.f32.gmra.mxu0 %v1430
        %v1506 = vpop.f32.mrf.mxu0
        %v1507 = vadd.f32 0.0, %v1506
        %1508 = vmatmul.f32.gmra.mxu0 %v1432
        %v1509 = vpop.f32.mrf.mxu0
        %v1510 = vadd.f32 0.0, %v1509
        %1511 = vdwg.mxu0
        %1512 = vmatpush.msra.mxu0 0.0
        %1513 = vmatpush.msra.mxu0 0.0
        %1514 = vmatpush.msra.mxu0 0.0
        %1515 = vmatpush.msra.mxu0 0.0
        %1516 = vmatpush.msra.mxu0 0.0
        %1517 = vmatpush.msra.mxu0 0.0
        %1518 = vmatpush.msra.mxu0 0.0
        %1519 = vmatpush.msra.mxu0 0.0
        %1520 = vmatpush.msra.mxu0 0.0
        %1521 = vmatpush.msra.mxu0 0.0
        %1522 = vmatpush.msra.mxu0 0.0
        %1523 = vmatpush.msra.mxu0 0.0
        %1524 = vmatpush.msra.mxu0 0.0
        %1525 = vmatpush.msra.mxu0 %v1427
        %1526 = vmatpush.msra.mxu0 %v1423
        %1527 = vmatpush.msra.mxu0 %v1419
        %1528 = vmatmul.f32.gmra.mxu0 %v1428
        %v1529 = vpop.f32.mrf.mxu0
        %v1530 = vadd.f32 0.0, %v1529
        %1531 = vmatmul.f32.gmra.mxu0 %v1430
        %v1532 = vpop.f32.mrf.mxu0
        %v1533 = vadd.f32 0.0, %v1532
        %1534 = vmatmul.f32.gmra.mxu0 %v1432
        %v1535 = vpop.f32.mrf.mxu0
        %v1536 = vadd.f32 0.0, %v1535
        %1537 = vdwg.mxu0
        %v1538 = vmax.f32 %v1452, 0.0
        %v1539 = vmax.f32 %v1478, 0.0
        %v1540 = vmax.f32 %v1504, 0.0
        %v1541 = vmax.f32 %v1530, 0.0
        %v1542 = vmax.f32 %v1455, 0.0
        %v1543 = vmax.f32 %v1481, 0.0
        %v1544 = vmax.f32 %v1507, 0.0
        %v1545 = vmax.f32 %v1533, 0.0
        %v1546 = vmax.f32 %v1458, 0.0
        %v1547 = vmax.f32 %v1484, 0.0
        %v1548 = vmax.f32 %v1510, 0.0
        %v1549 = vmax.f32 %v1536, 0.0
        %1550 = vset.pattern.permute.xlu0 26
        %1551 = vperm.xlu0 %1550, %v1308
        %v1552 = vpop.permute.xlu0 %1551
        %1554 = vset.pattern.permute.xlu0 26
        %1555 = vperm.xlu0 %1554, %v1309
        %v1556 = vpop.permute.xlu0 %1555
        %1558 = vset.pattern.permute.xlu0 26
        %1559 = vperm.xlu0 %1558, %v1310
        %v1560 = vpop.permute.xlu0 %1559
        %v1562 = vmul.f32 %v1552, %v1538
        %v1563 = vmul.f32 %v1552, %v1539
        %v1564 = vmul.f32 %v1552, %v1540
        %v1565 = vmul.f32 %v1552, %v1541
        %v1566 = vmul.f32 %v1556, %v1542
        %v1567 = vmul.f32 %v1556, %v1543
        %v1568 = vmul.f32 %v1556, %v1544
        %v1569 = vmul.f32 %v1556, %v1545
        %v1570 = vmul.f32 %v1560, %v1546
        %v1571 = vmul.f32 %v1560, %v1547
        %v1572 = vmul.f32 %v1560, %v1548
        %v1573 = vmul.f32 %v1560, %v1549
        %v1574 = vadd.f32 %v1562, %v1566
        %v1575 = vadd.f32 %v1574, %v1570
        %v1576 = vrot.slane %v1575, 4
        %v1577 = vadd.f32 %v1575, %v1576
        %v1578 = vrot.slane %v1577, 2
        %v1579 = vadd.f32 %v1577, %v1578
        %v1580 = vrot.slane %v1579, 1
        %v1581 = vadd.f32 %v1579, %v1580
        %v1582 = vadd.f32 %v1563, %v1567
        %v1583 = vadd.f32 %v1582, %v1571
        %v1584 = vrot.slane %v1583, 4
        %v1585 = vadd.f32 %v1583, %v1584
        %v1586 = vrot.slane %v1585, 2
        %v1587 = vadd.f32 %v1585, %v1586
        %v1588 = vrot.slane %v1587, 1
        %v1589 = vadd.f32 %v1587, %v1588
        %v1590 = vadd.f32 %v1564, %v1568
        %v1591 = vadd.f32 %v1590, %v1572
        %v1592 = vrot.slane %v1591, 4
        %v1593 = vadd.f32 %v1591, %v1592
        %v1594 = vrot.slane %v1593, 2
        %v1595 = vadd.f32 %v1593, %v1594
        %v1596 = vrot.slane %v1595, 1
        %v1597 = vadd.f32 %v1595, %v1596
        %v1598 = vadd.f32 %v1565, %v1569
        %v1599 = vadd.f32 %v1598, %v1573
        %v1600 = vrot.slane %v1599, 4
        %v1601 = vadd.f32 %v1599, %v1600
        %v1602 = vrot.slane %v1601, 2
        %v1603 = vadd.f32 %v1601, %v1602
        %v1604 = vrot.slane %v1603, 1
        %v1605 = vadd.f32 %v1603, %v1604
        %1606 = vset.pattern.permute.xlu0 27
        %1607 = vperm.xlu0 %1606, %v1308
        %v1608 = vpop.permute.xlu0 %1607
        %1610 = vset.pattern.permute.xlu0 27
        %1611 = vperm.xlu0 %1610, %v1309
        %v1612 = vpop.permute.xlu0 %1611
        %1614 = vset.pattern.permute.xlu0 27
        %1615 = vperm.xlu0 %1614, %v1310
        %v1616 = vpop.permute.xlu0 %1615
        %v1618 = vmul.f32 %v1608, %v1538
        %v1619 = vmul.f32 %v1608, %v1539
        %v1620 = vmul.f32 %v1608, %v1540
        %v1621 = vmul.f32 %v1608, %v1541
        %v1622 = vmul.f32 %v1612, %v1542
        %v1623 = vmul.f32 %v1612, %v1543
        %v1624 = vmul.f32 %v1612, %v1544
        %v1625 = vmul.f32 %v1612, %v1545
        %v1626 = vmul.f32 %v1616, %v1546
        %v1627 = vmul.f32 %v1616, %v1547
        %v1628 = vmul.f32 %v1616, %v1548
        %v1629 = vmul.f32 %v1616, %v1549
        %v1630 = vadd.f32 %v1618, %v1622
        %v1631 = vadd.f32 %v1630, %v1626
        %v1632 = vrot.slane %v1631, 4
        %v1633 = vadd.f32 %v1631, %v1632
        %v1634 = vrot.slane %v1633, 2
        %v1635 = vadd.f32 %v1633, %v1634
        %v1636 = vrot.slane %v1635, 1
        %v1637 = vadd.f32 %v1635, %v1636
        %v1638 = vadd.f32 %v1619, %v1623
        %v1639 = vadd.f32 %v1638, %v1627
        %v1640 = vrot.slane %v1639, 4
        %v1641 = vadd.f32 %v1639, %v1640
        %v1642 = vrot.slane %v1641, 2
        %v1643 = vadd.f32 %v1641, %v1642
        %v1644 = vrot.slane %v1643, 1
        %v1645 = vadd.f32 %v1643, %v1644
        %v1646 = vadd.f32 %v1620, %v1624
        %v1647 = vadd.f32 %v1646, %v1628
        %v1648 = vrot.slane %v1647, 4
        %v1649 = vadd.f32 %v1647, %v1648
        %v1650 = vrot.slane %v1649, 2
        %v1651 = vadd.f32 %v1649, %v1650
        %v1652 = vrot.slane %v1651, 1
        %v1653 = vadd.f32 %v1651, %v1652
        %v1654 = vadd.f32 %v1621, %v1625
        %v1655 = vadd.f32 %v1654, %v1629
        %v1656 = vrot.slane %v1655, 4
        %v1657 = vadd.f32 %v1655, %v1656
        %v1658 = vrot.slane %v1657, 2
        %v1659 = vadd.f32 %v1657, %v1658
        %v1660 = vrot.slane %v1659, 1
        %v1661 = vadd.f32 %v1659, %v1660
        %v1666 = vrot.slane %v1589, 7
        %v1667 = vrot.slane %v1597, 6
        %v1668 = vrot.slane %v1605, 5
        %v1669 = vsel %vm529, %v1581, %v1666
        %v1670 = vsel %vm531, %v1667, %v1668
        %v1671 = vsel %vm533, %v1669, %v1670
        %v1673 = vadd.f32 %v1294, %v1671
        %v1678 = vrot.slane %v1645, 7
        %v1679 = vrot.slane %v1653, 6
        %v1680 = vrot.slane %v1661, 5
        %v1681 = vsel %vm529, %v1637, %v1678
        %v1682 = vsel %vm531, %v1679, %v1680
        %v1683 = vsel %vm533, %v1681, %v1682
        %v1685 = vadd.f32 %v1306, %v1683
        %s1686 = scalar_lea.vmem [#allocation2], 96
        %v1687 = vld [vmem:[%s1686] sm:$0xff]
        %v1688 = vld [vmem:[%s1686 + $0x8] sm:$0xff]
        %v1689 = vld [vmem:[%s1686 + $0x10] sm:$0xff]
        %1691 = vset.pattern.permute.xlu0 24
        %1692 = vperm.xlu0 %1691, %v1687
        %v1693 = vpop.permute.xlu0 %1692
        %1696 = vset.pattern.permute.xlu0 24
        %1697 = vperm.xlu0 %1696, %v1688
        %v1698 = vpop.permute.xlu0 %1697
        %1701 = vset.pattern.permute.xlu0 24
        %1702 = vperm.xlu0 %1701, %v1689
        %v1703 = vpop.permute.xlu0 %1702
        %v1706 = vperm.slane %v1673, 0
        %v1707 = vperm.slane %v1673, 1
        %v1708 = vperm.slane %v1673, 2
        %v1709 = vperm.slane %v1673, 3
        %v1714 = vmul.f32 %v1693, %v1706
        %v1715 = vmul.f32 %v1693, %v1707
        %v1716 = vmul.f32 %v1693, %v1708
        %v1717 = vmul.f32 %v1693, %v1709
        %v1718 = vmul.f32 %v1698, %v1706
        %v1719 = vmul.f32 %v1698, %v1707
        %v1720 = vmul.f32 %v1698, %v1708
        %v1721 = vmul.f32 %v1698, %v1709
        %v1722 = vmul.f32 %v1703, %v1706
        %v1723 = vmul.f32 %v1703, %v1707
        %v1724 = vmul.f32 %v1703, %v1708
        %v1725 = vmul.f32 %v1703, %v1709
        %1726 = vset.pattern.permute.xlu0 25
        %1727 = vperm.xlu0 %1726, %v1687
        %v1728 = vpop.permute.xlu0 %1727
        %1730 = vset.pattern.permute.xlu0 25
        %1731 = vperm.xlu0 %1730, %v1688
        %v1732 = vpop.permute.xlu0 %1731
        %1734 = vset.pattern.permute.xlu0 25
        %1735 = vperm.xlu0 %1734, %v1689
        %v1736 = vpop.permute.xlu0 %1735
        %v1739 = vperm.slane %v1685, 0
        %v1740 = vperm.slane %v1685, 1
        %v1741 = vperm.slane %v1685, 2
        %v1742 = vperm.slane %v1685, 3
        %v1747 = vmul.f32 %v1728, %v1739
        %v1748 = vmul.f32 %v1728, %v1740
        %v1749 = vmul.f32 %v1728, %v1741
        %v1750 = vmul.f32 %v1728, %v1742
        %v1751 = vmul.f32 %v1732, %v1739
        %v1752 = vmul.f32 %v1732, %v1740
        %v1753 = vmul.f32 %v1732, %v1741
        %v1754 = vmul.f32 %v1732, %v1742
        %v1755 = vmul.f32 %v1736, %v1739
        %v1756 = vmul.f32 %v1736, %v1740
        %v1757 = vmul.f32 %v1736, %v1741
        %v1758 = vmul.f32 %v1736, %v1742
        %v1759 = vadd.f32 %v1714, %v1747
        %v1760 = vadd.f32 %v1715, %v1748
        %v1761 = vadd.f32 %v1716, %v1749
        %v1762 = vadd.f32 %v1717, %v1750
        %v1763 = vadd.f32 %v1718, %v1751
        %v1764 = vadd.f32 %v1719, %v1752
        %v1765 = vadd.f32 %v1720, %v1753
        %v1766 = vadd.f32 %v1721, %v1754
        %v1767 = vadd.f32 %v1722, %v1755
        %v1768 = vadd.f32 %v1723, %v1756
        %v1769 = vadd.f32 %v1724, %v1757
        %v1770 = vadd.f32 %v1725, %v1758
        %1771 = vset.pattern.permute.xlu0 28
        %1772 = vperm.xlu0 %1771, %v1687
        %v1773 = vpop.permute.xlu0 %1772
        %1775 = vset.pattern.permute.xlu0 28
        %1776 = vperm.xlu0 %1775, %v1688
        %v1777 = vpop.permute.xlu0 %1776
        %1779 = vset.pattern.permute.xlu0 28
        %1780 = vperm.xlu0 %1779, %v1689
        %v1781 = vpop.permute.xlu0 %1780
        %v1783 = vadd.f32 %v1759, %v1773
        %v1784 = vadd.f32 %v1760, %v1773
        %v1785 = vadd.f32 %v1761, %v1773
        %v1786 = vadd.f32 %v1762, %v1773
        %v1787 = vadd.f32 %v1763, %v1777
        %v1788 = vadd.f32 %v1764, %v1777
        %v1789 = vadd.f32 %v1765, %v1777
        %v1790 = vadd.f32 %v1766, %v1777
        %v1791 = vadd.f32 %v1767, %v1781
        %v1792 = vadd.f32 %v1768, %v1781
        %v1793 = vadd.f32 %v1769, %v1781
        %v1794 = vadd.f32 %v1770, %v1781
        %v1795 = vmax.f32 %v1783, 0.0
        %v1796 = vmax.f32 %v1784, 0.0
        %v1797 = vmax.f32 %v1785, 0.0
        %v1798 = vmax.f32 %v1786, 0.0
        %v1799 = vmax.f32 %v1787, 0.0
        %v1800 = vmax.f32 %v1788, 0.0
        %v1801 = vmax.f32 %v1789, 0.0
        %v1802 = vmax.f32 %v1790, 0.0
        %v1803 = vmax.f32 %v1791, 0.0
        %v1804 = vmax.f32 %v1792, 0.0
        %v1805 = vmax.f32 %v1793, 0.0
        %v1806 = vmax.f32 %v1794, 0.0
        %v1807 = vsel %vm287, %v1687, 0
        %v1809 = vsel %vm287, %v1688, 0
        %v1811 = vsel %vm287, %v1689, 0
        %1813 = vmatpush.msra.mxu0 0.0
        %1814 = vmatpush.msra.mxu0 0.0
        %1815 = vmatpush.msra.mxu0 0.0
        %1816 = vmatpush.msra.mxu0 0.0
        %1817 = vmatpush.msra.mxu0 0.0
        %1818 = vmatpush.msra.mxu0 0.0
        %1819 = vmatpush.msra.mxu0 0.0
        %1820 = vmatpush.msra.mxu0 0.0
        %1821 = vmatpush.msra.mxu0 0.0
        %1822 = vmatpush.msra.mxu0 0.0
        %1823 = vmatpush.msra.mxu0 0.0
        %1824 = vmatpush.msra.mxu0 0.0
        %1825 = vmatpush.msra.mxu0 0.0
        %1826 = vmatpush.msra.mxu0 %v1803
        %1827 = vmatpush.msra.mxu0 %v1799
        %1828 = vmatpush.msra.mxu0 %v1795
        %1829 = vmatmul.f32.gmra.mxu0 %v1807
        %v1830 = vpop.f32.mrf.mxu0
        %v1831 = vadd.f32 0.0, %v1830
        %1832 = vmatmul.f32.gmra.mxu0 %v1809
        %v1833 = vpop.f32.mrf.mxu0
        %v1834 = vadd.f32 0.0, %v1833
        %1835 = vmatmul.f32.gmra.mxu0 %v1811
        %v1836 = vpop.f32.mrf.mxu0
        %v1837 = vadd.f32 0.0, %v1836
        %1838 = vdwg.mxu0
        %1839 = vmatpush.msra.mxu0 0.0
        %1840 = vmatpush.msra.mxu0 0.0
        %1841 = vmatpush.msra.mxu0 0.0
        %1842 = vmatpush.msra.mxu0 0.0
        %1843 = vmatpush.msra.mxu0 0.0
        %1844 = vmatpush.msra.mxu0 0.0
        %1845 = vmatpush.msra.mxu0 0.0
        %1846 = vmatpush.msra.mxu0 0.0
        %1847 = vmatpush.msra.mxu0 0.0
        %1848 = vmatpush.msra.mxu0 0.0
        %1849 = vmatpush.msra.mxu0 0.0
        %1850 = vmatpush.msra.mxu0 0.0
        %1851 = vmatpush.msra.mxu0 0.0
        %1852 = vmatpush.msra.mxu0 %v1804
        %1853 = vmatpush.msra.mxu0 %v1800
        %1854 = vmatpush.msra.mxu0 %v1796
        %1855 = vmatmul.f32.gmra.mxu0 %v1807
        %v1856 = vpop.f32.mrf.mxu0
        %v1857 = vadd.f32 0.0, %v1856
        %1858 = vmatmul.f32.gmra.mxu0 %v1809
        %v1859 = vpop.f32.mrf.mxu0
        %v1860 = vadd.f32 0.0, %v1859
        %1861 = vmatmul.f32.gmra.mxu0 %v1811
        %v1862 = vpop.f32.mrf.mxu0
        %v1863 = vadd.f32 0.0, %v1862
        %1864 = vdwg.mxu0
        %1865 = vmatpush.msra.mxu0 0.0
        %1866 = vmatpush.msra.mxu0 0.0
        %1867 = vmatpush.msra.mxu0 0.0
        %1868 = vmatpush.msra.mxu0 0.0
        %1869 = vmatpush.msra.mxu0 0.0
        %1870 = vmatpush.msra.mxu0 0.0
        %1871 = vmatpush.msra.mxu0 0.0
        %1872 = vmatpush.msra.mxu0 0.0
        %1873 = vmatpush.msra.mxu0 0.0
        %1874 = vmatpush.msra.mxu0 0.0
        %1875 = vmatpush.msra.mxu0 0.0
        %1876 = vmatpush.msra.mxu0 0.0
        %1877 = vmatpush.msra.mxu0 0.0
        %1878 = vmatpush.msra.mxu0 %v1805
        %1879 = vmatpush.msra.mxu0 %v1801
        %1880 = vmatpush.msra.mxu0 %v1797
        %1881 = vmatmul.f32.gmra.mxu0 %v1807
        %v1882 = vpop.f32.mrf.mxu0
        %v1883 = vadd.f32 0.0, %v1882
        %1884 = vmatmul.f32.gmra.mxu0 %v1809
        %v1885 = vpop.f32.mrf.mxu0
        %v1886 = vadd.f32 0.0, %v1885
        %1887 = vmatmul.f32.gmra.mxu0 %v1811
        %v1888 = vpop.f32.mrf.mxu0
        %v1889 = vadd.f32 0.0, %v1888
        %1890 = vdwg.mxu0
        %1891 = vmatpush.msra.mxu0 0.0
        %1892 = vmatpush.msra.mxu0 0.0
        %1893 = vmatpush.msra.mxu0 0.0
        %1894 = vmatpush.msra.mxu0 0.0
        %1895 = vmatpush.msra.mxu0 0.0
        %1896 = vmatpush.msra.mxu0 0.0
        %1897 = vmatpush.msra.mxu0 0.0
        %1898 = vmatpush.msra.mxu0 0.0
        %1899 = vmatpush.msra.mxu0 0.0
        %1900 = vmatpush.msra.mxu0 0.0
        %1901 = vmatpush.msra.mxu0 0.0
        %1902 = vmatpush.msra.mxu0 0.0
        %1903 = vmatpush.msra.mxu0 0.0
        %1904 = vmatpush.msra.mxu0 %v1806
        %1905 = vmatpush.msra.mxu0 %v1802
        %1906 = vmatpush.msra.mxu0 %v1798
        %1907 = vmatmul.f32.gmra.mxu0 %v1807
        %v1908 = vpop.f32.mrf.mxu0
        %v1909 = vadd.f32 0.0, %v1908
        %1910 = vmatmul.f32.gmra.mxu0 %v1809
        %v1911 = vpop.f32.mrf.mxu0
        %v1912 = vadd.f32 0.0, %v1911
        %1913 = vmatmul.f32.gmra.mxu0 %v1811
        %v1914 = vpop.f32.mrf.mxu0
        %v1915 = vadd.f32 0.0, %v1914
        %1916 = vdwg.mxu0
        %v1917 = vmax.f32 %v1831, 0.0
        %v1918 = vmax.f32 %v1857, 0.0
        %v1919 = vmax.f32 %v1883, 0.0
        %v1920 = vmax.f32 %v1909, 0.0
        %v1921 = vmax.f32 %v1834, 0.0
        %v1922 = vmax.f32 %v1860, 0.0
        %v1923 = vmax.f32 %v1886, 0.0
        %v1924 = vmax.f32 %v1912, 0.0
        %v1925 = vmax.f32 %v1837, 0.0
        %v1926 = vmax.f32 %v1863, 0.0
        %v1927 = vmax.f32 %v1889, 0.0
        %v1928 = vmax.f32 %v1915, 0.0
        %1929 = vset.pattern.permute.xlu0 26
        %1930 = vperm.xlu0 %1929, %v1687
        %v1931 = vpop.permute.xlu0 %1930
        %1933 = vset.pattern.permute.xlu0 26
        %1934 = vperm.xlu0 %1933, %v1688
        %v1935 = vpop.permute.xlu0 %1934
        %1937 = vset.pattern.permute.xlu0 26
        %1938 = vperm.xlu0 %1937, %v1689
        %v1939 = vpop.permute.xlu0 %1938
        %v1941 = vmul.f32 %v1931, %v1917
        %v1942 = vmul.f32 %v1931, %v1918
        %v1943 = vmul.f32 %v1931, %v1919
        %v1944 = vmul.f32 %v1931, %v1920
        %v1945 = vmul.f32 %v1935, %v1921
        %v1946 = vmul.f32 %v1935, %v1922
        %v1947 = vmul.f32 %v1935, %v1923
        %v1948 = vmul.f32 %v1935, %v1924
        %v1949 = vmul.f32 %v1939, %v1925
        %v1950 = vmul.f32 %v1939, %v1926
        %v1951 = vmul.f32 %v1939, %v1927
        %v1952 = vmul.f32 %v1939, %v1928
        %v1953 = vadd.f32 %v1941, %v1945
        %v1954 = vadd.f32 %v1953, %v1949
        %v1955 = vrot.slane %v1954, 4
        %v1956 = vadd.f32 %v1954, %v1955
        %v1957 = vrot.slane %v1956, 2
        %v1958 = vadd.f32 %v1956, %v1957
        %v1959 = vrot.slane %v1958, 1
        %v1960 = vadd.f32 %v1958, %v1959
        %v1961 = vadd.f32 %v1942, %v1946
        %v1962 = vadd.f32 %v1961, %v1950
        %v1963 = vrot.slane %v1962, 4
        %v1964 = vadd.f32 %v1962, %v1963
        %v1965 = vrot.slane %v1964, 2
        %v1966 = vadd.f32 %v1964, %v1965
        %v1967 = vrot.slane %v1966, 1
        %v1968 = vadd.f32 %v1966, %v1967
        %v1969 = vadd.f32 %v1943, %v1947
        %v1970 = vadd.f32 %v1969, %v1951
        %v1971 = vrot.slane %v1970, 4
        %v1972 = vadd.f32 %v1970, %v1971
        %v1973 = vrot.slane %v1972, 2
        %v1974 = vadd.f32 %v1972, %v1973
        %v1975 = vrot.slane %v1974, 1
        %v1976 = vadd.f32 %v1974, %v1975
        %v1977 = vadd.f32 %v1944, %v1948
        %v1978 = vadd.f32 %v1977, %v1952
        %v1979 = vrot.slane %v1978, 4
        %v1980 = vadd.f32 %v1978, %v1979
        %v1981 = vrot.slane %v1980, 2
        %v1982 = vadd.f32 %v1980, %v1981
        %v1983 = vrot.slane %v1982, 1
        %v1984 = vadd.f32 %v1982, %v1983
        %1985 = vset.pattern.permute.xlu0 27
        %1986 = vperm.xlu0 %1985, %v1687
        %v1987 = vpop.permute.xlu0 %1986
        %1989 = vset.pattern.permute.xlu0 27
        %1990 = vperm.xlu0 %1989, %v1688
        %v1991 = vpop.permute.xlu0 %1990
        %1993 = vset.pattern.permute.xlu0 27
        %1994 = vperm.xlu0 %1993, %v1689
        %v1995 = vpop.permute.xlu0 %1994
        %v1997 = vmul.f32 %v1987, %v1917
        %v1998 = vmul.f32 %v1987, %v1918
        %v1999 = vmul.f32 %v1987, %v1919
        %v2000 = vmul.f32 %v1987, %v1920
        %v2001 = vmul.f32 %v1991, %v1921
        %v2002 = vmul.f32 %v1991, %v1922
        %v2003 = vmul.f32 %v1991, %v1923
        %v2004 = vmul.f32 %v1991, %v1924
        %v2005 = vmul.f32 %v1995, %v1925
        %v2006 = vmul.f32 %v1995, %v1926
        %v2007 = vmul.f32 %v1995, %v1927
        %v2008 = vmul.f32 %v1995, %v1928
        %v2009 = vadd.f32 %v1997, %v2001
        %v2010 = vadd.f32 %v2009, %v2005
        %v2011 = vrot.slane %v2010, 4
        %v2012 = vadd.f32 %v2010, %v2011
        %v2013 = vrot.slane %v2012, 2
        %v2014 = vadd.f32 %v2012, %v2013
        %v2015 = vrot.slane %v2014, 1
        %v2016 = vadd.f32 %v2014, %v2015
        %v2017 = vadd.f32 %v1998, %v2002
        %v2018 = vadd.f32 %v2017, %v2006
        %v2019 = vrot.slane %v2018, 4
        %v2020 = vadd.f32 %v2018, %v2019
        %v2021 = vrot.slane %v2020, 2
        %v2022 = vadd.f32 %v2020, %v2021
        %v2023 = vrot.slane %v2022, 1
        %v2024 = vadd.f32 %v2022, %v2023
        %v2025 = vadd.f32 %v1999, %v2003
        %v2026 = vadd.f32 %v2025, %v2007
        %v2027 = vrot.slane %v2026, 4
        %v2028 = vadd.f32 %v2026, %v2027
        %v2029 = vrot.slane %v2028, 2
        %v2030 = vadd.f32 %v2028, %v2029
        %v2031 = vrot.slane %v2030, 1
        %v2032 = vadd.f32 %v2030, %v2031
        %v2033 = vadd.f32 %v2000, %v2004
        %v2034 = vadd.f32 %v2033, %v2008
        %v2035 = vrot.slane %v2034, 4
        %v2036 = vadd.f32 %v2034, %v2035
        %v2037 = vrot.slane %v2036, 2
        %v2038 = vadd.f32 %v2036, %v2037
        %v2039 = vrot.slane %v2038, 1
        %v2040 = vadd.f32 %v2038, %v2039
        %v2045 = vrot.slane %v1968, 7
        %v2046 = vrot.slane %v1976, 6
        %v2047 = vrot.slane %v1984, 5
        %v2048 = vsel %vm529, %v1960, %v2045
        %v2049 = vsel %vm531, %v2046, %v2047
        %v2050 = vsel %vm533, %v2048, %v2049
        %v2052 = vadd.f32 %v1673, %v2050
        %v2057 = vrot.slane %v2024, 7
        %v2058 = vrot.slane %v2032, 6
        %v2059 = vrot.slane %v2040, 5
        %v2060 = vsel %vm529, %v2016, %v2057
        %v2061 = vsel %vm531, %v2058, %v2059
        %v2062 = vsel %vm533, %v2060, %v2061
        %v2064 = vadd.f32 %v1685, %v2062
        %s2065 = scalar_lea.vmem [#allocation2], 120
        %v2066 = vld [vmem:[%s2065] sm:$0xff]
        %v2067 = vld [vmem:[%s2065 + $0x8] sm:$0xff]
        %v2068 = vld [vmem:[%s2065 + $0x10] sm:$0xff]
        %2070 = vset.pattern.permute.xlu0 24
        %2071 = vperm.xlu0 %2070, %v2066
        %v2072 = vpop.permute.xlu0 %2071
        %2075 = vset.pattern.permute.xlu0 24
        %2076 = vperm.xlu0 %2075, %v2067
        %v2077 = vpop.permute.xlu0 %2076
        %2080 = vset.pattern.permute.xlu0 24
        %2081 = vperm.xlu0 %2080, %v2068
        %v2082 = vpop.permute.xlu0 %2081
        %v2085 = vperm.slane %v2052, 0
        %v2086 = vperm.slane %v2052, 1
        %v2087 = vperm.slane %v2052, 2
        %v2088 = vperm.slane %v2052, 3
        %v2093 = vmul.f32 %v2072, %v2085
        %v2094 = vmul.f32 %v2072, %v2086
        %v2095 = vmul.f32 %v2072, %v2087
        %v2096 = vmul.f32 %v2072, %v2088
        %v2097 = vmul.f32 %v2077, %v2085
        %v2098 = vmul.f32 %v2077, %v2086
        %v2099 = vmul.f32 %v2077, %v2087
        %v2100 = vmul.f32 %v2077, %v2088
        %v2101 = vmul.f32 %v2082, %v2085
        %v2102 = vmul.f32 %v2082, %v2086
        %v2103 = vmul.f32 %v2082, %v2087
        %v2104 = vmul.f32 %v2082, %v2088
        %2105 = vset.pattern.permute.xlu0 25
        %2106 = vperm.xlu0 %2105, %v2066
        %v2107 = vpop.permute.xlu0 %2106
        %2109 = vset.pattern.permute.xlu0 25
        %2110 = vperm.xlu0 %2109, %v2067
        %v2111 = vpop.permute.xlu0 %2110
        %2113 = vset.pattern.permute.xlu0 25
        %2114 = vperm.xlu0 %2113, %v2068
        %v2115 = vpop.permute.xlu0 %2114
        %v2118 = vperm.slane %v2064, 0
        %v2119 = vperm.slane %v2064, 1
        %v2120 = vperm.slane %v2064, 2
        %v2121 = vperm.slane %v2064, 3
        %v2126 = vmul.f32 %v2107, %v2118
        %v2127 = vmul.f32 %v2107, %v2119
        %v2128 = vmul.f32 %v2107, %v2120
        %v2129 = vmul.f32 %v2107, %v2121
        %v2130 = vmul.f32 %v2111, %v2118
        %v2131 = vmul.f32 %v2111, %v2119
        %v2132 = vmul.f32 %v2111, %v2120
        %v2133 = vmul.f32 %v2111, %v2121
        %v2134 = vmul.f32 %v2115, %v2118
        %v2135 = vmul.f32 %v2115, %v2119
        %v2136 = vmul.f32 %v2115, %v2120
        %v2137 = vmul.f32 %v2115, %v2121
        %v2138 = vadd.f32 %v2093, %v2126
        %v2139 = vadd.f32 %v2094, %v2127
        %v2140 = vadd.f32 %v2095, %v2128
        %v2141 = vadd.f32 %v2096, %v2129
        %v2142 = vadd.f32 %v2097, %v2130
        %v2143 = vadd.f32 %v2098, %v2131
        %v2144 = vadd.f32 %v2099, %v2132
        %v2145 = vadd.f32 %v2100, %v2133
        %v2146 = vadd.f32 %v2101, %v2134
        %v2147 = vadd.f32 %v2102, %v2135
        %v2148 = vadd.f32 %v2103, %v2136
        %v2149 = vadd.f32 %v2104, %v2137
        %2150 = vset.pattern.permute.xlu0 28
        %2151 = vperm.xlu0 %2150, %v2066
        %v2152 = vpop.permute.xlu0 %2151
        %2154 = vset.pattern.permute.xlu0 28
        %2155 = vperm.xlu0 %2154, %v2067
        %v2156 = vpop.permute.xlu0 %2155
        %2158 = vset.pattern.permute.xlu0 28
        %2159 = vperm.xlu0 %2158, %v2068
        %v2160 = vpop.permute.xlu0 %2159
        %v2162 = vadd.f32 %v2138, %v2152
        %v2163 = vadd.f32 %v2139, %v2152
        %v2164 = vadd.f32 %v2140, %v2152
        %v2165 = vadd.f32 %v2141, %v2152
        %v2166 = vadd.f32 %v2142, %v2156
        %v2167 = vadd.f32 %v2143, %v2156
        %v2168 = vadd.f32 %v2144, %v2156
        %v2169 = vadd.f32 %v2145, %v2156
        %v2170 = vadd.f32 %v2146, %v2160
        %v2171 = vadd.f32 %v2147, %v2160
        %v2172 = vadd.f32 %v2148, %v2160
        %v2173 = vadd.f32 %v2149, %v2160
        %v2174 = vmax.f32 %v2162, 0.0
        %v2175 = vmax.f32 %v2163, 0.0
        %v2176 = vmax.f32 %v2164, 0.0
        %v2177 = vmax.f32 %v2165, 0.0
        %v2178 = vmax.f32 %v2166, 0.0
        %v2179 = vmax.f32 %v2167, 0.0
        %v2180 = vmax.f32 %v2168, 0.0
        %v2181 = vmax.f32 %v2169, 0.0
        %v2182 = vmax.f32 %v2170, 0.0
        %v2183 = vmax.f32 %v2171, 0.0
        %v2184 = vmax.f32 %v2172, 0.0
        %v2185 = vmax.f32 %v2173, 0.0
        %v2186 = vsel %vm287, %v2066, 0
        %v2188 = vsel %vm287, %v2067, 0
        %v2190 = vsel %vm287, %v2068, 0
        %2192 = vmatpush.msra.mxu0 0.0
        %2193 = vmatpush.msra.mxu0 0.0
        %2194 = vmatpush.msra.mxu0 0.0
        %2195 = vmatpush.msra.mxu0 0.0
        %2196 = vmatpush.msra.mxu0 0.0
        %2197 = vmatpush.msra.mxu0 0.0
        %2198 = vmatpush.msra.mxu0 0.0
        %2199 = vmatpush.msra.mxu0 0.0
        %2200 = vmatpush.msra.mxu0 0.0
        %2201 = vmatpush.msra.mxu0 0.0
        %2202 = vmatpush.msra.mxu0 0.0
        %2203 = vmatpush.msra.mxu0 0.0
        %2204 = vmatpush.msra.mxu0 0.0
        %2205 = vmatpush.msra.mxu0 %v2182
        %2206 = vmatpush.msra.mxu0 %v2178
        %2207 = vmatpush.msra.mxu0 %v2174
        %2208 = vmatmul.f32.gmra.mxu0 %v2186
        %v2209 = vpop.f32.mrf.mxu0
        %v2210 = vadd.f32 0.0, %v2209
        %2211 = vmatmul.f32.gmra.mxu0 %v2188
        %v2212 = vpop.f32.mrf.mxu0
        %v2213 = vadd.f32 0.0, %v2212
        %2214 = vmatmul.f32.gmra.mxu0 %v2190
        %v2215 = vpop.f32.mrf.mxu0
        %v2216 = vadd.f32 0.0, %v2215
        %2217 = vdwg.mxu0
        %2218 = vmatpush.msra.mxu0 0.0
        %2219 = vmatpush.msra.mxu0 0.0
        %2220 = vmatpush.msra.mxu0 0.0
        %2221 = vmatpush.msra.mxu0 0.0
        %2222 = vmatpush.msra.mxu0 0.0
        %2223 = vmatpush.msra.mxu0 0.0
        %2224 = vmatpush.msra.mxu0 0.0
        %2225 = vmatpush.msra.mxu0 0.0
        %2226 = vmatpush.msra.mxu0 0.0
        %2227 = vmatpush.msra.mxu0 0.0
        %2228 = vmatpush.msra.mxu0 0.0
        %2229 = vmatpush.msra.mxu0 0.0
        %2230 = vmatpush.msra.mxu0 0.0
        %2231 = vmatpush.msra.mxu0 %v2183
        %2232 = vmatpush.msra.mxu0 %v2179
        %2233 = vmatpush.msra.mxu0 %v2175
        %2234 = vmatmul.f32.gmra.mxu0 %v2186
        %v2235 = vpop.f32.mrf.mxu0
        %v2236 = vadd.f32 0.0, %v2235
        %2237 = vmatmul.f32.gmra.mxu0 %v2188
        %v2238 = vpop.f32.mrf.mxu0
        %v2239 = vadd.f32 0.0, %v2238
        %2240 = vmatmul.f32.gmra.mxu0 %v2190
        %v2241 = vpop.f32.mrf.mxu0
        %v2242 = vadd.f32 0.0, %v2241
        %2243 = vdwg.mxu0
        %2244 = vmatpush.msra.mxu0 0.0
        %2245 = vmatpush.msra.mxu0 0.0
        %2246 = vmatpush.msra.mxu0 0.0
        %2247 = vmatpush.msra.mxu0 0.0
        %2248 = vmatpush.msra.mxu0 0.0
        %2249 = vmatpush.msra.mxu0 0.0
        %2250 = vmatpush.msra.mxu0 0.0
        %2251 = vmatpush.msra.mxu0 0.0
        %2252 = vmatpush.msra.mxu0 0.0
        %2253 = vmatpush.msra.mxu0 0.0
        %2254 = vmatpush.msra.mxu0 0.0
        %2255 = vmatpush.msra.mxu0 0.0
        %2256 = vmatpush.msra.mxu0 0.0
        %2257 = vmatpush.msra.mxu0 %v2184
        %2258 = vmatpush.msra.mxu0 %v2180
        %2259 = vmatpush.msra.mxu0 %v2176
        %2260 = vmatmul.f32.gmra.mxu0 %v2186
        %v2261 = vpop.f32.mrf.mxu0
        %v2262 = vadd.f32 0.0, %v2261
        %2263 = vmatmul.f32.gmra.mxu0 %v2188
        %v2264 = vpop.f32.mrf.mxu0
        %v2265 = vadd.f32 0.0, %v2264
        %2266 = vmatmul.f32.gmra.mxu0 %v2190
        %v2267 = vpop.f32.mrf.mxu0
        %v2268 = vadd.f32 0.0, %v2267
        %2269 = vdwg.mxu0
        %2270 = vmatpush.msra.mxu0 0.0
        %2271 = vmatpush.msra.mxu0 0.0
        %2272 = vmatpush.msra.mxu0 0.0
        %2273 = vmatpush.msra.mxu0 0.0
        %2274 = vmatpush.msra.mxu0 0.0
        %2275 = vmatpush.msra.mxu0 0.0
        %2276 = vmatpush.msra.mxu0 0.0
        %2277 = vmatpush.msra.mxu0 0.0
        %2278 = vmatpush.msra.mxu0 0.0
        %2279 = vmatpush.msra.mxu0 0.0
        %2280 = vmatpush.msra.mxu0 0.0
        %2281 = vmatpush.msra.mxu0 0.0
        %2282 = vmatpush.msra.mxu0 0.0
        %2283 = vmatpush.msra.mxu0 %v2185
        %2284 = vmatpush.msra.mxu0 %v2181
        %2285 = vmatpush.msra.mxu0 %v2177
        %2286 = vmatmul.f32.gmra.mxu0 %v2186
        %v2287 = vpop.f32.mrf.mxu0
        %v2288 = vadd.f32 0.0, %v2287
        %2289 = vmatmul.f32.gmra.mxu0 %v2188
        %v2290 = vpop.f32.mrf.mxu0
        %v2291 = vadd.f32 0.0, %v2290
        %2292 = vmatmul.f32.gmra.mxu0 %v2190
        %v2293 = vpop.f32.mrf.mxu0
        %v2294 = vadd.f32 0.0, %v2293
        %2295 = vdwg.mxu0
        %v2296 = vmax.f32 %v2210, 0.0
        %v2297 = vmax.f32 %v2236, 0.0
        %v2298 = vmax.f32 %v2262, 0.0
        %v2299 = vmax.f32 %v2288, 0.0
        %v2300 = vmax.f32 %v2213, 0.0
        %v2301 = vmax.f32 %v2239, 0.0
        %v2302 = vmax.f32 %v2265, 0.0
        %v2303 = vmax.f32 %v2291, 0.0
        %v2304 = vmax.f32 %v2216, 0.0
        %v2305 = vmax.f32 %v2242, 0.0
        %v2306 = vmax.f32 %v2268, 0.0
        %v2307 = vmax.f32 %v2294, 0.0
        %2308 = vset.pattern.permute.xlu0 26
        %2309 = vperm.xlu0 %2308, %v2066
        %v2310 = vpop.permute.xlu0 %2309
        %2312 = vset.pattern.permute.xlu0 26
        %2313 = vperm.xlu0 %2312, %v2067
        %v2314 = vpop.permute.xlu0 %2313
        %2316 = vset.pattern.permute.xlu0 26
        %2317 = vperm.xlu0 %2316, %v2068
        %v2318 = vpop.permute.xlu0 %2317
        %v2320 = vmul.f32 %v2310, %v2296
        %v2321 = vmul.f32 %v2310, %v2297
        %v2322 = vmul.f32 %v2310, %v2298
        %v2323 = vmul.f32 %v2310, %v2299
        %v2324 = vmul.f32 %v2314, %v2300
        %v2325 = vmul.f32 %v2314, %v2301
        %v2326 = vmul.f32 %v2314, %v2302
        %v2327 = vmul.f32 %v2314, %v2303
        %v2328 = vmul.f32 %v2318, %v2304
        %v2329 = vmul.f32 %v2318, %v2305
        %v2330 = vmul.f32 %v2318, %v2306
        %v2331 = vmul.f32 %v2318, %v2307
        %v2332 = vadd.f32 %v2320, %v2324
        %v2333 = vadd.f32 %v2332, %v2328
        %v2334 = vrot.slane %v2333, 4
        %v2335 = vadd.f32 %v2333, %v2334
        %v2336 = vrot.slane %v2335, 2
        %v2337 = vadd.f32 %v2335, %v2336
        %v2338 = vrot.slane %v2337, 1
        %v2339 = vadd.f32 %v2337, %v2338
        %v2340 = vadd.f32 %v2321, %v2325
        %v2341 = vadd.f32 %v2340, %v2329
        %v2342 = vrot.slane %v2341, 4
        %v2343 = vadd.f32 %v2341, %v2342
        %v2344 = vrot.slane %v2343, 2
        %v2345 = vadd.f32 %v2343, %v2344
        %v2346 = vrot.slane %v2345, 1
        %v2347 = vadd.f32 %v2345, %v2346
        %v2348 = vadd.f32 %v2322, %v2326
        %v2349 = vadd.f32 %v2348, %v2330
        %v2350 = vrot.slane %v2349, 4
        %v2351 = vadd.f32 %v2349, %v2350
        %v2352 = vrot.slane %v2351, 2
        %v2353 = vadd.f32 %v2351, %v2352
        %v2354 = vrot.slane %v2353, 1
        %v2355 = vadd.f32 %v2353, %v2354
        %v2356 = vadd.f32 %v2323, %v2327
        %v2357 = vadd.f32 %v2356, %v2331
        %v2358 = vrot.slane %v2357, 4
        %v2359 = vadd.f32 %v2357, %v2358
        %v2360 = vrot.slane %v2359, 2
        %v2361 = vadd.f32 %v2359, %v2360
        %v2362 = vrot.slane %v2361, 1
        %v2363 = vadd.f32 %v2361, %v2362
        %2364 = vset.pattern.permute.xlu0 27
        %2365 = vperm.xlu0 %2364, %v2066
        %v2366 = vpop.permute.xlu0 %2365
        %2368 = vset.pattern.permute.xlu0 27
        %2369 = vperm.xlu0 %2368, %v2067
        %v2370 = vpop.permute.xlu0 %2369
        %2372 = vset.pattern.permute.xlu0 27
        %2373 = vperm.xlu0 %2372, %v2068
        %v2374 = vpop.permute.xlu0 %2373
        %v2376 = vmul.f32 %v2366, %v2296
        %v2377 = vmul.f32 %v2366, %v2297
        %v2378 = vmul.f32 %v2366, %v2298
        %v2379 = vmul.f32 %v2366, %v2299
        %v2380 = vmul.f32 %v2370, %v2300
        %v2381 = vmul.f32 %v2370, %v2301
        %v2382 = vmul.f32 %v2370, %v2302
        %v2383 = vmul.f32 %v2370, %v2303
        %v2384 = vmul.f32 %v2374, %v2304
        %v2385 = vmul.f32 %v2374, %v2305
        %v2386 = vmul.f32 %v2374, %v2306
        %v2387 = vmul.f32 %v2374, %v2307
        %v2388 = vadd.f32 %v2376, %v2380
        %v2389 = vadd.f32 %v2388, %v2384
        %v2390 = vrot.slane %v2389, 4
        %v2391 = vadd.f32 %v2389, %v2390
        %v2392 = vrot.slane %v2391, 2
        %v2393 = vadd.f32 %v2391, %v2392
        %v2394 = vrot.slane %v2393, 1
        %v2395 = vadd.f32 %v2393, %v2394
        %v2396 = vadd.f32 %v2377, %v2381
        %v2397 = vadd.f32 %v2396, %v2385
        %v2398 = vrot.slane %v2397, 4
        %v2399 = vadd.f32 %v2397, %v2398
        %v2400 = vrot.slane %v2399, 2
        %v2401 = vadd.f32 %v2399, %v2400
        %v2402 = vrot.slane %v2401, 1
        %v2403 = vadd.f32 %v2401, %v2402
        %v2404 = vadd.f32 %v2378, %v2382
        %v2405 = vadd.f32 %v2404, %v2386
        %v2406 = vrot.slane %v2405, 4
        %v2407 = vadd.f32 %v2405, %v2406
        %v2408 = vrot.slane %v2407, 2
        %v2409 = vadd.f32 %v2407, %v2408
        %v2410 = vrot.slane %v2409, 1
        %v2411 = vadd.f32 %v2409, %v2410
        %v2412 = vadd.f32 %v2379, %v2383
        %v2413 = vadd.f32 %v2412, %v2387
        %v2414 = vrot.slane %v2413, 4
        %v2415 = vadd.f32 %v2413, %v2414
        %v2416 = vrot.slane %v2415, 2
        %v2417 = vadd.f32 %v2415, %v2416
        %v2418 = vrot.slane %v2417, 1
        %v2419 = vadd.f32 %v2417, %v2418
        %v2424 = vrot.slane %v2347, 7
        %v2425 = vrot.slane %v2355, 6
        %v2426 = vrot.slane %v2363, 5
        %v2427 = vsel %vm529, %v2339, %v2424
        %v2428 = vsel %vm531, %v2425, %v2426
        %v2429 = vsel %vm533, %v2427, %v2428
        %v2431 = vadd.f32 %v2052, %v2429
        %v2436 = vrot.slane %v2403, 7
        %v2437 = vrot.slane %v2411, 6
        %v2438 = vrot.slane %v2419, 5
        %v2439 = vsel %vm529, %v2395, %v2436
        %v2440 = vsel %vm531, %v2437, %v2438
        %v2441 = vsel %vm533, %v2439, %v2440
        %v2443 = vadd.f32 %v2064, %v2441
        %s2444 = scalar_lea.vmem [#allocation2], 144
        %v2445 = vld [vmem:[%s2444] sm:$0xff]
        %v2446 = vld [vmem:[%s2444 + $0x8] sm:$0xff]
        %v2447 = vld [vmem:[%s2444 + $0x10] sm:$0xff]
        %2449 = vset.pattern.permute.xlu0 24
        %2450 = vperm.xlu0 %2449, %v2445
        %v2451 = vpop.permute.xlu0 %2450
        %2454 = vset.pattern.permute.xlu0 24
        %2455 = vperm.xlu0 %2454, %v2446
        %v2456 = vpop.permute.xlu0 %2455
        %2459 = vset.pattern.permute.xlu0 24
        %2460 = vperm.xlu0 %2459, %v2447
        %v2461 = vpop.permute.xlu0 %2460
        %v2464 = vperm.slane %v2431, 0
        %v2465 = vperm.slane %v2431, 1
        %v2466 = vperm.slane %v2431, 2
        %v2467 = vperm.slane %v2431, 3
        %v2472 = vmul.f32 %v2451, %v2464
        %v2473 = vmul.f32 %v2451, %v2465
        %v2474 = vmul.f32 %v2451, %v2466
        %v2475 = vmul.f32 %v2451, %v2467
        %v2476 = vmul.f32 %v2456, %v2464
        %v2477 = vmul.f32 %v2456, %v2465
        %v2478 = vmul.f32 %v2456, %v2466
        %v2479 = vmul.f32 %v2456, %v2467
        %v2480 = vmul.f32 %v2461, %v2464
        %v2481 = vmul.f32 %v2461, %v2465
        %v2482 = vmul.f32 %v2461, %v2466
        %v2483 = vmul.f32 %v2461, %v2467
        %2484 = vset.pattern.permute.xlu0 25
        %2485 = vperm.xlu0 %2484, %v2445
        %v2486 = vpop.permute.xlu0 %2485
        %2488 = vset.pattern.permute.xlu0 25
        %2489 = vperm.xlu0 %2488, %v2446
        %v2490 = vpop.permute.xlu0 %2489
        %2492 = vset.pattern.permute.xlu0 25
        %2493 = vperm.xlu0 %2492, %v2447
        %v2494 = vpop.permute.xlu0 %2493
        %v2497 = vperm.slane %v2443, 0
        %v2498 = vperm.slane %v2443, 1
        %v2499 = vperm.slane %v2443, 2
        %v2500 = vperm.slane %v2443, 3
        %v2505 = vmul.f32 %v2486, %v2497
        %v2506 = vmul.f32 %v2486, %v2498
        %v2507 = vmul.f32 %v2486, %v2499
        %v2508 = vmul.f32 %v2486, %v2500
        %v2509 = vmul.f32 %v2490, %v2497
        %v2510 = vmul.f32 %v2490, %v2498
        %v2511 = vmul.f32 %v2490, %v2499
        %v2512 = vmul.f32 %v2490, %v2500
        %v2513 = vmul.f32 %v2494, %v2497
        %v2514 = vmul.f32 %v2494, %v2498
        %v2515 = vmul.f32 %v2494, %v2499
        %v2516 = vmul.f32 %v2494, %v2500
        %v2517 = vadd.f32 %v2472, %v2505
        %v2518 = vadd.f32 %v2473, %v2506
        %v2519 = vadd.f32 %v2474, %v2507
        %v2520 = vadd.f32 %v2475, %v2508
        %v2521 = vadd.f32 %v2476, %v2509
        %v2522 = vadd.f32 %v2477, %v2510
        %v2523 = vadd.f32 %v2478, %v2511
        %v2524 = vadd.f32 %v2479, %v2512
        %v2525 = vadd.f32 %v2480, %v2513
        %v2526 = vadd.f32 %v2481, %v2514
        %v2527 = vadd.f32 %v2482, %v2515
        %v2528 = vadd.f32 %v2483, %v2516
        %2529 = vset.pattern.permute.xlu0 28
        %2530 = vperm.xlu0 %2529, %v2445
        %v2531 = vpop.permute.xlu0 %2530
        %2533 = vset.pattern.permute.xlu0 28
        %2534 = vperm.xlu0 %2533, %v2446
        %v2535 = vpop.permute.xlu0 %2534
        %2537 = vset.pattern.permute.xlu0 28
        %2538 = vperm.xlu0 %2537, %v2447
        %v2539 = vpop.permute.xlu0 %2538
        %v2541 = vadd.f32 %v2517, %v2531
        %v2542 = vadd.f32 %v2518, %v2531
        %v2543 = vadd.f32 %v2519, %v2531
        %v2544 = vadd.f32 %v2520, %v2531
        %v2545 = vadd.f32 %v2521, %v2535
        %v2546 = vadd.f32 %v2522, %v2535
        %v2547 = vadd.f32 %v2523, %v2535
        %v2548 = vadd.f32 %v2524, %v2535
        %v2549 = vadd.f32 %v2525, %v2539
        %v2550 = vadd.f32 %v2526, %v2539
        %v2551 = vadd.f32 %v2527, %v2539
        %v2552 = vadd.f32 %v2528, %v2539
        %v2553 = vmax.f32 %v2541, 0.0
        %v2554 = vmax.f32 %v2542, 0.0
        %v2555 = vmax.f32 %v2543, 0.0
        %v2556 = vmax.f32 %v2544, 0.0
        %v2557 = vmax.f32 %v2545, 0.0
        %v2558 = vmax.f32 %v2546, 0.0
        %v2559 = vmax.f32 %v2547, 0.0
        %v2560 = vmax.f32 %v2548, 0.0
        %v2561 = vmax.f32 %v2549, 0.0
        %v2562 = vmax.f32 %v2550, 0.0
        %v2563 = vmax.f32 %v2551, 0.0
        %v2564 = vmax.f32 %v2552, 0.0
        %v2565 = vsel %vm287, %v2445, 0
        %v2567 = vsel %vm287, %v2446, 0
        %v2569 = vsel %vm287, %v2447, 0
        %2571 = vmatpush.msra.mxu0 0.0
        %2572 = vmatpush.msra.mxu0 0.0
        %2573 = vmatpush.msra.mxu0 0.0
        %2574 = vmatpush.msra.mxu0 0.0
        %2575 = vmatpush.msra.mxu0 0.0
        %2576 = vmatpush.msra.mxu0 0.0
        %2577 = vmatpush.msra.mxu0 0.0
        %2578 = vmatpush.msra.mxu0 0.0
        %2579 = vmatpush.msra.mxu0 0.0
        %2580 = vmatpush.msra.mxu0 0.0
        %2581 = vmatpush.msra.mxu0 0.0
        %2582 = vmatpush.msra.mxu0 0.0
        %2583 = vmatpush.msra.mxu0 0.0
        %2584 = vmatpush.msra.mxu0 %v2561
        %2585 = vmatpush.msra.mxu0 %v2557
        %2586 = vmatpush.msra.mxu0 %v2553
        %2587 = vmatmul.f32.gmra.mxu0 %v2565
        %v2588 = vpop.f32.mrf.mxu0
        %v2589 = vadd.f32 0.0, %v2588
        %2590 = vmatmul.f32.gmra.mxu0 %v2567
        %v2591 = vpop.f32.mrf.mxu0
        %v2592 = vadd.f32 0.0, %v2591
        %2593 = vmatmul.f32.gmra.mxu0 %v2569
        %v2594 = vpop.f32.mrf.mxu0
        %v2595 = vadd.f32 0.0, %v2594
        %2596 = vdwg.mxu0
        %2597 = vmatpush.msra.mxu0 0.0
        %2598 = vmatpush.msra.mxu0 0.0
        %2599 = vmatpush.msra.mxu0 0.0
        %2600 = vmatpush.msra.mxu0 0.0
        %2601 = vmatpush.msra.mxu0 0.0
        %2602 = vmatpush.msra.mxu0 0.0
        %2603 = vmatpush.msra.mxu0 0.0
        %2604 = vmatpush.msra.mxu0 0.0
        %2605 = vmatpush.msra.mxu0 0.0
        %2606 = vmatpush.msra.mxu0 0.0
        %2607 = vmatpush.msra.mxu0 0.0
        %2608 = vmatpush.msra.mxu0 0.0
        %2609 = vmatpush.msra.mxu0 0.0
        %2610 = vmatpush.msra.mxu0 %v2562
        %2611 = vmatpush.msra.mxu0 %v2558
        %2612 = vmatpush.msra.mxu0 %v2554
        %2613 = vmatmul.f32.gmra.mxu0 %v2565
        %v2614 = vpop.f32.mrf.mxu0
        %v2615 = vadd.f32 0.0, %v2614
        %2616 = vmatmul.f32.gmra.mxu0 %v2567
        %v2617 = vpop.f32.mrf.mxu0
        %v2618 = vadd.f32 0.0, %v2617
        %2619 = vmatmul.f32.gmra.mxu0 %v2569
        %v2620 = vpop.f32.mrf.mxu0
        %v2621 = vadd.f32 0.0, %v2620
        %2622 = vdwg.mxu0
        %2623 = vmatpush.msra.mxu0 0.0
        %2624 = vmatpush.msra.mxu0 0.0
        %2625 = vmatpush.msra.mxu0 0.0
        %2626 = vmatpush.msra.mxu0 0.0
        %2627 = vmatpush.msra.mxu0 0.0
        %2628 = vmatpush.msra.mxu0 0.0
        %2629 = vmatpush.msra.mxu0 0.0
        %2630 = vmatpush.msra.mxu0 0.0
        %2631 = vmatpush.msra.mxu0 0.0
        %2632 = vmatpush.msra.mxu0 0.0
        %2633 = vmatpush.msra.mxu0 0.0
        %2634 = vmatpush.msra.mxu0 0.0
        %2635 = vmatpush.msra.mxu0 0.0
        %2636 = vmatpush.msra.mxu0 %v2563
        %2637 = vmatpush.msra.mxu0 %v2559
        %2638 = vmatpush.msra.mxu0 %v2555
        %2639 = vmatmul.f32.gmra.mxu0 %v2565
        %v2640 = vpop.f32.mrf.mxu0
        %v2641 = vadd.f32 0.0, %v2640
        %2642 = vmatmul.f32.gmra.mxu0 %v2567
        %v2643 = vpop.f32.mrf.mxu0
        %v2644 = vadd.f32 0.0, %v2643
        %2645 = vmatmul.f32.gmra.mxu0 %v2569
        %v2646 = vpop.f32.mrf.mxu0
        %v2647 = vadd.f32 0.0, %v2646
        %2648 = vdwg.mxu0
        %2649 = vmatpush.msra.mxu0 0.0
        %2650 = vmatpush.msra.mxu0 0.0
        %2651 = vmatpush.msra.mxu0 0.0
        %2652 = vmatpush.msra.mxu0 0.0
        %2653 = vmatpush.msra.mxu0 0.0
        %2654 = vmatpush.msra.mxu0 0.0
        %2655 = vmatpush.msra.mxu0 0.0
        %2656 = vmatpush.msra.mxu0 0.0
        %2657 = vmatpush.msra.mxu0 0.0
        %2658 = vmatpush.msra.mxu0 0.0
        %2659 = vmatpush.msra.mxu0 0.0
        %2660 = vmatpush.msra.mxu0 0.0
        %2661 = vmatpush.msra.mxu0 0.0
        %2662 = vmatpush.msra.mxu0 %v2564
        %2663 = vmatpush.msra.mxu0 %v2560
        %2664 = vmatpush.msra.mxu0 %v2556
        %2665 = vmatmul.f32.gmra.mxu0 %v2565
        %v2666 = vpop.f32.mrf.mxu0
        %v2667 = vadd.f32 0.0, %v2666
        %2668 = vmatmul.f32.gmra.mxu0 %v2567
        %v2669 = vpop.f32.mrf.mxu0
        %v2670 = vadd.f32 0.0, %v2669
        %2671 = vmatmul.f32.gmra.mxu0 %v2569
        %v2672 = vpop.f32.mrf.mxu0
        %v2673 = vadd.f32 0.0, %v2672
        %2674 = vdwg.mxu0
        %v2675 = vmax.f32 %v2589, 0.0
        %v2676 = vmax.f32 %v2615, 0.0
        %v2677 = vmax.f32 %v2641, 0.0
        %v2678 = vmax.f32 %v2667, 0.0
        %v2679 = vmax.f32 %v2592, 0.0
        %v2680 = vmax.f32 %v2618, 0.0
        %v2681 = vmax.f32 %v2644, 0.0
        %v2682 = vmax.f32 %v2670, 0.0
        %v2683 = vmax.f32 %v2595, 0.0
        %v2684 = vmax.f32 %v2621, 0.0
        %v2685 = vmax.f32 %v2647, 0.0
        %v2686 = vmax.f32 %v2673, 0.0
        %2687 = vset.pattern.permute.xlu0 26
        %2688 = vperm.xlu0 %2687, %v2445
        %v2689 = vpop.permute.xlu0 %2688
        %2691 = vset.pattern.permute.xlu0 26
        %2692 = vperm.xlu0 %2691, %v2446
        %v2693 = vpop.permute.xlu0 %2692
        %2695 = vset.pattern.permute.xlu0 26
        %2696 = vperm.xlu0 %2695, %v2447
        %v2697 = vpop.permute.xlu0 %2696
        %v2699 = vmul.f32 %v2689, %v2675
        %v2700 = vmul.f32 %v2689, %v2676
        %v2701 = vmul.f32 %v2689, %v2677
        %v2702 = vmul.f32 %v2689, %v2678
        %v2703 = vmul.f32 %v2693, %v2679
        %v2704 = vmul.f32 %v2693, %v2680
        %v2705 = vmul.f32 %v2693, %v2681
        %v2706 = vmul.f32 %v2693, %v2682
        %v2707 = vmul.f32 %v2697, %v2683
        %v2708 = vmul.f32 %v2697, %v2684
        %v2709 = vmul.f32 %v2697, %v2685
        %v2710 = vmul.f32 %v2697, %v2686
        %v2711 = vadd.f32 %v2699, %v2703
        %v2712 = vadd.f32 %v2711, %v2707
        %v2713 = vrot.slane %v2712, 4
        %v2714 = vadd.f32 %v2712, %v2713
        %v2715 = vrot.slane %v2714, 2
        %v2716 = vadd.f32 %v2714, %v2715
        %v2717 = vrot.slane %v2716, 1
        %v2718 = vadd.f32 %v2716, %v2717
        %v2719 = vadd.f32 %v2700, %v2704
        %v2720 = vadd.f32 %v2719, %v2708
        %v2721 = vrot.slane %v2720, 4
        %v2722 = vadd.f32 %v2720, %v2721
        %v2723 = vrot.slane %v2722, 2
        %v2724 = vadd.f32 %v2722, %v2723
        %v2725 = vrot.slane %v2724, 1
        %v2726 = vadd.f32 %v2724, %v2725
        %v2727 = vadd.f32 %v2701, %v2705
        %v2728 = vadd.f32 %v2727, %v2709
        %v2729 = vrot.slane %v2728, 4
        %v2730 = vadd.f32 %v2728, %v2729
        %v2731 = vrot.slane %v2730, 2
        %v2732 = vadd.f32 %v2730, %v2731
        %v2733 = vrot.slane %v2732, 1
        %v2734 = vadd.f32 %v2732, %v2733
        %v2735 = vadd.f32 %v2702, %v2706
        %v2736 = vadd.f32 %v2735, %v2710
        %v2737 = vrot.slane %v2736, 4
        %v2738 = vadd.f32 %v2736, %v2737
        %v2739 = vrot.slane %v2738, 2
        %v2740 = vadd.f32 %v2738, %v2739
        %v2741 = vrot.slane %v2740, 1
        %v2742 = vadd.f32 %v2740, %v2741
        %2743 = vset.pattern.permute.xlu0 27
        %2744 = vperm.xlu0 %2743, %v2445
        %v2745 = vpop.permute.xlu0 %2744
        %2747 = vset.pattern.permute.xlu0 27
        %2748 = vperm.xlu0 %2747, %v2446
        %v2749 = vpop.permute.xlu0 %2748
        %2751 = vset.pattern.permute.xlu0 27
        %2752 = vperm.xlu0 %2751, %v2447
        %v2753 = vpop.permute.xlu0 %2752
        %v2755 = vmul.f32 %v2745, %v2675
        %v2756 = vmul.f32 %v2745, %v2676
        %v2757 = vmul.f32 %v2745, %v2677
        %v2758 = vmul.f32 %v2745, %v2678
        %v2759 = vmul.f32 %v2749, %v2679
        %v2760 = vmul.f32 %v2749, %v2680
        %v2761 = vmul.f32 %v2749, %v2681
        %v2762 = vmul.f32 %v2749, %v2682
        %v2763 = vmul.f32 %v2753, %v2683
        %v2764 = vmul.f32 %v2753, %v2684
        %v2765 = vmul.f32 %v2753, %v2685
        %v2766 = vmul.f32 %v2753, %v2686
        %v2767 = vadd.f32 %v2755, %v2759
        %v2768 = vadd.f32 %v2767, %v2763
        %v2769 = vrot.slane %v2768, 4
        %v2770 = vadd.f32 %v2768, %v2769
        %v2771 = vrot.slane %v2770, 2
        %v2772 = vadd.f32 %v2770, %v2771
        %v2773 = vrot.slane %v2772, 1
        %v2774 = vadd.f32 %v2772, %v2773
        %v2775 = vadd.f32 %v2756, %v2760
        %v2776 = vadd.f32 %v2775, %v2764
        %v2777 = vrot.slane %v2776, 4
        %v2778 = vadd.f32 %v2776, %v2777
        %v2779 = vrot.slane %v2778, 2
        %v2780 = vadd.f32 %v2778, %v2779
        %v2781 = vrot.slane %v2780, 1
        %v2782 = vadd.f32 %v2780, %v2781
        %v2783 = vadd.f32 %v2757, %v2761
        %v2784 = vadd.f32 %v2783, %v2765
        %v2785 = vrot.slane %v2784, 4
        %v2786 = vadd.f32 %v2784, %v2785
        %v2787 = vrot.slane %v2786, 2
        %v2788 = vadd.f32 %v2786, %v2787
        %v2789 = vrot.slane %v2788, 1
        %v2790 = vadd.f32 %v2788, %v2789
        %v2791 = vadd.f32 %v2758, %v2762
        %v2792 = vadd.f32 %v2791, %v2766
        %v2793 = vrot.slane %v2792, 4
        %v2794 = vadd.f32 %v2792, %v2793
        %v2795 = vrot.slane %v2794, 2
        %v2796 = vadd.f32 %v2794, %v2795
        %v2797 = vrot.slane %v2796, 1
        %v2798 = vadd.f32 %v2796, %v2797
        %v2803 = vrot.slane %v2726, 7
        %v2804 = vrot.slane %v2734, 6
        %v2805 = vrot.slane %v2742, 5
        %v2806 = vsel %vm529, %v2718, %v2803
        %v2807 = vsel %vm531, %v2804, %v2805
        %v2808 = vsel %vm533, %v2806, %v2807
        %v2810 = vadd.f32 %v2431, %v2808
        %v2815 = vrot.slane %v2782, 7
        %v2816 = vrot.slane %v2790, 6
        %v2817 = vrot.slane %v2798, 5
        %v2818 = vsel %vm529, %v2774, %v2815
        %v2819 = vsel %vm531, %v2816, %v2817
        %v2820 = vsel %vm533, %v2818, %v2819
        %v2822 = vadd.f32 %v2443, %v2820
        %s2823 = scalar_lea.vmem [#allocation2], 168
        %v2824 = vld [vmem:[%s2823] sm:$0xff]
        %v2825 = vld [vmem:[%s2823 + $0x8] sm:$0xff]
        %v2826 = vld [vmem:[%s2823 + $0x10] sm:$0xff]
        %2828 = vset.pattern.permute.xlu0 24
        %2829 = vperm.xlu0 %2828, %v2824
        %v2830 = vpop.permute.xlu0 %2829
        %2833 = vset.pattern.permute.xlu0 24
        %2834 = vperm.xlu0 %2833, %v2825
        %v2835 = vpop.permute.xlu0 %2834
        %2838 = vset.pattern.permute.xlu0 24
        %2839 = vperm.xlu0 %2838, %v2826
        %v2840 = vpop.permute.xlu0 %2839
        %v2843 = vperm.slane %v2810, 0
        %v2844 = vperm.slane %v2810, 1
        %v2845 = vperm.slane %v2810, 2
        %v2846 = vperm.slane %v2810, 3
        %v2851 = vmul.f32 %v2830, %v2843
        %v2852 = vmul.f32 %v2830, %v2844
        %v2853 = vmul.f32 %v2830, %v2845
        %v2854 = vmul.f32 %v2830, %v2846
        %v2855 = vmul.f32 %v2835, %v2843
        %v2856 = vmul.f32 %v2835, %v2844
        %v2857 = vmul.f32 %v2835, %v2845
        %v2858 = vmul.f32 %v2835, %v2846
        %v2859 = vmul.f32 %v2840, %v2843
        %v2860 = vmul.f32 %v2840, %v2844
        %v2861 = vmul.f32 %v2840, %v2845
        %v2862 = vmul.f32 %v2840, %v2846
        %2863 = vset.pattern.permute.xlu0 25
        %2864 = vperm.xlu0 %2863, %v2824
        %v2865 = vpop.permute.xlu0 %2864
        %2867 = vset.pattern.permute.xlu0 25
        %2868 = vperm.xlu0 %2867, %v2825
        %v2869 = vpop.permute.xlu0 %2868
        %2871 = vset.pattern.permute.xlu0 25
        %2872 = vperm.xlu0 %2871, %v2826
        %v2873 = vpop.permute.xlu0 %2872
        %v2876 = vperm.slane %v2822, 0
        %v2877 = vperm.slane %v2822, 1
        %v2878 = vperm.slane %v2822, 2
        %v2879 = vperm.slane %v2822, 3
        %v2884 = vmul.f32 %v2865, %v2876
        %v2885 = vmul.f32 %v2865, %v2877
        %v2886 = vmul.f32 %v2865, %v2878
        %v2887 = vmul.f32 %v2865, %v2879
        %v2888 = vmul.f32 %v2869, %v2876
        %v2889 = vmul.f32 %v2869, %v2877
        %v2890 = vmul.f32 %v2869, %v2878
        %v2891 = vmul.f32 %v2869, %v2879
        %v2892 = vmul.f32 %v2873, %v2876
        %v2893 = vmul.f32 %v2873, %v2877
        %v2894 = vmul.f32 %v2873, %v2878
        %v2895 = vmul.f32 %v2873, %v2879
        %v2896 = vadd.f32 %v2851, %v2884
        %v2897 = vadd.f32 %v2852, %v2885
        %v2898 = vadd.f32 %v2853, %v2886
        %v2899 = vadd.f32 %v2854, %v2887
        %v2900 = vadd.f32 %v2855, %v2888
        %v2901 = vadd.f32 %v2856, %v2889
        %v2902 = vadd.f32 %v2857, %v2890
        %v2903 = vadd.f32 %v2858, %v2891
        %v2904 = vadd.f32 %v2859, %v2892
        %v2905 = vadd.f32 %v2860, %v2893
        %v2906 = vadd.f32 %v2861, %v2894
        %v2907 = vadd.f32 %v2862, %v2895
        %2908 = vset.pattern.permute.xlu0 28
        %2909 = vperm.xlu0 %2908, %v2824
        %v2910 = vpop.permute.xlu0 %2909
        %2912 = vset.pattern.permute.xlu0 28
        %2913 = vperm.xlu0 %2912, %v2825
        %v2914 = vpop.permute.xlu0 %2913
        %2916 = vset.pattern.permute.xlu0 28
        %2917 = vperm.xlu0 %2916, %v2826
        %v2918 = vpop.permute.xlu0 %2917
        %v2920 = vadd.f32 %v2896, %v2910
        %v2921 = vadd.f32 %v2897, %v2910
        %v2922 = vadd.f32 %v2898, %v2910
        %v2923 = vadd.f32 %v2899, %v2910
        %v2924 = vadd.f32 %v2900, %v2914
        %v2925 = vadd.f32 %v2901, %v2914
        %v2926 = vadd.f32 %v2902, %v2914
        %v2927 = vadd.f32 %v2903, %v2914
        %v2928 = vadd.f32 %v2904, %v2918
        %v2929 = vadd.f32 %v2905, %v2918
        %v2930 = vadd.f32 %v2906, %v2918
        %v2931 = vadd.f32 %v2907, %v2918
        %v2932 = vmax.f32 %v2920, 0.0
        %v2933 = vmax.f32 %v2921, 0.0
        %v2934 = vmax.f32 %v2922, 0.0
        %v2935 = vmax.f32 %v2923, 0.0
        %v2936 = vmax.f32 %v2924, 0.0
        %v2937 = vmax.f32 %v2925, 0.0
        %v2938 = vmax.f32 %v2926, 0.0
        %v2939 = vmax.f32 %v2927, 0.0
        %v2940 = vmax.f32 %v2928, 0.0
        %v2941 = vmax.f32 %v2929, 0.0
        %v2942 = vmax.f32 %v2930, 0.0
        %v2943 = vmax.f32 %v2931, 0.0
        %v2944 = vsel %vm287, %v2824, 0
        %v2946 = vsel %vm287, %v2825, 0
        %v2948 = vsel %vm287, %v2826, 0
        %2950 = vmatpush.msra.mxu0 0.0
        %2951 = vmatpush.msra.mxu0 0.0
        %2952 = vmatpush.msra.mxu0 0.0
        %2953 = vmatpush.msra.mxu0 0.0
        %2954 = vmatpush.msra.mxu0 0.0
        %2955 = vmatpush.msra.mxu0 0.0
        %2956 = vmatpush.msra.mxu0 0.0
        %2957 = vmatpush.msra.mxu0 0.0
        %2958 = vmatpush.msra.mxu0 0.0
        %2959 = vmatpush.msra.mxu0 0.0
        %2960 = vmatpush.msra.mxu0 0.0
        %2961 = vmatpush.msra.mxu0 0.0
        %2962 = vmatpush.msra.mxu0 0.0
        %2963 = vmatpush.msra.mxu0 %v2940
        %2964 = vmatpush.msra.mxu0 %v2936
        %2965 = vmatpush.msra.mxu0 %v2932
        %2966 = vmatmul.f32.gmra.mxu0 %v2944
        %v2967 = vpop.f32.mrf.mxu0
        %v2968 = vadd.f32 0.0, %v2967
        %2969 = vmatmul.f32.gmra.mxu0 %v2946
        %v2970 = vpop.f32.mrf.mxu0
        %v2971 = vadd.f32 0.0, %v2970
        %2972 = vmatmul.f32.gmra.mxu0 %v2948
        %v2973 = vpop.f32.mrf.mxu0
        %v2974 = vadd.f32 0.0, %v2973
        %2975 = vdwg.mxu0
        %2976 = vmatpush.msra.mxu0 0.0
        %2977 = vmatpush.msra.mxu0 0.0
        %2978 = vmatpush.msra.mxu0 0.0
        %2979 = vmatpush.msra.mxu0 0.0
        %2980 = vmatpush.msra.mxu0 0.0
        %2981 = vmatpush.msra.mxu0 0.0
        %2982 = vmatpush.msra.mxu0 0.0
        %2983 = vmatpush.msra.mxu0 0.0
        %2984 = vmatpush.msra.mxu0 0.0
        %2985 = vmatpush.msra.mxu0 0.0
        %2986 = vmatpush.msra.mxu0 0.0
        %2987 = vmatpush.msra.mxu0 0.0
        %2988 = vmatpush.msra.mxu0 0.0
        %2989 = vmatpush.msra.mxu0 %v2941
        %2990 = vmatpush.msra.mxu0 %v2937
        %2991 = vmatpush.msra.mxu0 %v2933
        %2992 = vmatmul.f32.gmra.mxu0 %v2944
        %v2993 = vpop.f32.mrf.mxu0
        %v2994 = vadd.f32 0.0, %v2993
        %2995 = vmatmul.f32.gmra.mxu0 %v2946
        %v2996 = vpop.f32.mrf.mxu0
        %v2997 = vadd.f32 0.0, %v2996
        %2998 = vmatmul.f32.gmra.mxu0 %v2948
        %v2999 = vpop.f32.mrf.mxu0
        %v3000 = vadd.f32 0.0, %v2999
        %3001 = vdwg.mxu0
        %3002 = vmatpush.msra.mxu0 0.0
        %3003 = vmatpush.msra.mxu0 0.0
        %3004 = vmatpush.msra.mxu0 0.0
        %3005 = vmatpush.msra.mxu0 0.0
        %3006 = vmatpush.msra.mxu0 0.0
        %3007 = vmatpush.msra.mxu0 0.0
        %3008 = vmatpush.msra.mxu0 0.0
        %3009 = vmatpush.msra.mxu0 0.0
        %3010 = vmatpush.msra.mxu0 0.0
        %3011 = vmatpush.msra.mxu0 0.0
        %3012 = vmatpush.msra.mxu0 0.0
        %3013 = vmatpush.msra.mxu0 0.0
        %3014 = vmatpush.msra.mxu0 0.0
        %3015 = vmatpush.msra.mxu0 %v2942
        %3016 = vmatpush.msra.mxu0 %v2938
        %3017 = vmatpush.msra.mxu0 %v2934
        %3018 = vmatmul.f32.gmra.mxu0 %v2944
        %v3019 = vpop.f32.mrf.mxu0
        %v3020 = vadd.f32 0.0, %v3019
        %3021 = vmatmul.f32.gmra.mxu0 %v2946
        %v3022 = vpop.f32.mrf.mxu0
        %v3023 = vadd.f32 0.0, %v3022
        %3024 = vmatmul.f32.gmra.mxu0 %v2948
        %v3025 = vpop.f32.mrf.mxu0
        %v3026 = vadd.f32 0.0, %v3025
        %3027 = vdwg.mxu0
        %3028 = vmatpush.msra.mxu0 0.0
        %3029 = vmatpush.msra.mxu0 0.0
        %3030 = vmatpush.msra.mxu0 0.0
        %3031 = vmatpush.msra.mxu0 0.0
        %3032 = vmatpush.msra.mxu0 0.0
        %3033 = vmatpush.msra.mxu0 0.0
        %3034 = vmatpush.msra.mxu0 0.0
        %3035 = vmatpush.msra.mxu0 0.0
        %3036 = vmatpush.msra.mxu0 0.0
        %3037 = vmatpush.msra.mxu0 0.0
        %3038 = vmatpush.msra.mxu0 0.0
        %3039 = vmatpush.msra.mxu0 0.0
        %3040 = vmatpush.msra.mxu0 0.0
        %3041 = vmatpush.msra.mxu0 %v2943
        %3042 = vmatpush.msra.mxu0 %v2939
        %3043 = vmatpush.msra.mxu0 %v2935
        %3044 = vmatmul.f32.gmra.mxu0 %v2944
        %v3045 = vpop.f32.mrf.mxu0
        %v3046 = vadd.f32 0.0, %v3045
        %3047 = vmatmul.f32.gmra.mxu0 %v2946
        %v3048 = vpop.f32.mrf.mxu0
        %v3049 = vadd.f32 0.0, %v3048
        %3050 = vmatmul.f32.gmra.mxu0 %v2948
        %v3051 = vpop.f32.mrf.mxu0
        %v3052 = vadd.f32 0.0, %v3051
        %3053 = vdwg.mxu0
        %v3054 = vmax.f32 %v2968, 0.0
        %v3055 = vmax.f32 %v2994, 0.0
        %v3056 = vmax.f32 %v3020, 0.0
        %v3057 = vmax.f32 %v3046, 0.0
        %v3058 = vmax.f32 %v2971, 0.0
        %v3059 = vmax.f32 %v2997, 0.0
        %v3060 = vmax.f32 %v3023, 0.0
        %v3061 = vmax.f32 %v3049, 0.0
        %v3062 = vmax.f32 %v2974, 0.0
        %v3063 = vmax.f32 %v3000, 0.0
        %v3064 = vmax.f32 %v3026, 0.0
        %v3065 = vmax.f32 %v3052, 0.0
        %3066 = vset.pattern.permute.xlu0 26
        %3067 = vperm.xlu0 %3066, %v2824
        %v3068 = vpop.permute.xlu0 %3067
        %3070 = vset.pattern.permute.xlu0 26
        %3071 = vperm.xlu0 %3070, %v2825
        %v3072 = vpop.permute.xlu0 %3071
        %3074 = vset.pattern.permute.xlu0 26
        %3075 = vperm.xlu0 %3074, %v2826
        %v3076 = vpop.permute.xlu0 %3075
        %v3078 = vmul.f32 %v3068, %v3054
        %v3079 = vmul.f32 %v3068, %v3055
        %v3080 = vmul.f32 %v3068, %v3056
        %v3081 = vmul.f32 %v3068, %v3057
        %v3082 = vmul.f32 %v3072, %v3058
        %v3083 = vmul.f32 %v3072, %v3059
        %v3084 = vmul.f32 %v3072, %v3060
        %v3085 = vmul.f32 %v3072, %v3061
        %v3086 = vmul.f32 %v3076, %v3062
        %v3087 = vmul.f32 %v3076, %v3063
        %v3088 = vmul.f32 %v3076, %v3064
        %v3089 = vmul.f32 %v3076, %v3065
        %v3090 = vadd.f32 %v3078, %v3082
        %v3091 = vadd.f32 %v3090, %v3086
        %v3092 = vrot.slane %v3091, 4
        %v3093 = vadd.f32 %v3091, %v3092
        %v3094 = vrot.slane %v3093, 2
        %v3095 = vadd.f32 %v3093, %v3094
        %v3096 = vrot.slane %v3095, 1
        %v3097 = vadd.f32 %v3095, %v3096
        %v3098 = vadd.f32 %v3079, %v3083
        %v3099 = vadd.f32 %v3098, %v3087
        %v3100 = vrot.slane %v3099, 4
        %v3101 = vadd.f32 %v3099, %v3100
        %v3102 = vrot.slane %v3101, 2
        %v3103 = vadd.f32 %v3101, %v3102
        %v3104 = vrot.slane %v3103, 1
        %v3105 = vadd.f32 %v3103, %v3104
        %v3106 = vadd.f32 %v3080, %v3084
        %v3107 = vadd.f32 %v3106, %v3088
        %v3108 = vrot.slane %v3107, 4
        %v3109 = vadd.f32 %v3107, %v3108
        %v3110 = vrot.slane %v3109, 2
        %v3111 = vadd.f32 %v3109, %v3110
        %v3112 = vrot.slane %v3111, 1
        %v3113 = vadd.f32 %v3111, %v3112
        %v3114 = vadd.f32 %v3081, %v3085
        %v3115 = vadd.f32 %v3114, %v3089
        %v3116 = vrot.slane %v3115, 4
        %v3117 = vadd.f32 %v3115, %v3116
        %v3118 = vrot.slane %v3117, 2
        %v3119 = vadd.f32 %v3117, %v3118
        %v3120 = vrot.slane %v3119, 1
        %v3121 = vadd.f32 %v3119, %v3120
        %3122 = vset.pattern.permute.xlu0 27
        %3123 = vperm.xlu0 %3122, %v2824
        %v3124 = vpop.permute.xlu0 %3123
        %3126 = vset.pattern.permute.xlu0 27
        %3127 = vperm.xlu0 %3126, %v2825
        %v3128 = vpop.permute.xlu0 %3127
        %3130 = vset.pattern.permute.xlu0 27
        %3131 = vperm.xlu0 %3130, %v2826
        %v3132 = vpop.permute.xlu0 %3131
        %v3134 = vmul.f32 %v3124, %v3054
        %v3135 = vmul.f32 %v3124, %v3055
        %v3136 = vmul.f32 %v3124, %v3056
        %v3137 = vmul.f32 %v3124, %v3057
        %v3138 = vmul.f32 %v3128, %v3058
        %v3139 = vmul.f32 %v3128, %v3059
        %v3140 = vmul.f32 %v3128, %v3060
        %v3141 = vmul.f32 %v3128, %v3061
        %v3142 = vmul.f32 %v3132, %v3062
        %v3143 = vmul.f32 %v3132, %v3063
        %v3144 = vmul.f32 %v3132, %v3064
        %v3145 = vmul.f32 %v3132, %v3065
        %v3146 = vadd.f32 %v3134, %v3138
        %v3147 = vadd.f32 %v3146, %v3142
        %v3148 = vrot.slane %v3147, 4
        %v3149 = vadd.f32 %v3147, %v3148
        %v3150 = vrot.slane %v3149, 2
        %v3151 = vadd.f32 %v3149, %v3150
        %v3152 = vrot.slane %v3151, 1
        %v3153 = vadd.f32 %v3151, %v3152
        %v3154 = vadd.f32 %v3135, %v3139
        %v3155 = vadd.f32 %v3154, %v3143
        %v3156 = vrot.slane %v3155, 4
        %v3157 = vadd.f32 %v3155, %v3156
        %v3158 = vrot.slane %v3157, 2
        %v3159 = vadd.f32 %v3157, %v3158
        %v3160 = vrot.slane %v3159, 1
        %v3161 = vadd.f32 %v3159, %v3160
        %v3162 = vadd.f32 %v3136, %v3140
        %v3163 = vadd.f32 %v3162, %v3144
        %v3164 = vrot.slane %v3163, 4
        %v3165 = vadd.f32 %v3163, %v3164
        %v3166 = vrot.slane %v3165, 2
        %v3167 = vadd.f32 %v3165, %v3166
        %v3168 = vrot.slane %v3167, 1
        %v3169 = vadd.f32 %v3167, %v3168
        %v3170 = vadd.f32 %v3137, %v3141
        %v3171 = vadd.f32 %v3170, %v3145
        %v3172 = vrot.slane %v3171, 4
        %v3173 = vadd.f32 %v3171, %v3172
        %v3174 = vrot.slane %v3173, 2
        %v3175 = vadd.f32 %v3173, %v3174
        %v3176 = vrot.slane %v3175, 1
        %v3177 = vadd.f32 %v3175, %v3176
        %v3182 = vrot.slane %v3105, 7
        %v3183 = vrot.slane %v3113, 6
        %v3184 = vrot.slane %v3121, 5
        %v3185 = vsel %vm529, %v3097, %v3182
        %v3186 = vsel %vm531, %v3183, %v3184
        %v3187 = vsel %vm533, %v3185, %v3186
        %v3189 = vadd.f32 %v2810, %v3187
        %v3194 = vrot.slane %v3161, 7
        %v3195 = vrot.slane %v3169, 6
        %v3196 = vrot.slane %v3177, 5
        %v3197 = vsel %vm529, %v3153, %v3194
        %v3198 = vsel %vm531, %v3195, %v3196
        %v3199 = vsel %vm533, %v3197, %v3198
        %v3201 = vadd.f32 %v2822, %v3199
        %s3202 = scalar_lea.vmem [#allocation2], 192
        %v3203 = vld [vmem:[%s3202] sm:$0xff]
        %v3204 = vld [vmem:[%s3202 + $0x8] sm:$0xff]
        %v3205 = vld [vmem:[%s3202 + $0x10] sm:$0xff]
        %3207 = vset.pattern.permute.xlu0 24
        %3208 = vperm.xlu0 %3207, %v3203
        %v3209 = vpop.permute.xlu0 %3208
        %3212 = vset.pattern.permute.xlu0 24
        %3213 = vperm.xlu0 %3212, %v3204
        %v3214 = vpop.permute.xlu0 %3213
        %3217 = vset.pattern.permute.xlu0 24
        %3218 = vperm.xlu0 %3217, %v3205
        %v3219 = vpop.permute.xlu0 %3218
        %v3222 = vperm.slane %v3189, 0
        %v3223 = vperm.slane %v3189, 1
        %v3224 = vperm.slane %v3189, 2
        %v3225 = vperm.slane %v3189, 3
        %v3230 = vmul.f32 %v3209, %v3222
        %v3231 = vmul.f32 %v3209, %v3223
        %v3232 = vmul.f32 %v3209, %v3224
        %v3233 = vmul.f32 %v3209, %v3225
        %v3234 = vmul.f32 %v3214, %v3222
        %v3235 = vmul.f32 %v3214, %v3223
        %v3236 = vmul.f32 %v3214, %v3224
        %v3237 = vmul.f32 %v3214, %v3225
        %v3238 = vmul.f32 %v3219, %v3222
        %v3239 = vmul.f32 %v3219, %v3223
        %v3240 = vmul.f32 %v3219, %v3224
        %v3241 = vmul.f32 %v3219, %v3225
        %3242 = vset.pattern.permute.xlu0 25
        %3243 = vperm.xlu0 %3242, %v3203
        %v3244 = vpop.permute.xlu0 %3243
        %3246 = vset.pattern.permute.xlu0 25
        %3247 = vperm.xlu0 %3246, %v3204
        %v3248 = vpop.permute.xlu0 %3247
        %3250 = vset.pattern.permute.xlu0 25
        %3251 = vperm.xlu0 %3250, %v3205
        %v3252 = vpop.permute.xlu0 %3251
        %v3255 = vperm.slane %v3201, 0
        %v3256 = vperm.slane %v3201, 1
        %v3257 = vperm.slane %v3201, 2
        %v3258 = vperm.slane %v3201, 3
        %v3263 = vmul.f32 %v3244, %v3255
        %v3264 = vmul.f32 %v3244, %v3256
        %v3265 = vmul.f32 %v3244, %v3257
        %v3266 = vmul.f32 %v3244, %v3258
        %v3267 = vmul.f32 %v3248, %v3255
        %v3268 = vmul.f32 %v3248, %v3256
        %v3269 = vmul.f32 %v3248, %v3257
        %v3270 = vmul.f32 %v3248, %v3258
        %v3271 = vmul.f32 %v3252, %v3255
        %v3272 = vmul.f32 %v3252, %v3256
        %v3273 = vmul.f32 %v3252, %v3257
        %v3274 = vmul.f32 %v3252, %v3258
        %v3275 = vadd.f32 %v3230, %v3263
        %v3276 = vadd.f32 %v3231, %v3264
        %v3277 = vadd.f32 %v3232, %v3265
        %v3278 = vadd.f32 %v3233, %v3266
        %v3279 = vadd.f32 %v3234, %v3267
        %v3280 = vadd.f32 %v3235, %v3268
        %v3281 = vadd.f32 %v3236, %v3269
        %v3282 = vadd.f32 %v3237, %v3270
        %v3283 = vadd.f32 %v3238, %v3271
        %v3284 = vadd.f32 %v3239, %v3272
        %v3285 = vadd.f32 %v3240, %v3273
        %v3286 = vadd.f32 %v3241, %v3274
        %3287 = vset.pattern.permute.xlu0 28
        %3288 = vperm.xlu0 %3287, %v3203
        %v3289 = vpop.permute.xlu0 %3288
        %3291 = vset.pattern.permute.xlu0 28
        %3292 = vperm.xlu0 %3291, %v3204
        %v3293 = vpop.permute.xlu0 %3292
        %3295 = vset.pattern.permute.xlu0 28
        %3296 = vperm.xlu0 %3295, %v3205
        %v3297 = vpop.permute.xlu0 %3296
        %v3299 = vadd.f32 %v3275, %v3289
        %v3300 = vadd.f32 %v3276, %v3289
        %v3301 = vadd.f32 %v3277, %v3289
        %v3302 = vadd.f32 %v3278, %v3289
        %v3303 = vadd.f32 %v3279, %v3293
        %v3304 = vadd.f32 %v3280, %v3293
        %v3305 = vadd.f32 %v3281, %v3293
        %v3306 = vadd.f32 %v3282, %v3293
        %v3307 = vadd.f32 %v3283, %v3297
        %v3308 = vadd.f32 %v3284, %v3297
        %v3309 = vadd.f32 %v3285, %v3297
        %v3310 = vadd.f32 %v3286, %v3297
        %v3311 = vmax.f32 %v3299, 0.0
        %v3312 = vmax.f32 %v3300, 0.0
        %v3313 = vmax.f32 %v3301, 0.0
        %v3314 = vmax.f32 %v3302, 0.0
        %v3315 = vmax.f32 %v3303, 0.0
        %v3316 = vmax.f32 %v3304, 0.0
        %v3317 = vmax.f32 %v3305, 0.0
        %v3318 = vmax.f32 %v3306, 0.0
        %v3319 = vmax.f32 %v3307, 0.0
        %v3320 = vmax.f32 %v3308, 0.0
        %v3321 = vmax.f32 %v3309, 0.0
        %v3322 = vmax.f32 %v3310, 0.0
        %v3323 = vsel %vm287, %v3203, 0
        %v3325 = vsel %vm287, %v3204, 0
        %v3327 = vsel %vm287, %v3205, 0
        %3329 = vmatpush.msra.mxu0 0.0
        %3330 = vmatpush.msra.mxu0 0.0
        %3331 = vmatpush.msra.mxu0 0.0
        %3332 = vmatpush.msra.mxu0 0.0
        %3333 = vmatpush.msra.mxu0 0.0
        %3334 = vmatpush.msra.mxu0 0.0
        %3335 = vmatpush.msra.mxu0 0.0
        %3336 = vmatpush.msra.mxu0 0.0
        %3337 = vmatpush.msra.mxu0 0.0
        %3338 = vmatpush.msra.mxu0 0.0
        %3339 = vmatpush.msra.mxu0 0.0
        %3340 = vmatpush.msra.mxu0 0.0
        %3341 = vmatpush.msra.mxu0 0.0
        %3342 = vmatpush.msra.mxu0 %v3319
        %3343 = vmatpush.msra.mxu0 %v3315
        %3344 = vmatpush.msra.mxu0 %v3311
        %3345 = vmatmul.f32.gmra.mxu0 %v3323
        %v3346 = vpop.f32.mrf.mxu0
        %v3347 = vadd.f32 0.0, %v3346
        %3348 = vmatmul.f32.gmra.mxu0 %v3325
        %v3349 = vpop.f32.mrf.mxu0
        %v3350 = vadd.f32 0.0, %v3349
        %3351 = vmatmul.f32.gmra.mxu0 %v3327
        %v3352 = vpop.f32.mrf.mxu0
        %v3353 = vadd.f32 0.0, %v3352
        %3354 = vdwg.mxu0
        %3355 = vmatpush.msra.mxu0 0.0
        %3356 = vmatpush.msra.mxu0 0.0
        %3357 = vmatpush.msra.mxu0 0.0
        %3358 = vmatpush.msra.mxu0 0.0
        %3359 = vmatpush.msra.mxu0 0.0
        %3360 = vmatpush.msra.mxu0 0.0
        %3361 = vmatpush.msra.mxu0 0.0
        %3362 = vmatpush.msra.mxu0 0.0
        %3363 = vmatpush.msra.mxu0 0.0
        %3364 = vmatpush.msra.mxu0 0.0
        %3365 = vmatpush.msra.mxu0 0.0
        %3366 = vmatpush.msra.mxu0 0.0
        %3367 = vmatpush.msra.mxu0 0.0
        %3368 = vmatpush.msra.mxu0 %v3320
        %3369 = vmatpush.msra.mxu0 %v3316
        %3370 = vmatpush.msra.mxu0 %v3312
        %3371 = vmatmul.f32.gmra.mxu0 %v3323
        %v3372 = vpop.f32.mrf.mxu0
        %v3373 = vadd.f32 0.0, %v3372
        %3374 = vmatmul.f32.gmra.mxu0 %v3325
        %v3375 = vpop.f32.mrf.mxu0
        %v3376 = vadd.f32 0.0, %v3375
        %3377 = vmatmul.f32.gmra.mxu0 %v3327
        %v3378 = vpop.f32.mrf.mxu0
        %v3379 = vadd.f32 0.0, %v3378
        %3380 = vdwg.mxu0
        %3381 = vmatpush.msra.mxu0 0.0
        %3382 = vmatpush.msra.mxu0 0.0
        %3383 = vmatpush.msra.mxu0 0.0
        %3384 = vmatpush.msra.mxu0 0.0
        %3385 = vmatpush.msra.mxu0 0.0
        %3386 = vmatpush.msra.mxu0 0.0
        %3387 = vmatpush.msra.mxu0 0.0
        %3388 = vmatpush.msra.mxu0 0.0
        %3389 = vmatpush.msra.mxu0 0.0
        %3390 = vmatpush.msra.mxu0 0.0
        %3391 = vmatpush.msra.mxu0 0.0
        %3392 = vmatpush.msra.mxu0 0.0
        %3393 = vmatpush.msra.mxu0 0.0
        %3394 = vmatpush.msra.mxu0 %v3321
        %3395 = vmatpush.msra.mxu0 %v3317
        %3396 = vmatpush.msra.mxu0 %v3313
        %3397 = vmatmul.f32.gmra.mxu0 %v3323
        %v3398 = vpop.f32.mrf.mxu0
        %v3399 = vadd.f32 0.0, %v3398
        %3400 = vmatmul.f32.gmra.mxu0 %v3325
        %v3401 = vpop.f32.mrf.mxu0
        %v3402 = vadd.f32 0.0, %v3401
        %3403 = vmatmul.f32.gmra.mxu0 %v3327
        %v3404 = vpop.f32.mrf.mxu0
        %v3405 = vadd.f32 0.0, %v3404
        %3406 = vdwg.mxu0
        %3407 = vmatpush.msra.mxu0 0.0
        %3408 = vmatpush.msra.mxu0 0.0
        %3409 = vmatpush.msra.mxu0 0.0
        %3410 = vmatpush.msra.mxu0 0.0
        %3411 = vmatpush.msra.mxu0 0.0
        %3412 = vmatpush.msra.mxu0 0.0
        %3413 = vmatpush.msra.mxu0 0.0
        %3414 = vmatpush.msra.mxu0 0.0
        %3415 = vmatpush.msra.mxu0 0.0
        %3416 = vmatpush.msra.mxu0 0.0
        %3417 = vmatpush.msra.mxu0 0.0
        %3418 = vmatpush.msra.mxu0 0.0
        %3419 = vmatpush.msra.mxu0 0.0
        %3420 = vmatpush.msra.mxu0 %v3322
        %3421 = vmatpush.msra.mxu0 %v3318
        %3422 = vmatpush.msra.mxu0 %v3314
        %3423 = vmatmul.f32.gmra.mxu0 %v3323
        %v3424 = vpop.f32.mrf.mxu0
        %v3425 = vadd.f32 0.0, %v3424
        %3426 = vmatmul.f32.gmra.mxu0 %v3325
        %v3427 = vpop.f32.mrf.mxu0
        %v3428 = vadd.f32 0.0, %v3427
        %3429 = vmatmul.f32.gmra.mxu0 %v3327
        %v3430 = vpop.f32.mrf.mxu0
        %v3431 = vadd.f32 0.0, %v3430
        %3432 = vdwg.mxu0
        %v3433 = vmax.f32 %v3347, 0.0
        %v3434 = vmax.f32 %v3373, 0.0
        %v3435 = vmax.f32 %v3399, 0.0
        %v3436 = vmax.f32 %v3425, 0.0
        %v3437 = vmax.f32 %v3350, 0.0
        %v3438 = vmax.f32 %v3376, 0.0
        %v3439 = vmax.f32 %v3402, 0.0
        %v3440 = vmax.f32 %v3428, 0.0
        %v3441 = vmax.f32 %v3353, 0.0
        %v3442 = vmax.f32 %v3379, 0.0
        %v3443 = vmax.f32 %v3405, 0.0
        %v3444 = vmax.f32 %v3431, 0.0
        %3445 = vset.pattern.permute.xlu0 26
        %3446 = vperm.xlu0 %3445, %v3203
        %v3447 = vpop.permute.xlu0 %3446
        %3449 = vset.pattern.permute.xlu0 26
        %3450 = vperm.xlu0 %3449, %v3204
        %v3451 = vpop.permute.xlu0 %3450
        %3453 = vset.pattern.permute.xlu0 26
        %3454 = vperm.xlu0 %3453, %v3205
        %v3455 = vpop.permute.xlu0 %3454
        %v3457 = vmul.f32 %v3447, %v3433
        %v3458 = vmul.f32 %v3447, %v3434
        %v3459 = vmul.f32 %v3447, %v3435
        %v3460 = vmul.f32 %v3447, %v3436
        %v3461 = vmul.f32 %v3451, %v3437
        %v3462 = vmul.f32 %v3451, %v3438
        %v3463 = vmul.f32 %v3451, %v3439
        %v3464 = vmul.f32 %v3451, %v3440
        %v3465 = vmul.f32 %v3455, %v3441
        %v3466 = vmul.f32 %v3455, %v3442
        %v3467 = vmul.f32 %v3455, %v3443
        %v3468 = vmul.f32 %v3455, %v3444
        %v3469 = vadd.f32 %v3457, %v3461
        %v3470 = vadd.f32 %v3469, %v3465
        %v3471 = vrot.slane %v3470, 4
        %v3472 = vadd.f32 %v3470, %v3471
        %v3473 = vrot.slane %v3472, 2
        %v3474 = vadd.f32 %v3472, %v3473
        %v3475 = vrot.slane %v3474, 1
        %v3476 = vadd.f32 %v3474, %v3475
        %v3477 = vadd.f32 %v3458, %v3462
        %v3478 = vadd.f32 %v3477, %v3466
        %v3479 = vrot.slane %v3478, 4
        %v3480 = vadd.f32 %v3478, %v3479
        %v3481 = vrot.slane %v3480, 2
        %v3482 = vadd.f32 %v3480, %v3481
        %v3483 = vrot.slane %v3482, 1
        %v3484 = vadd.f32 %v3482, %v3483
        %v3485 = vadd.f32 %v3459, %v3463
        %v3486 = vadd.f32 %v3485, %v3467
        %v3487 = vrot.slane %v3486, 4
        %v3488 = vadd.f32 %v3486, %v3487
        %v3489 = vrot.slane %v3488, 2
        %v3490 = vadd.f32 %v3488, %v3489
        %v3491 = vrot.slane %v3490, 1
        %v3492 = vadd.f32 %v3490, %v3491
        %v3493 = vadd.f32 %v3460, %v3464
        %v3494 = vadd.f32 %v3493, %v3468
        %v3495 = vrot.slane %v3494, 4
        %v3496 = vadd.f32 %v3494, %v3495
        %v3497 = vrot.slane %v3496, 2
        %v3498 = vadd.f32 %v3496, %v3497
        %v3499 = vrot.slane %v3498, 1
        %v3500 = vadd.f32 %v3498, %v3499
        %3501 = vset.pattern.permute.xlu0 27
        %3502 = vperm.xlu0 %3501, %v3203
        %v3503 = vpop.permute.xlu0 %3502
        %3505 = vset.pattern.permute.xlu0 27
        %3506 = vperm.xlu0 %3505, %v3204
        %v3507 = vpop.permute.xlu0 %3506
        %3509 = vset.pattern.permute.xlu0 27
        %3510 = vperm.xlu0 %3509, %v3205
        %v3511 = vpop.permute.xlu0 %3510
        %v3513 = vmul.f32 %v3503, %v3433
        %v3514 = vmul.f32 %v3503, %v3434
        %v3515 = vmul.f32 %v3503, %v3435
        %v3516 = vmul.f32 %v3503, %v3436
        %v3517 = vmul.f32 %v3507, %v3437
        %v3518 = vmul.f32 %v3507, %v3438
        %v3519 = vmul.f32 %v3507, %v3439
        %v3520 = vmul.f32 %v3507, %v3440
        %v3521 = vmul.f32 %v3511, %v3441
        %v3522 = vmul.f32 %v3511, %v3442
        %v3523 = vmul.f32 %v3511, %v3443
        %v3524 = vmul.f32 %v3511, %v3444
        %v3525 = vadd.f32 %v3513, %v3517
        %v3526 = vadd.f32 %v3525, %v3521
        %v3527 = vrot.slane %v3526, 4
        %v3528 = vadd.f32 %v3526, %v3527
        %v3529 = vrot.slane %v3528, 2
        %v3530 = vadd.f32 %v3528, %v3529
        %v3531 = vrot.slane %v3530, 1
        %v3532 = vadd.f32 %v3530, %v3531
        %v3533 = vadd.f32 %v3514, %v3518
        %v3534 = vadd.f32 %v3533, %v3522
        %v3535 = vrot.slane %v3534, 4
        %v3536 = vadd.f32 %v3534, %v3535
        %v3537 = vrot.slane %v3536, 2
        %v3538 = vadd.f32 %v3536, %v3537
        %v3539 = vrot.slane %v3538, 1
        %v3540 = vadd.f32 %v3538, %v3539
        %v3541 = vadd.f32 %v3515, %v3519
        %v3542 = vadd.f32 %v3541, %v3523
        %v3543 = vrot.slane %v3542, 4
        %v3544 = vadd.f32 %v3542, %v3543
        %v3545 = vrot.slane %v3544, 2
        %v3546 = vadd.f32 %v3544, %v3545
        %v3547 = vrot.slane %v3546, 1
        %v3548 = vadd.f32 %v3546, %v3547
        %v3549 = vadd.f32 %v3516, %v3520
        %v3550 = vadd.f32 %v3549, %v3524
        %v3551 = vrot.slane %v3550, 4
        %v3552 = vadd.f32 %v3550, %v3551
        %v3553 = vrot.slane %v3552, 2
        %v3554 = vadd.f32 %v3552, %v3553
        %v3555 = vrot.slane %v3554, 1
        %v3556 = vadd.f32 %v3554, %v3555
        %v3561 = vrot.slane %v3484, 7
        %v3562 = vrot.slane %v3492, 6
        %v3563 = vrot.slane %v3500, 5
        %v3564 = vsel %vm529, %v3476, %v3561
        %v3565 = vsel %vm531, %v3562, %v3563
        %v3566 = vsel %vm533, %v3564, %v3565
        %v3568 = vadd.f32 %v3189, %v3566
        %v3573 = vrot.slane %v3540, 7
        %v3574 = vrot.slane %v3548, 6
        %v3575 = vrot.slane %v3556, 5
        %v3576 = vsel %vm529, %v3532, %v3573
        %v3577 = vsel %vm531, %v3574, %v3575
        %v3578 = vsel %vm533, %v3576, %v3577
        %v3580 = vadd.f32 %v3201, %v3578
        %s3581 = scalar_lea.vmem [#allocation2], 216
        %v3582 = vld [vmem:[%s3581] sm:$0xff]
        %v3583 = vld [vmem:[%s3581 + $0x8] sm:$0xff]
        %v3584 = vld [vmem:[%s3581 + $0x10] sm:$0xff]
        %3586 = vset.pattern.permute.xlu0 24
        %3587 = vperm.xlu0 %3586, %v3582
        %v3588 = vpop.permute.xlu0 %3587
        %3591 = vset.pattern.permute.xlu0 24
        %3592 = vperm.xlu0 %3591, %v3583
        %v3593 = vpop.permute.xlu0 %3592
        %3596 = vset.pattern.permute.xlu0 24
        %3597 = vperm.xlu0 %3596, %v3584
        %v3598 = vpop.permute.xlu0 %3597
        %v3601 = vperm.slane %v3568, 0
        %v3602 = vperm.slane %v3568, 1
        %v3603 = vperm.slane %v3568, 2
        %v3604 = vperm.slane %v3568, 3
        %v3609 = vmul.f32 %v3588, %v3601
        %v3610 = vmul.f32 %v3588, %v3602
        %v3611 = vmul.f32 %v3588, %v3603
        %v3612 = vmul.f32 %v3588, %v3604
        %v3613 = vmul.f32 %v3593, %v3601
        %v3614 = vmul.f32 %v3593, %v3602
        %v3615 = vmul.f32 %v3593, %v3603
        %v3616 = vmul.f32 %v3593, %v3604
        %v3617 = vmul.f32 %v3598, %v3601
        %v3618 = vmul.f32 %v3598, %v3602
        %v3619 = vmul.f32 %v3598, %v3603
        %v3620 = vmul.f32 %v3598, %v3604
        %3621 = vset.pattern.permute.xlu0 25
        %3622 = vperm.xlu0 %3621, %v3582
        %v3623 = vpop.permute.xlu0 %3622
        %3625 = vset.pattern.permute.xlu0 25
        %3626 = vperm.xlu0 %3625, %v3583
        %v3627 = vpop.permute.xlu0 %3626
        %3629 = vset.pattern.permute.xlu0 25
        %3630 = vperm.xlu0 %3629, %v3584
        %v3631 = vpop.permute.xlu0 %3630
        %v3634 = vperm.slane %v3580, 0
        %v3635 = vperm.slane %v3580, 1
        %v3636 = vperm.slane %v3580, 2
        %v3637 = vperm.slane %v3580, 3
        %v3642 = vmul.f32 %v3623, %v3634
        %v3643 = vmul.f32 %v3623, %v3635
        %v3644 = vmul.f32 %v3623, %v3636
        %v3645 = vmul.f32 %v3623, %v3637
        %v3646 = vmul.f32 %v3627, %v3634
        %v3647 = vmul.f32 %v3627, %v3635
        %v3648 = vmul.f32 %v3627, %v3636
        %v3649 = vmul.f32 %v3627, %v3637
        %v3650 = vmul.f32 %v3631, %v3634
        %v3651 = vmul.f32 %v3631, %v3635
        %v3652 = vmul.f32 %v3631, %v3636
        %v3653 = vmul.f32 %v3631, %v3637
        %v3654 = vadd.f32 %v3609, %v3642
        %v3655 = vadd.f32 %v3610, %v3643
        %v3656 = vadd.f32 %v3611, %v3644
        %v3657 = vadd.f32 %v3612, %v3645
        %v3658 = vadd.f32 %v3613, %v3646
        %v3659 = vadd.f32 %v3614, %v3647
        %v3660 = vadd.f32 %v3615, %v3648
        %v3661 = vadd.f32 %v3616, %v3649
        %v3662 = vadd.f32 %v3617, %v3650
        %v3663 = vadd.f32 %v3618, %v3651
        %v3664 = vadd.f32 %v3619, %v3652
        %v3665 = vadd.f32 %v3620, %v3653
        %3666 = vset.pattern.permute.xlu0 28
        %3667 = vperm.xlu0 %3666, %v3582
        %v3668 = vpop.permute.xlu0 %3667
        %3670 = vset.pattern.permute.xlu0 28
        %3671 = vperm.xlu0 %3670, %v3583
        %v3672 = vpop.permute.xlu0 %3671
        %3674 = vset.pattern.permute.xlu0 28
        %3675 = vperm.xlu0 %3674, %v3584
        %v3676 = vpop.permute.xlu0 %3675
        %v3678 = vadd.f32 %v3654, %v3668
        %v3679 = vadd.f32 %v3655, %v3668
        %v3680 = vadd.f32 %v3656, %v3668
        %v3681 = vadd.f32 %v3657, %v3668
        %v3682 = vadd.f32 %v3658, %v3672
        %v3683 = vadd.f32 %v3659, %v3672
        %v3684 = vadd.f32 %v3660, %v3672
        %v3685 = vadd.f32 %v3661, %v3672
        %v3686 = vadd.f32 %v3662, %v3676
        %v3687 = vadd.f32 %v3663, %v3676
        %v3688 = vadd.f32 %v3664, %v3676
        %v3689 = vadd.f32 %v3665, %v3676
        %v3690 = vmax.f32 %v3678, 0.0
        %v3691 = vmax.f32 %v3679, 0.0
        %v3692 = vmax.f32 %v3680, 0.0
        %v3693 = vmax.f32 %v3681, 0.0
        %v3694 = vmax.f32 %v3682, 0.0
        %v3695 = vmax.f32 %v3683, 0.0
        %v3696 = vmax.f32 %v3684, 0.0
        %v3697 = vmax.f32 %v3685, 0.0
        %v3698 = vmax.f32 %v3686, 0.0
        %v3699 = vmax.f32 %v3687, 0.0
        %v3700 = vmax.f32 %v3688, 0.0
        %v3701 = vmax.f32 %v3689, 0.0
        %v3702 = vsel %vm287, %v3582, 0
        %v3704 = vsel %vm287, %v3583, 0
        %v3706 = vsel %vm287, %v3584, 0
        %3708 = vmatpush.msra.mxu0 0.0
        %3709 = vmatpush.msra.mxu0 0.0
        %3710 = vmatpush.msra.mxu0 0.0
        %3711 = vmatpush.msra.mxu0 0.0
        %3712 = vmatpush.msra.mxu0 0.0
        %3713 = vmatpush.msra.mxu0 0.0
        %3714 = vmatpush.msra.mxu0 0.0
        %3715 = vmatpush.msra.mxu0 0.0
        %3716 = vmatpush.msra.mxu0 0.0
        %3717 = vmatpush.msra.mxu0 0.0
        %3718 = vmatpush.msra.mxu0 0.0
        %3719 = vmatpush.msra.mxu0 0.0
        %3720 = vmatpush.msra.mxu0 0.0
        %3721 = vmatpush.msra.mxu0 %v3698
        %3722 = vmatpush.msra.mxu0 %v3694
        %3723 = vmatpush.msra.mxu0 %v3690
        %3724 = vmatmul.f32.gmra.mxu0 %v3702
        %v3725 = vpop.f32.mrf.mxu0
        %v3726 = vadd.f32 0.0, %v3725
        %3727 = vmatmul.f32.gmra.mxu0 %v3704
        %v3728 = vpop.f32.mrf.mxu0
        %v3729 = vadd.f32 0.0, %v3728
        %3730 = vmatmul.f32.gmra.mxu0 %v3706
        %v3731 = vpop.f32.mrf.mxu0
        %v3732 = vadd.f32 0.0, %v3731
        %3733 = vdwg.mxu0
        %3734 = vmatpush.msra.mxu0 0.0
        %3735 = vmatpush.msra.mxu0 0.0
        %3736 = vmatpush.msra.mxu0 0.0
        %3737 = vmatpush.msra.mxu0 0.0
        %3738 = vmatpush.msra.mxu0 0.0
        %3739 = vmatpush.msra.mxu0 0.0
        %3740 = vmatpush.msra.mxu0 0.0
        %3741 = vmatpush.msra.mxu0 0.0
        %3742 = vmatpush.msra.mxu0 0.0
        %3743 = vmatpush.msra.mxu0 0.0
        %3744 = vmatpush.msra.mxu0 0.0
        %3745 = vmatpush.msra.mxu0 0.0
        %3746 = vmatpush.msra.mxu0 0.0
        %3747 = vmatpush.msra.mxu0 %v3699
        %3748 = vmatpush.msra.mxu0 %v3695
        %3749 = vmatpush.msra.mxu0 %v3691
        %3750 = vmatmul.f32.gmra.mxu0 %v3702
        %v3751 = vpop.f32.mrf.mxu0
        %v3752 = vadd.f32 0.0, %v3751
        %3753 = vmatmul.f32.gmra.mxu0 %v3704
        %v3754 = vpop.f32.mrf.mxu0
        %v3755 = vadd.f32 0.0, %v3754
        %3756 = vmatmul.f32.gmra.mxu0 %v3706
        %v3757 = vpop.f32.mrf.mxu0
        %v3758 = vadd.f32 0.0, %v3757
        %3759 = vdwg.mxu0
        %3760 = vmatpush.msra.mxu0 0.0
        %3761 = vmatpush.msra.mxu0 0.0
        %3762 = vmatpush.msra.mxu0 0.0
        %3763 = vmatpush.msra.mxu0 0.0
        %3764 = vmatpush.msra.mxu0 0.0
        %3765 = vmatpush.msra.mxu0 0.0
        %3766 = vmatpush.msra.mxu0 0.0
        %3767 = vmatpush.msra.mxu0 0.0
        %3768 = vmatpush.msra.mxu0 0.0
        %3769 = vmatpush.msra.mxu0 0.0
        %3770 = vmatpush.msra.mxu0 0.0
        %3771 = vmatpush.msra.mxu0 0.0
        %3772 = vmatpush.msra.mxu0 0.0
        %3773 = vmatpush.msra.mxu0 %v3700
        %3774 = vmatpush.msra.mxu0 %v3696
        %3775 = vmatpush.msra.mxu0 %v3692
        %3776 = vmatmul.f32.gmra.mxu0 %v3702
        %v3777 = vpop.f32.mrf.mxu0
        %v3778 = vadd.f32 0.0, %v3777
        %3779 = vmatmul.f32.gmra.mxu0 %v3704
        %v3780 = vpop.f32.mrf.mxu0
        %v3781 = vadd.f32 0.0, %v3780
        %3782 = vmatmul.f32.gmra.mxu0 %v3706
        %v3783 = vpop.f32.mrf.mxu0
        %v3784 = vadd.f32 0.0, %v3783
        %3785 = vdwg.mxu0
        %3786 = vmatpush.msra.mxu0 0.0
        %3787 = vmatpush.msra.mxu0 0.0
        %3788 = vmatpush.msra.mxu0 0.0
        %3789 = vmatpush.msra.mxu0 0.0
        %3790 = vmatpush.msra.mxu0 0.0
        %3791 = vmatpush.msra.mxu0 0.0
        %3792 = vmatpush.msra.mxu0 0.0
        %3793 = vmatpush.msra.mxu0 0.0
        %3794 = vmatpush.msra.mxu0 0.0
        %3795 = vmatpush.msra.mxu0 0.0
        %3796 = vmatpush.msra.mxu0 0.0
        %3797 = vmatpush.msra.mxu0 0.0
        %3798 = vmatpush.msra.mxu0 0.0
        %3799 = vmatpush.msra.mxu0 %v3701
        %3800 = vmatpush.msra.mxu0 %v3697
        %3801 = vmatpush.msra.mxu0 %v3693
        %3802 = vmatmul.f32.gmra.mxu0 %v3702
        %v3803 = vpop.f32.mrf.mxu0
        %v3804 = vadd.f32 0.0, %v3803
        %3805 = vmatmul.f32.gmra.mxu0 %v3704
        %v3806 = vpop.f32.mrf.mxu0
        %v3807 = vadd.f32 0.0, %v3806
        %3808 = vmatmul.f32.gmra.mxu0 %v3706
        %v3809 = vpop.f32.mrf.mxu0
        %v3810 = vadd.f32 0.0, %v3809
        %3811 = vdwg.mxu0
        %v3812 = vmax.f32 %v3726, 0.0
        %v3813 = vmax.f32 %v3752, 0.0
        %v3814 = vmax.f32 %v3778, 0.0
        %v3815 = vmax.f32 %v3804, 0.0
        %v3816 = vmax.f32 %v3729, 0.0
        %v3817 = vmax.f32 %v3755, 0.0
        %v3818 = vmax.f32 %v3781, 0.0
        %v3819 = vmax.f32 %v3807, 0.0
        %v3820 = vmax.f32 %v3732, 0.0
        %v3821 = vmax.f32 %v3758, 0.0
        %v3822 = vmax.f32 %v3784, 0.0
        %v3823 = vmax.f32 %v3810, 0.0
        %3824 = vset.pattern.permute.xlu0 26
        %3825 = vperm.xlu0 %3824, %v3582
        %v3826 = vpop.permute.xlu0 %3825
        %3828 = vset.pattern.permute.xlu0 26
        %3829 = vperm.xlu0 %3828, %v3583
        %v3830 = vpop.permute.xlu0 %3829
        %3832 = vset.pattern.permute.xlu0 26
        %3833 = vperm.xlu0 %3832, %v3584
        %v3834 = vpop.permute.xlu0 %3833
        %v3836 = vmul.f32 %v3826, %v3812
        %v3837 = vmul.f32 %v3826, %v3813
        %v3838 = vmul.f32 %v3826, %v3814
        %v3839 = vmul.f32 %v3826, %v3815
        %v3840 = vmul.f32 %v3830, %v3816
        %v3841 = vmul.f32 %v3830, %v3817
        %v3842 = vmul.f32 %v3830, %v3818
        %v3843 = vmul.f32 %v3830, %v3819
        %v3844 = vmul.f32 %v3834, %v3820
        %v3845 = vmul.f32 %v3834, %v3821
        %v3846 = vmul.f32 %v3834, %v3822
        %v3847 = vmul.f32 %v3834, %v3823
        %v3848 = vadd.f32 %v3836, %v3840
        %v3849 = vadd.f32 %v3848, %v3844
        %v3850 = vrot.slane %v3849, 4
        %v3851 = vadd.f32 %v3849, %v3850
        %v3852 = vrot.slane %v3851, 2
        %v3853 = vadd.f32 %v3851, %v3852
        %v3854 = vrot.slane %v3853, 1
        %v3855 = vadd.f32 %v3853, %v3854
        %v3856 = vadd.f32 %v3837, %v3841
        %v3857 = vadd.f32 %v3856, %v3845
        %v3858 = vrot.slane %v3857, 4
        %v3859 = vadd.f32 %v3857, %v3858
        %v3860 = vrot.slane %v3859, 2
        %v3861 = vadd.f32 %v3859, %v3860
        %v3862 = vrot.slane %v3861, 1
        %v3863 = vadd.f32 %v3861, %v3862
        %v3864 = vadd.f32 %v3838, %v3842
        %v3865 = vadd.f32 %v3864, %v3846
        %v3866 = vrot.slane %v3865, 4
        %v3867 = vadd.f32 %v3865, %v3866
        %v3868 = vrot.slane %v3867, 2
        %v3869 = vadd.f32 %v3867, %v3868
        %v3870 = vrot.slane %v3869, 1
        %v3871 = vadd.f32 %v3869, %v3870
        %v3872 = vadd.f32 %v3839, %v3843
        %v3873 = vadd.f32 %v3872, %v3847
        %v3874 = vrot.slane %v3873, 4
        %v3875 = vadd.f32 %v3873, %v3874
        %v3876 = vrot.slane %v3875, 2
        %v3877 = vadd.f32 %v3875, %v3876
        %v3878 = vrot.slane %v3877, 1
        %v3879 = vadd.f32 %v3877, %v3878
        %3880 = vset.pattern.permute.xlu0 27
        %3881 = vperm.xlu0 %3880, %v3582
        %v3882 = vpop.permute.xlu0 %3881
        %3884 = vset.pattern.permute.xlu0 27
        %3885 = vperm.xlu0 %3884, %v3583
        %v3886 = vpop.permute.xlu0 %3885
        %3888 = vset.pattern.permute.xlu0 27
        %3889 = vperm.xlu0 %3888, %v3584
        %v3890 = vpop.permute.xlu0 %3889
        %v3892 = vmul.f32 %v3882, %v3812
        %v3893 = vmul.f32 %v3882, %v3813
        %v3894 = vmul.f32 %v3882, %v3814
        %v3895 = vmul.f32 %v3882, %v3815
        %v3896 = vmul.f32 %v3886, %v3816
        %v3897 = vmul.f32 %v3886, %v3817
        %v3898 = vmul.f32 %v3886, %v3818
        %v3899 = vmul.f32 %v3886, %v3819
        %v3900 = vmul.f32 %v3890, %v3820
        %v3901 = vmul.f32 %v3890, %v3821
        %v3902 = vmul.f32 %v3890, %v3822
        %v3903 = vmul.f32 %v3890, %v3823
        %v3904 = vadd.f32 %v3892, %v3896
        %v3905 = vadd.f32 %v3904, %v3900
        %v3906 = vrot.slane %v3905, 4
        %v3907 = vadd.f32 %v3905, %v3906
        %v3908 = vrot.slane %v3907, 2
        %v3909 = vadd.f32 %v3907, %v3908
        %v3910 = vrot.slane %v3909, 1
        %v3911 = vadd.f32 %v3909, %v3910
        %v3912 = vadd.f32 %v3893, %v3897
        %v3913 = vadd.f32 %v3912, %v3901
        %v3914 = vrot.slane %v3913, 4
        %v3915 = vadd.f32 %v3913, %v3914
        %v3916 = vrot.slane %v3915, 2
        %v3917 = vadd.f32 %v3915, %v3916
        %v3918 = vrot.slane %v3917, 1
        %v3919 = vadd.f32 %v3917, %v3918
        %v3920 = vadd.f32 %v3894, %v3898
        %v3921 = vadd.f32 %v3920, %v3902
        %v3922 = vrot.slane %v3921, 4
        %v3923 = vadd.f32 %v3921, %v3922
        %v3924 = vrot.slane %v3923, 2
        %v3925 = vadd.f32 %v3923, %v3924
        %v3926 = vrot.slane %v3925, 1
        %v3927 = vadd.f32 %v3925, %v3926
        %v3928 = vadd.f32 %v3895, %v3899
        %v3929 = vadd.f32 %v3928, %v3903
        %v3930 = vrot.slane %v3929, 4
        %v3931 = vadd.f32 %v3929, %v3930
        %v3932 = vrot.slane %v3931, 2
        %v3933 = vadd.f32 %v3931, %v3932
        %v3934 = vrot.slane %v3933, 1
        %v3935 = vadd.f32 %v3933, %v3934
        %v3940 = vrot.slane %v3863, 7
        %v3941 = vrot.slane %v3871, 6
        %v3942 = vrot.slane %v3879, 5
        %v3943 = vsel %vm529, %v3855, %v3940
        %v3944 = vsel %vm531, %v3941, %v3942
        %v3945 = vsel %vm533, %v3943, %v3944
        %v3947 = vadd.f32 %v3568, %v3945
        %v3952 = vrot.slane %v3919, 7
        %v3953 = vrot.slane %v3927, 6
        %v3954 = vrot.slane %v3935, 5
        %v3955 = vsel %vm529, %v3911, %v3952
        %v3956 = vsel %vm531, %v3953, %v3954
        %v3957 = vsel %vm533, %v3955, %v3956
        %v3959 = vadd.f32 %v3580, %v3957
        %s3960 = scalar_lea.vmem [#allocation2], 240
        %v3961 = vld [vmem:[%s3960] sm:$0xff]
        %v3962 = vld [vmem:[%s3960 + $0x8] sm:$0xff]
        %v3963 = vld [vmem:[%s3960 + $0x10] sm:$0xff]
        %3965 = vset.pattern.permute.xlu0 24
        %3966 = vperm.xlu0 %3965, %v3961
        %v3967 = vpop.permute.xlu0 %3966
        %3970 = vset.pattern.permute.xlu0 24
        %3971 = vperm.xlu0 %3970, %v3962
        %v3972 = vpop.permute.xlu0 %3971
        %3975 = vset.pattern.permute.xlu0 24
        %3976 = vperm.xlu0 %3975, %v3963
        %v3977 = vpop.permute.xlu0 %3976
        %v3980 = vperm.slane %v3947, 0
        %v3981 = vperm.slane %v3947, 1
        %v3982 = vperm.slane %v3947, 2
        %v3983 = vperm.slane %v3947, 3
        %v3988 = vmul.f32 %v3967, %v3980
        %v3989 = vmul.f32 %v3967, %v3981
        %v3990 = vmul.f32 %v3967, %v3982
        %v3991 = vmul.f32 %v3967, %v3983
        %v3992 = vmul.f32 %v3972, %v3980
        %v3993 = vmul.f32 %v3972, %v3981
        %v3994 = vmul.f32 %v3972, %v3982
        %v3995 = vmul.f32 %v3972, %v3983
        %v3996 = vmul.f32 %v3977, %v3980
        %v3997 = vmul.f32 %v3977, %v3981
        %v3998 = vmul.f32 %v3977, %v3982
        %v3999 = vmul.f32 %v3977, %v3983
        %4000 = vset.pattern.permute.xlu0 25
        %4001 = vperm.xlu0 %4000, %v3961
        %v4002 = vpop.permute.xlu0 %4001
        %4004 = vset.pattern.permute.xlu0 25
        %4005 = vperm.xlu0 %4004, %v3962
        %v4006 = vpop.permute.xlu0 %4005
        %4008 = vset.pattern.permute.xlu0 25
        %4009 = vperm.xlu0 %4008, %v3963
        %v4010 = vpop.permute.xlu0 %4009
        %v4013 = vperm.slane %v3959, 0
        %v4014 = vperm.slane %v3959, 1
        %v4015 = vperm.slane %v3959, 2
        %v4016 = vperm.slane %v3959, 3
        %v4021 = vmul.f32 %v4002, %v4013
        %v4022 = vmul.f32 %v4002, %v4014
        %v4023 = vmul.f32 %v4002, %v4015
        %v4024 = vmul.f32 %v4002, %v4016
        %v4025 = vmul.f32 %v4006, %v4013
        %v4026 = vmul.f32 %v4006, %v4014
        %v4027 = vmul.f32 %v4006, %v4015
        %v4028 = vmul.f32 %v4006, %v4016
        %v4029 = vmul.f32 %v4010, %v4013
        %v4030 = vmul.f32 %v4010, %v4014
        %v4031 = vmul.f32 %v4010, %v4015
        %v4032 = vmul.f32 %v4010, %v4016
        %v4033 = vadd.f32 %v3988, %v4021
        %v4034 = vadd.f32 %v3989, %v4022
        %v4035 = vadd.f32 %v3990, %v4023
        %v4036 = vadd.f32 %v3991, %v4024
        %v4037 = vadd.f32 %v3992, %v4025
        %v4038 = vadd.f32 %v3993, %v4026
        %v4039 = vadd.f32 %v3994, %v4027
        %v4040 = vadd.f32 %v3995, %v4028
        %v4041 = vadd.f32 %v3996, %v4029
        %v4042 = vadd.f32 %v3997, %v4030
        %v4043 = vadd.f32 %v3998, %v4031
        %v4044 = vadd.f32 %v3999, %v4032
        %4045 = vset.pattern.permute.xlu0 28
        %4046 = vperm.xlu0 %4045, %v3961
        %v4047 = vpop.permute.xlu0 %4046
        %4049 = vset.pattern.permute.xlu0 28
        %4050 = vperm.xlu0 %4049, %v3962
        %v4051 = vpop.permute.xlu0 %4050
        %4053 = vset.pattern.permute.xlu0 28
        %4054 = vperm.xlu0 %4053, %v3963
        %v4055 = vpop.permute.xlu0 %4054
        %v4057 = vadd.f32 %v4033, %v4047
        %v4058 = vadd.f32 %v4034, %v4047
        %v4059 = vadd.f32 %v4035, %v4047
        %v4060 = vadd.f32 %v4036, %v4047
        %v4061 = vadd.f32 %v4037, %v4051
        %v4062 = vadd.f32 %v4038, %v4051
        %v4063 = vadd.f32 %v4039, %v4051
        %v4064 = vadd.f32 %v4040, %v4051
        %v4065 = vadd.f32 %v4041, %v4055
        %v4066 = vadd.f32 %v4042, %v4055
        %v4067 = vadd.f32 %v4043, %v4055
        %v4068 = vadd.f32 %v4044, %v4055
        %v4069 = vmax.f32 %v4057, 0.0
        %v4070 = vmax.f32 %v4058, 0.0
        %v4071 = vmax.f32 %v4059, 0.0
        %v4072 = vmax.f32 %v4060, 0.0
        %v4073 = vmax.f32 %v4061, 0.0
        %v4074 = vmax.f32 %v4062, 0.0
        %v4075 = vmax.f32 %v4063, 0.0
        %v4076 = vmax.f32 %v4064, 0.0
        %v4077 = vmax.f32 %v4065, 0.0
        %v4078 = vmax.f32 %v4066, 0.0
        %v4079 = vmax.f32 %v4067, 0.0
        %v4080 = vmax.f32 %v4068, 0.0
        %v4081 = vsel %vm287, %v3961, 0
        %v4083 = vsel %vm287, %v3962, 0
        %v4085 = vsel %vm287, %v3963, 0
        %4087 = vmatpush.msra.mxu0 0.0
        %4088 = vmatpush.msra.mxu0 0.0
        %4089 = vmatpush.msra.mxu0 0.0
        %4090 = vmatpush.msra.mxu0 0.0
        %4091 = vmatpush.msra.mxu0 0.0
        %4092 = vmatpush.msra.mxu0 0.0
        %4093 = vmatpush.msra.mxu0 0.0
        %4094 = vmatpush.msra.mxu0 0.0
        %4095 = vmatpush.msra.mxu0 0.0
        %4096 = vmatpush.msra.mxu0 0.0
        %4097 = vmatpush.msra.mxu0 0.0
        %4098 = vmatpush.msra.mxu0 0.0
        %4099 = vmatpush.msra.mxu0 0.0
        %4100 = vmatpush.msra.mxu0 %v4077
        %4101 = vmatpush.msra.mxu0 %v4073
        %4102 = vmatpush.msra.mxu0 %v4069
        %4103 = vmatmul.f32.gmra.mxu0 %v4081
        %v4104 = vpop.f32.mrf.mxu0
        %v4105 = vadd.f32 0.0, %v4104
        %4106 = vmatmul.f32.gmra.mxu0 %v4083
        %v4107 = vpop.f32.mrf.mxu0
        %v4108 = vadd.f32 0.0, %v4107
        %4109 = vmatmul.f32.gmra.mxu0 %v4085
        %v4110 = vpop.f32.mrf.mxu0
        %v4111 = vadd.f32 0.0, %v4110
        %4112 = vdwg.mxu0
        %4113 = vmatpush.msra.mxu0 0.0
        %4114 = vmatpush.msra.mxu0 0.0
        %4115 = vmatpush.msra.mxu0 0.0
        %4116 = vmatpush.msra.mxu0 0.0
        %4117 = vmatpush.msra.mxu0 0.0
        %4118 = vmatpush.msra.mxu0 0.0
        %4119 = vmatpush.msra.mxu0 0.0
        %4120 = vmatpush.msra.mxu0 0.0
        %4121 = vmatpush.msra.mxu0 0.0
        %4122 = vmatpush.msra.mxu0 0.0
        %4123 = vmatpush.msra.mxu0 0.0
        %4124 = vmatpush.msra.mxu0 0.0
        %4125 = vmatpush.msra.mxu0 0.0
        %4126 = vmatpush.msra.mxu0 %v4078
        %4127 = vmatpush.msra.mxu0 %v4074
        %4128 = vmatpush.msra.mxu0 %v4070
        %4129 = vmatmul.f32.gmra.mxu0 %v4081
        %v4130 = vpop.f32.mrf.mxu0
        %v4131 = vadd.f32 0.0, %v4130
        %4132 = vmatmul.f32.gmra.mxu0 %v4083
        %v4133 = vpop.f32.mrf.mxu0
        %v4134 = vadd.f32 0.0, %v4133
        %4135 = vmatmul.f32.gmra.mxu0 %v4085
        %v4136 = vpop.f32.mrf.mxu0
        %v4137 = vadd.f32 0.0, %v4136
        %4138 = vdwg.mxu0
        %4139 = vmatpush.msra.mxu0 0.0
        %4140 = vmatpush.msra.mxu0 0.0
        %4141 = vmatpush.msra.mxu0 0.0
        %4142 = vmatpush.msra.mxu0 0.0
        %4143 = vmatpush.msra.mxu0 0.0
        %4144 = vmatpush.msra.mxu0 0.0
        %4145 = vmatpush.msra.mxu0 0.0
        %4146 = vmatpush.msra.mxu0 0.0
        %4147 = vmatpush.msra.mxu0 0.0
        %4148 = vmatpush.msra.mxu0 0.0
        %4149 = vmatpush.msra.mxu0 0.0
        %4150 = vmatpush.msra.mxu0 0.0
        %4151 = vmatpush.msra.mxu0 0.0
        %4152 = vmatpush.msra.mxu0 %v4079
        %4153 = vmatpush.msra.mxu0 %v4075
        %4154 = vmatpush.msra.mxu0 %v4071
        %4155 = vmatmul.f32.gmra.mxu0 %v4081
        %v4156 = vpop.f32.mrf.mxu0
        %v4157 = vadd.f32 0.0, %v4156
        %4158 = vmatmul.f32.gmra.mxu0 %v4083
        %v4159 = vpop.f32.mrf.mxu0
        %v4160 = vadd.f32 0.0, %v4159
        %4161 = vmatmul.f32.gmra.mxu0 %v4085
        %v4162 = vpop.f32.mrf.mxu0
        %v4163 = vadd.f32 0.0, %v4162
        %4164 = vdwg.mxu0
        %4165 = vmatpush.msra.mxu0 0.0
        %4166 = vmatpush.msra.mxu0 0.0
        %4167 = vmatpush.msra.mxu0 0.0
        %4168 = vmatpush.msra.mxu0 0.0
        %4169 = vmatpush.msra.mxu0 0.0
        %4170 = vmatpush.msra.mxu0 0.0
        %4171 = vmatpush.msra.mxu0 0.0
        %4172 = vmatpush.msra.mxu0 0.0
        %4173 = vmatpush.msra.mxu0 0.0
        %4174 = vmatpush.msra.mxu0 0.0
        %4175 = vmatpush.msra.mxu0 0.0
        %4176 = vmatpush.msra.mxu0 0.0
        %4177 = vmatpush.msra.mxu0 0.0
        %4178 = vmatpush.msra.mxu0 %v4080
        %4179 = vmatpush.msra.mxu0 %v4076
        %4180 = vmatpush.msra.mxu0 %v4072
        %4181 = vmatmul.f32.gmra.mxu0 %v4081
        %v4182 = vpop.f32.mrf.mxu0
        %v4183 = vadd.f32 0.0, %v4182
        %4184 = vmatmul.f32.gmra.mxu0 %v4083
        %v4185 = vpop.f32.mrf.mxu0
        %v4186 = vadd.f32 0.0, %v4185
        %4187 = vmatmul.f32.gmra.mxu0 %v4085
        %v4188 = vpop.f32.mrf.mxu0
        %v4189 = vadd.f32 0.0, %v4188
        %4190 = vdwg.mxu0
        %v4191 = vmax.f32 %v4105, 0.0
        %v4192 = vmax.f32 %v4131, 0.0
        %v4193 = vmax.f32 %v4157, 0.0
        %v4194 = vmax.f32 %v4183, 0.0
        %v4195 = vmax.f32 %v4108, 0.0
        %v4196 = vmax.f32 %v4134, 0.0
        %v4197 = vmax.f32 %v4160, 0.0
        %v4198 = vmax.f32 %v4186, 0.0
        %v4199 = vmax.f32 %v4111, 0.0
        %v4200 = vmax.f32 %v4137, 0.0
        %v4201 = vmax.f32 %v4163, 0.0
        %v4202 = vmax.f32 %v4189, 0.0
        %4203 = vset.pattern.permute.xlu0 26
        %4204 = vperm.xlu0 %4203, %v3961
        %v4205 = vpop.permute.xlu0 %4204
        %4207 = vset.pattern.permute.xlu0 26
        %4208 = vperm.xlu0 %4207, %v3962
        %v4209 = vpop.permute.xlu0 %4208
        %4211 = vset.pattern.permute.xlu0 26
        %4212 = vperm.xlu0 %4211, %v3963
        %v4213 = vpop.permute.xlu0 %4212
        %v4215 = vmul.f32 %v4205, %v4191
        %v4216 = vmul.f32 %v4205, %v4192
        %v4217 = vmul.f32 %v4205, %v4193
        %v4218 = vmul.f32 %v4205, %v4194
        %v4219 = vmul.f32 %v4209, %v4195
        %v4220 = vmul.f32 %v4209, %v4196
        %v4221 = vmul.f32 %v4209, %v4197
        %v4222 = vmul.f32 %v4209, %v4198
        %v4223 = vmul.f32 %v4213, %v4199
        %v4224 = vmul.f32 %v4213, %v4200
        %v4225 = vmul.f32 %v4213, %v4201
        %v4226 = vmul.f32 %v4213, %v4202
        %v4227 = vadd.f32 %v4215, %v4219
        %v4228 = vadd.f32 %v4227, %v4223
        %v4229 = vrot.slane %v4228, 4
        %v4230 = vadd.f32 %v4228, %v4229
        %v4231 = vrot.slane %v4230, 2
        %v4232 = vadd.f32 %v4230, %v4231
        %v4233 = vrot.slane %v4232, 1
        %v4234 = vadd.f32 %v4232, %v4233
        %v4235 = vadd.f32 %v4216, %v4220
        %v4236 = vadd.f32 %v4235, %v4224
        %v4237 = vrot.slane %v4236, 4
        %v4238 = vadd.f32 %v4236, %v4237
        %v4239 = vrot.slane %v4238, 2
        %v4240 = vadd.f32 %v4238, %v4239
        %v4241 = vrot.slane %v4240, 1
        %v4242 = vadd.f32 %v4240, %v4241
        %v4243 = vadd.f32 %v4217, %v4221
        %v4244 = vadd.f32 %v4243, %v4225
        %v4245 = vrot.slane %v4244, 4
        %v4246 = vadd.f32 %v4244, %v4245
        %v4247 = vrot.slane %v4246, 2
        %v4248 = vadd.f32 %v4246, %v4247
        %v4249 = vrot.slane %v4248, 1
        %v4250 = vadd.f32 %v4248, %v4249
        %v4251 = vadd.f32 %v4218, %v4222
        %v4252 = vadd.f32 %v4251, %v4226
        %v4253 = vrot.slane %v4252, 4
        %v4254 = vadd.f32 %v4252, %v4253
        %v4255 = vrot.slane %v4254, 2
        %v4256 = vadd.f32 %v4254, %v4255
        %v4257 = vrot.slane %v4256, 1
        %v4258 = vadd.f32 %v4256, %v4257
        %4259 = vset.pattern.permute.xlu0 27
        %4260 = vperm.xlu0 %4259, %v3961
        %v4261 = vpop.permute.xlu0 %4260
        %4263 = vset.pattern.permute.xlu0 27
        %4264 = vperm.xlu0 %4263, %v3962
        %v4265 = vpop.permute.xlu0 %4264
        %4267 = vset.pattern.permute.xlu0 27
        %4268 = vperm.xlu0 %4267, %v3963
        %v4269 = vpop.permute.xlu0 %4268
        %v4271 = vmul.f32 %v4261, %v4191
        %v4272 = vmul.f32 %v4261, %v4192
        %v4273 = vmul.f32 %v4261, %v4193
        %v4274 = vmul.f32 %v4261, %v4194
        %v4275 = vmul.f32 %v4265, %v4195
        %v4276 = vmul.f32 %v4265, %v4196
        %v4277 = vmul.f32 %v4265, %v4197
        %v4278 = vmul.f32 %v4265, %v4198
        %v4279 = vmul.f32 %v4269, %v4199
        %v4280 = vmul.f32 %v4269, %v4200
        %v4281 = vmul.f32 %v4269, %v4201
        %v4282 = vmul.f32 %v4269, %v4202
        %v4283 = vadd.f32 %v4271, %v4275
        %v4284 = vadd.f32 %v4283, %v4279
        %v4285 = vrot.slane %v4284, 4
        %v4286 = vadd.f32 %v4284, %v4285
        %v4287 = vrot.slane %v4286, 2
        %v4288 = vadd.f32 %v4286, %v4287
        %v4289 = vrot.slane %v4288, 1
        %v4290 = vadd.f32 %v4288, %v4289
        %v4291 = vadd.f32 %v4272, %v4276
        %v4292 = vadd.f32 %v4291, %v4280
        %v4293 = vrot.slane %v4292, 4
        %v4294 = vadd.f32 %v4292, %v4293
        %v4295 = vrot.slane %v4294, 2
        %v4296 = vadd.f32 %v4294, %v4295
        %v4297 = vrot.slane %v4296, 1
        %v4298 = vadd.f32 %v4296, %v4297
        %v4299 = vadd.f32 %v4273, %v4277
        %v4300 = vadd.f32 %v4299, %v4281
        %v4301 = vrot.slane %v4300, 4
        %v4302 = vadd.f32 %v4300, %v4301
        %v4303 = vrot.slane %v4302, 2
        %v4304 = vadd.f32 %v4302, %v4303
        %v4305 = vrot.slane %v4304, 1
        %v4306 = vadd.f32 %v4304, %v4305
        %v4307 = vadd.f32 %v4274, %v4278
        %v4308 = vadd.f32 %v4307, %v4282
        %v4309 = vrot.slane %v4308, 4
        %v4310 = vadd.f32 %v4308, %v4309
        %v4311 = vrot.slane %v4310, 2
        %v4312 = vadd.f32 %v4310, %v4311
        %v4313 = vrot.slane %v4312, 1
        %v4314 = vadd.f32 %v4312, %v4313
        %v4319 = vrot.slane %v4242, 7
        %v4320 = vrot.slane %v4250, 6
        %v4321 = vrot.slane %v4258, 5
        %v4322 = vsel %vm529, %v4234, %v4319
        %v4323 = vsel %vm531, %v4320, %v4321
        %v4324 = vsel %vm533, %v4322, %v4323
        %v4326 = vadd.f32 %v3947, %v4324
        %v4331 = vrot.slane %v4298, 7
        %v4332 = vrot.slane %v4306, 6
        %v4333 = vrot.slane %v4314, 5
        %v4334 = vsel %vm529, %v4290, %v4331
        %v4335 = vsel %vm531, %v4332, %v4333
        %v4336 = vsel %vm533, %v4334, %v4335
        %v4338 = vadd.f32 %v3959, %v4336
        %v4340 = vperm.slane %v4326, 0
        %v4341 = vperm.slane %v4326, 1
        %v4342 = vperm.slane %v4326, 2
        %v4343 = vperm.slane %v4326, 3
        %v4349 = vperm.slane %v4338, 0
        %v4350 = vperm.slane %v4338, 1
        %v4351 = vperm.slane %v4338, 2
        %v4352 = vperm.slane %v4338, 3
        %v4357 = vsel %vm529, %v4340, %v4349
        %v4358 = vsel %vm529, %v4341, %v4350
        %v4359 = vsel %vm529, %v4342, %v4351
        %v4360 = vsel %vm529, %v4343, %v4352
        %v4365 = vrot.slane %v4358, 6
        %v4366 = vrot.slane %v4359, 4
        %v4367 = vrot.slane %v4360, 2
        %v4368 = vsel %vm533, %v4357, %v4365
        %vm4369 = vcmask 1045508
        %v4370 = vsel %vm4369, %v4366, %v4367
        %vm4371 = vcmask 1043456
        %v4372 = vsel %vm4371, %v4368, %v4370
        %4374 = vst [vmem:[%s162] sm:$0xff] %v4372
        %s4375 = smul.u32 4, %s14
        %p4376 = scmp.lt.s32.totalorder %s4375, 7
        %s4377 = scalar_select %p4376, %s4375, 7
        %s4378 = smul.addr %s4377, 2
        %s4379 = scalar_lea.vmem %s2, %s4378
        // Predicated region
        $region33: #{resnet_forward.1} parent=27 // pred_check
          %p4380 = pneg %p79
        $region34: #{resnet_forward.1} parent=27 // pred_check_branch
          %4382 = sbr.rel (%p4380) target = $region36
        $region35: #{resnet_forward.1} parent=27 // pred_region
          %s4383 = smul.u32 4, %s14
        $region36: #{resnet_forward.1} parent=27 // pred_fallthru
          _
      $region28: #{resnet_forward.1} parent=5 // pred_fallthru
        _
      %p4384 = scmp.le.s32.totalorder 2, %s9
      // Predicated region
      $region37: #{resnet_forward.1} parent=5 // pred_check
        %p4385 = pneg %p4384
      $region38: #{resnet_forward.1} parent=5 // pred_check_branch
        %4387 = sbr.rel (%p4385) target = $region40
      $region39: #{resnet_forward.1} parent=5 // pred_region
        %s4388 = ssub.s32 %s9, 2
        // Predicated region
        $region41: #{resnet_forward.1} parent=39 // pred_check
          %p4389 = pneg %p85
        $region42: #{resnet_forward.1} parent=39 // pred_check_branch
          %4391 = sbr.rel (%p4389) target = $region44
        $region43: #{resnet_forward.1} parent=39 // pred_region
          %s4392 = smul.u32 4, %s15
          %p4393 = scmp.lt.s32.totalorder %s4392, 7
          %s4394 = scalar_select %p4393, %s4392, 7
          %s4395 = smul.addr %s4394, 2
          %s4396 = scalar_lea.vmem %s2, %s4395
        $region44: #{resnet_forward.1} parent=39 // pred_fallthru
          _
      $region40: #{resnet_forward.1} parent=5 // pred_fallthru
        _
    $region6: #{resnet_forward.1} parent=1 // loop_footer
      %s13 = sadd.s32 1, %s9
    $region7: #{resnet_forward.1} parent=1 // loop_footer_branch
      %8 = sbr.rel target = $region3
    $region8: #{resnet_forward.1} parent=1 // loop_exit
      _
    %4397 = vsyncpa [#allocation3], 1
    %s4398 = scalar_lea.sflag [#allocation3], 1
    %4399 = vsyncpa %s4398, 1

</llo_original>
